<compile_context>
chip_gen: v7x
topology: tpu7x:2x2x1
jax: 0.10.0
libtpu: 0.0.40
codegen_flags: <defaults>
</compile_context>

<pallas_src>
import jax
import jax.numpy as jnp
from jax import lax
from jax.experimental import pallas as pl
from jax.experimental.pallas import tpu as pltpu  # noqa: F401  (TPU backend)

# ---------------------------------------------------------------------------
# Static configuration (the PyTorch module takes these as constructor args).
# ---------------------------------------------------------------------------
C_IN, C_OUT, K, STRIDE, PAD = 4, 8, 3, 2, 1
H = W = 16
HO = WO = (H + 2 * PAD - K) // STRIDE + 1            # 8
ENC_VEC = C_OUT * HO * WO                            # 512
HIDDEN = (32, 32)
NUM_ACTIONS = 6
LANE_PAD = 128                                       # pad all layer widths to 128 lanes
PATCH_K = C_IN * K * K                               # 36
PATCH_ROWS = HO * WO * PATCH_K                       # 2304


# ---------------------------------------------------------------------------
# Fused Pallas kernel: conv (as dense matmul) + ReLU + 2x(Linear+ReLU) + Linear
# All operands are whole-array VMEM tiles; intermediates never leave VMEM.
# ---------------------------------------------------------------------------
def _fused_mlp_tail_kernel(p_ref, wc_ref, bc_ref, w0_ref, b0_ref,
                           w1_ref, b1_ref, wo_ref, bo_ref, out_ref):
    # Conv2d folded to a dense matmul + bias + ReLU -> (B, 512), NCHW-flatten order.
    e = jnp.dot(p_ref[...], wc_ref[...], preferred_element_type=jnp.float32)
    e = jnp.maximum(e + bc_ref[...], 0.0)
    # Hidden 0: Linear + ReLU  (Dropout p=0.4 is identity in eval mode).
    h = jnp.dot(e, w0_ref[...], preferred_element_type=jnp.float32)
    h = jnp.maximum(h + b0_ref[...], 0.0)
    # Hidden 1: Linear + ReLU.
    h = jnp.dot(h, w1_ref[...], preferred_element_type=jnp.float32)
    h = jnp.maximum(h + b1_ref[...], 0.0)
    # Output Linear (no ReLU). Lanes >= NUM_ACTIONS carry zero weights/bias.
    o = jnp.dot(h, wo_ref[...], preferred_element_type=jnp.float32) + bo_ref[...]
    out_ref[...] = o.astype(out_ref.dtype)


def _full_spec(shape):
    # Whole-array block (block_shape == array dims satisfies the (8,128) rule).
    return pl.BlockSpec(shape, lambda: (0,) * len(shape))


def fused_mlp_tail(patches_flat, fp):
    b = patches_flat.shape[0]
    operands = (patches_flat, fp["w_conv"], fp["b_conv"],
                fp["w_h0"], fp["b_h0"], fp["w_h1"], fp["b_h1"],
                fp["w_out"], fp["b_out"])
    return pl.pallas_call(
        _fused_mlp_tail_kernel,
        out_shape=jax.ShapeDtypeStruct((b, LANE_PAD), jnp.float32),
        in_specs=[_full_spec(op.shape) for op in operands],
        out_specs=_full_spec((b, LANE_PAD)),
    )(*operands)


# ---------------------------------------------------------------------------
# Forward pass: one XLA im2col conv (glue) + one fused Pallas kernel + slice.
# ---------------------------------------------------------------------------
def mlp_tail_forward(x, fp):
    b = x.shape[0]
    # im2col via an identity "patch extractor" conv kernel (one XLA op).
    # Output feature order is (c_in, kh, kw) by construction of w_patch.
    patches = lax.conv_general_dilated(
        x, fp["w_patch"],
        window_strides=(STRIDE, STRIDE),
        padding=((PAD, PAD), (PAD, PAD)),
        dimension_numbers=("NCHW", "OIHW", "NHWC"))          # (B, HO, WO, 36)
    p = patches.reshape(b, PATCH_ROWS)                       # (B, 2304), free reshape
    logits_pad = fused_mlp_tail(p, fp)                       # (B, 128) lane-dense slab
    return logits_pad[:, :NUM_ACTIONS]                       # (B, 6)


# ---------------------------------------------------------------------------
# Parameter init (PyTorch-style layouts) + one-time packing for the kernel.
# ---------------------------------------------------------------------------
def init_raw_params(key):
    keys = jax.random.split(key, 8)

    def lin(kw_, kb_, fi, fo):
        lim = 1.0 / (fi ** 0.5)
        w = jax.random.uniform(kw_, (fi, fo), jnp.float32, -lim, lim)
        b = jax.random.uniform(kb_, (fo,), jnp.float32, -lim, lim)
        return w, b

    lim = 1.0 / (PATCH_K ** 0.5)
    conv_w = jax.random.uniform(keys[0], (C_OUT, C_IN, K, K), jnp.float32, -lim, lim)
    conv_b = jax.random.uniform(keys[1], (C_OUT,), jnp.float32, -lim, lim)
    sizes = [ENC_VEC] + list(HIDDEN) + [NUM_ACTIONS]
    hidden = [lin(keys[2], keys[3], sizes[0], sizes[1]),
              lin(keys[4], keys[5], sizes[1], sizes[2])]
    out = lin(keys[6], keys[7], sizes[2], sizes[3])
    return {"conv_w": conv_w, "conv_b": conv_b, "hidden": hidden, "out": out}


def build_fused_params(raw):
    """One-time (outside jit) packing: fold conv+flatten into a dense matmul
    weight with NCHW column order, and zero-pad all layer widths to 128 lanes."""
    hw = HO * WO
    w_flat = raw["conv_w"].reshape(C_OUT, PATCH_K)                 # (8, 36)
    eye_hw = jnp.eye(hw, dtype=jnp.float32)                        # (64, 64)
    # w_conv[i*36 + k, c*64 + j] = w_flat[c, k] * (i == j)  (block-diag, NCHW cols)
    w_conv = jnp.einsum("ck,ij->ikcj", w_flat, eye_hw).reshape(PATCH_ROWS, ENC_VEC)
    b_conv = jnp.repeat(raw["conv_b"], hw)[None, :]                # (1, 512), NCHW order

    def pad_to(a, rows, cols):
        out = jnp.zeros((rows, cols), jnp.float32)
        return out.at[:a.shape[0], :a.shape[1]].set(a)

    (w0, b0), (w1, b1) = raw["hidden"]
    wo, bo = raw["out"]
    w_patch = jnp.eye(PATCH_K, dtype=jnp.float32).reshape(PATCH_K, C_IN, K, K)

    return {
        "w_patch": w_patch,
        "w_conv": w_conv, "b_conv": b_conv,
        "w_h0": pad_to(w0, ENC_VEC, LANE_PAD),  "b_h0": pad_to(b0[None, :], 1, LANE_PAD),
        "w_h1": pad_to(w1, LANE_PAD, LANE_PAD), "b_h1": pad_to(b1[None, :], 1, LANE_PAD),
        "w_out": pad_to(wo, LANE_PAD, LANE_PAD), "b_out": pad_to(bo[None, :], 1, LANE_PAD),
    }


# ---------------------------------------------------------------------------
# Plain-JAX reference (independent path) for a sanity check.
# ---------------------------------------------------------------------------
def reference_forward(x, raw):
    y = lax.conv_general_dilated(
        x, raw["conv_w"], (STRIDE, STRIDE), ((PAD, PAD), (PAD, PAD)),
        dimension_numbers=("NCHW", "OIHW", "NCHW"))
    y = jnp.maximum(y + raw["conv_b"][None, :, None, None], 0.0)
    y = y.reshape(x.shape[0], -1)                      # nn.Flatten (NCHW order)
    for w, b in raw["hidden"]:
        y = jnp.maximum(y @ w + b, 0.0)                # Dropout eval-mode = identity
    w, b = raw["out"]
    return y @ w + b


if __name__ == "__main__":
    key = jax.random.PRNGKey(0)
    k_x, k_p = jax.random.split(key)

    x = jax.random.normal(k_x, (2, C_IN, H, W), dtype=jnp.float32)
    raw = init_raw_params(k_p)
    fp = build_fused_params(raw)            # one-time packing, outside jit

    fwd = jax.jit(mlp_tail_forward)
    y = fwd(x, fp)
    jax.block_until_ready(y)
    assert y.shape == (2, NUM_ACTIONS), y.shape

    # Sanity check vs plain JAX (loose tol: MXU default-precision matmuls).
    y_ref = reference_forward(x, raw)
    err = float(jnp.max(jnp.abs(y - y_ref)))
    assert err < 5e-2, f"mismatch vs reference: {err}"

    print("KERNEL_OK")
</pallas_src>

<mosaic_0001>
module attributes {stable_mosaic.version = 11 : i64} {
  func.func @_fused_mlp_tail_kernel(%arg0: memref<2x2304xf32, #tpu.memory_space<vmem>>, %arg1: memref<2304x512xf32, #tpu.memory_space<vmem>>, %arg2: memref<1x512xf32, #tpu.memory_space<vmem>>, %arg3: memref<512x128xf32, #tpu.memory_space<vmem>>, %arg4: memref<1x128xf32, #tpu.memory_space<vmem>>, %arg5: memref<128x128xf32, #tpu.memory_space<vmem>>, %arg6: memref<1x128xf32, #tpu.memory_space<vmem>>, %arg7: memref<128x128xf32, #tpu.memory_space<vmem>>, %arg8: memref<1x128xf32, #tpu.memory_space<vmem>>, %arg9: memref<2x128xf32, #tpu.memory_space<vmem>>) attributes {dimension_semantics = [], scalar_prefetch = 0 : i64, scratch_operands = 0 : i64, tpu.core_type = #tpu.core_type<tc>} {
    %c0 = arith.constant 0 : index
    %c0_0 = arith.constant 0 : index
    %0 = vector.load %arg0[%c0, %c0_0] : memref<2x2304xf32, #tpu.memory_space<vmem>>, vector<2x2304xf32>
    %c0_1 = arith.constant 0 : index
    %c0_2 = arith.constant 0 : index
    %1 = vector.load %arg1[%c0_1, %c0_2] : memref<2304x512xf32, #tpu.memory_space<vmem>>, vector<2304x512xf32>
    %cst = arith.constant dense<0.000000e+00> : vector<2x512xf32>
    %2 = tpu.matmul %0, %1, %cst {dimension_numbers = #tpu.dot_dimension_numbers<[1], [0], [0], [1], [0, 0, 1, 1], [], []>} : vector<2x2304xf32>, vector<2304x512xf32>, vector<2x512xf32> -> vector<2x512xf32>
    %c0_3 = arith.constant 0 : index
    %c0_4 = arith.constant 0 : index
    %3 = vector.load %arg2[%c0_3, %c0_4] : memref<1x512xf32, #tpu.memory_space<vmem>>, vector<1x512xf32>
    %4 = vector.broadcast %3 : vector<1x512xf32> to vector<2x512xf32>
    %5 = arith.addf %2, %4 : vector<2x512xf32>
    %cst_5 = arith.constant 0.000000e+00 : f32
    %6 = vector.broadcast %cst_5 : f32 to vector<2x512xf32>
    %7 = arith.maximumf %5, %6 : vector<2x512xf32>
    %c0_6 = arith.constant 0 : index
    %c0_7 = arith.constant 0 : index
    %8 = vector.load %arg3[%c0_6, %c0_7] : memref<512x128xf32, #tpu.memory_space<vmem>>, vector<512x128xf32>
    %cst_8 = arith.constant dense<0.000000e+00> : vector<2x128xf32>
    %9 = tpu.matmul %7, %8, %cst_8 {dimension_numbers = #tpu.dot_dimension_numbers<[1], [0], [0], [1], [0, 0, 1, 1], [], []>} : vector<2x512xf32>, vector<512x128xf32>, vector<2x128xf32> -> vector<2x128xf32>
    %c0_9 = arith.constant 0 : index
    %c0_10 = arith.constant 0 : index
    %10 = vector.load %arg4[%c0_9, %c0_10] : memref<1x128xf32, #tpu.memory_space<vmem>>, vector<1x128xf32>
    %11 = vector.broadcast %10 : vector<1x128xf32> to vector<2x128xf32>
    %12 = arith.addf %9, %11 : vector<2x128xf32>
    %cst_11 = arith.constant 0.000000e+00 : f32
    %13 = vector.broadcast %cst_11 : f32 to vector<2x128xf32>
    %14 = arith.maximumf %12, %13 : vector<2x128xf32>
    %c0_12 = arith.constant 0 : index
    %c0_13 = arith.constant 0 : index
    %15 = vector.load %arg5[%c0_12, %c0_13] : memref<128x128xf32, #tpu.memory_space<vmem>>, vector<128x128xf32>
    %cst_14 = arith.constant dense<0.000000e+00> : vector<2x128xf32>
    %16 = tpu.matmul %14, %15, %cst_14 {dimension_numbers = #tpu.dot_dimension_numbers<[1], [0], [0], [1], [0, 0, 1, 1], [], []>} : vector<2x128xf32>, vector<128x128xf32>, vector<2x128xf32> -> vector<2x128xf32>
    %c0_15 = arith.constant 0 : index
    %c0_16 = arith.constant 0 : index
    %17 = vector.load %arg6[%c0_15, %c0_16] : memref<1x128xf32, #tpu.memory_space<vmem>>, vector<1x128xf32>
    %18 = vector.broadcast %17 : vector<1x128xf32> to vector<2x128xf32>
    %19 = arith.addf %16, %18 : vector<2x128xf32>
    %cst_17 = arith.constant 0.000000e+00 : f32
    %20 = vector.broadcast %cst_17 : f32 to vector<2x128xf32>
    %21 = arith.maximumf %19, %20 : vector<2x128xf32>
    %c0_18 = arith.constant 0 : index
    %c0_19 = arith.constant 0 : index
    %22 = vector.load %arg7[%c0_18, %c0_19] : memref<128x128xf32, #tpu.memory_space<vmem>>, vector<128x128xf32>
    %cst_20 = arith.constant dense<0.000000e+00> : vector<2x128xf32>
    %23 = tpu.matmul %21, %22, %cst_20 {dimension_numbers = #tpu.dot_dimension_numbers<[1], [0], [0], [1], [0, 0, 1, 1], [], []>} : vector<2x128xf32>, vector<128x128xf32>, vector<2x128xf32> -> vector<2x128xf32>
    %c0_21 = arith.constant 0 : index
    %c0_22 = arith.constant 0 : index
    %24 = vector.load %arg8[%c0_21, %c0_22] : memref<1x128xf32, #tpu.memory_space<vmem>>, vector<1x128xf32>
    %25 = vector.broadcast %24 : vector<1x128xf32> to vector<2x128xf32>
    %26 = arith.addf %23, %25 : vector<2x128xf32>
    %c0_23 = arith.constant 0 : index
    %c0_24 = arith.constant 0 : index
    %27 = vector.load %arg9[%c0_23, %c0_24] : memref<2x128xf32, #tpu.memory_space<vmem>>, vector<2x128xf32>
    tpu.vector_store %arg9[%c0_23, %c0_24], %26 {strides = array<i32>} : memref<2x128xf32, #tpu.memory_space<vmem>>, vector<2x128xf32>,
    return
  }
}

</mosaic_0001>

<llo_original>
// kernel: mlp_tail_forward.1
$region0: #{mlp_tail_forward.1}
  #allocation0 [shape = 'u32[]', space=smem, size = 0x4, offset = 0x4, fixed_abs, tag = 'smem constant byte address 0x4 - core index']
  #allocation1 [shape = 'u32[144,128]{1,0:T(1,128)}', space=vmem, size = 0x12000, scoped, tag = 'internal scratch']
  %s0 = inlined_call_operand.vmem [shape: f32[2,2304], index: 0, kind: input, shape index: {}]
  %s1 = inlined_call_operand.hbm [shape: f32[2304,512], index: 1, kind: input, shape index: {}]
  %s2 = inlined_call_operand.hbm [shape: f32[1,512], index: 2, kind: input, shape index: {}]
  %s3 = inlined_call_operand.hbm [shape: f32[512,128], index: 3, kind: input, shape index: {}]
  %s4 = inlined_call_operand.hbm [shape: f32[1,128], index: 4, kind: input, shape index: {}]
  %s5 = inlined_call_operand.hbm [shape: f32[128,128], index: 5, kind: input, shape index: {}]
  %s6 = inlined_call_operand.hbm [shape: f32[1,128], index: 6, kind: input, shape index: {}]
  %s7 = inlined_call_operand.hbm [shape: f32[128,128], index: 7, kind: input, shape index: {}]
  %s8 = inlined_call_operand.hbm [shape: f32[1,128], index: 8, kind: input, shape index: {}]
  %s9 = inlined_call_operand.hbm [shape: f32[2,128], index: 9, kind: output, shape index: {}]
  %s10 = sld [smem:[#allocation0]]
  $region78: #{mlp_tail_forward.1} parent=0
    _
  %s12 = ssub.s32 1, %s10
  %s13 = scalar_select 0, %s12, %s10
  $region1: #{mlp_tail_forward.1} parent=0
    #allocation2 [shape = 'u8[4718592]{0}', space=vmem, size = 0x480000, scoped, tag = 'input window, operand 1, single buffered']
    #allocation3 [shape = 's32[1]{0}', space=sflag, size = 0x4, scoped, tag = 'scoped memory for mlp_tail_forward.1']
    #allocation4 [shape = 's32[1]{0}', space=sflag, size = 0x4, scoped, tag = 'scoped memory for mlp_tail_forward.1']
    #allocation5 [shape = 'u8[2048]{0}', space=vmem, size = 0x800, scoped, tag = 'input window, operand 2, single buffered']
    #allocation6 [shape = 's32[1]{0}', space=sflag, size = 0x4, scoped, tag = 'scoped memory for mlp_tail_forward.1']
    #allocation7 [shape = 'u8[262144]{0}', space=vmem, size = 0x40000, scoped, tag = 'input window, operand 3, single buffered']
    #allocation8 [shape = 'u8[512]{0}', space=vmem, size = 0x400, scoped, tag = 'input window, operand 4, single buffered']
    #allocation9 [shape = 's32[1]{0}', space=sflag, size = 0x4, scoped, tag = 'scoped memory for mlp_tail_forward.1']
    #allocation10 [shape = 'u8[65536]{0}', space=vmem, size = 0x10000, scoped, tag = 'input window, operand 5, single buffered']
    #allocation11 [shape = 'u8[512]{0}', space=vmem, size = 0x400, scoped, tag = 'input window, operand 6, single buffered']
    #allocation12 [shape = 's32[1]{0}', space=sflag, size = 0x4, scoped, tag = 'scoped memory for mlp_tail_forward.1']
    #allocation13 [shape = 'u8[65536]{0}', space=vmem, size = 0x10000, scoped, tag = 'input window, operand 7, single buffered']
    #allocation14 [shape = 'u8[512]{0}', space=vmem, size = 0x400, scoped, tag = 'input window, operand 8, single buffered']
    #allocation15 [shape = 's32[1]{0}', space=sflag, size = 0x4, scoped, tag = 'scoped memory for mlp_tail_forward.1']
    #allocation16 [shape = 'u8[1024]{0}', space=vmem, size = 0x400, scoped, tag = 'output window, operand 0, single buffered']
    %14 = vsyncpa [#allocation3], 0
    %15 = vsyncpa [#allocation6], 0
    %16 = vsyncpa [#allocation9], 0
    %17 = vsyncpa [#allocation12], 0
    %18 = vsyncpa [#allocation15], 0
    %19 = vsyncpa [#allocation4], 0
    // Predicated region
    $region2: #{mlp_tail_forward.1} parent=1 // pred_check
      _
    $region3: #{mlp_tail_forward.1} parent=1 // pred_check_branch
      %21 = sbr.rel (0) target = $region5
    $region4: #{mlp_tail_forward.1} parent=1 // pred_region
      _
    $region5: #{mlp_tail_forward.1} parent=1 // pred_fallthru
      _
    // Predicated region
    $region6: #{mlp_tail_forward.1} parent=1 // pred_check
      _
    $region7: #{mlp_tail_forward.1} parent=1 // pred_check_branch
      %23 = sbr.rel (0) target = $region9
    $region8: #{mlp_tail_forward.1} parent=1 // pred_region
      %s25 = ssub.s32 147456, 147456
      %26 = vsyncadd [#allocation3], %s25
      %s27 = sshll.u32 [#allocation2], 4
      %s28 = int_to_ptr.vmem [resolvable:$true] %s27
      %33 = dma.hbm_to_vmem [thread:$0]  %s1, 147456, %s28, [#allocation3], 512, 512, 32
    $region9: #{mlp_tail_forward.1} parent=1 // pred_fallthru
      _
    // Predicated region
    $region10: #{mlp_tail_forward.1} parent=1 // pred_check
      _
    $region11: #{mlp_tail_forward.1} parent=1 // pred_check_branch
      %35 = sbr.rel (0) target = $region13
    $region12: #{mlp_tail_forward.1} parent=1 // pred_region
      %s37 = ssub.s32 64, 64
      %38 = vsyncadd [#allocation6], %s37
      %s40 = sshll.u32 [#allocation5], 4
      %s41 = int_to_ptr.vmem [resolvable:$true] %s40
      %43 = dma.hbm_to_vmem [thread:$0]  %s2, 64, %s41, [#allocation6]
    $region13: #{mlp_tail_forward.1} parent=1 // pred_fallthru
      _
    // Predicated region
    $region14: #{mlp_tail_forward.1} parent=1 // pred_check
      _
    $region15: #{mlp_tail_forward.1} parent=1 // pred_check_branch
      %45 = sbr.rel (0) target = $region17
    $region16: #{mlp_tail_forward.1} parent=1 // pred_region
      %s47 = ssub.s32 8192, 8192
      %48 = vsyncadd [#allocation6], %s47
      %s49 = sshll.u32 [#allocation7], 4
      %s50 = int_to_ptr.vmem [resolvable:$true] %s49
      %55 = dma.hbm_to_vmem [thread:$0]  %s3, 8192, %s50, [#allocation6], 128, 128, 8
    $region17: #{mlp_tail_forward.1} parent=1 // pred_fallthru
      _
    // Predicated region
    $region18: #{mlp_tail_forward.1} parent=1 // pred_check
      _
    $region19: #{mlp_tail_forward.1} parent=1 // pred_check_branch
      %57 = sbr.rel (0) target = $region21
    $region20: #{mlp_tail_forward.1} parent=1 // pred_region
      %s59 = ssub.s32 16, 16
      %60 = vsyncadd [#allocation9], %s59
      %s62 = sshll.u32 [#allocation8], 4
      %s63 = int_to_ptr.vmem [resolvable:$true] %s62
      %65 = dma.hbm_to_vmem [thread:$0]  %s4, 16, %s63, [#allocation9]
    $region21: #{mlp_tail_forward.1} parent=1 // pred_fallthru
      _
    // Predicated region
    $region22: #{mlp_tail_forward.1} parent=1 // pred_check
      _
    $region23: #{mlp_tail_forward.1} parent=1 // pred_check_branch
      %67 = sbr.rel (0) target = $region25
    $region24: #{mlp_tail_forward.1} parent=1 // pred_region
      %s69 = ssub.s32 2048, 2048
      %70 = vsyncadd [#allocation9], %s69
      %s71 = sshll.u32 [#allocation10], 4
      %s72 = int_to_ptr.vmem [resolvable:$true] %s71
      %77 = dma.hbm_to_vmem [thread:$0]  %s5, 2048, %s72, [#allocation9], 128, 128, 8
    $region25: #{mlp_tail_forward.1} parent=1 // pred_fallthru
      _
    // Predicated region
    $region26: #{mlp_tail_forward.1} parent=1 // pred_check
      _
    $region27: #{mlp_tail_forward.1} parent=1 // pred_check_branch
      %79 = sbr.rel (0) target = $region29
    $region28: #{mlp_tail_forward.1} parent=1 // pred_region
      %s81 = ssub.s32 16, 16
      %82 = vsyncadd [#allocation12], %s81
      %s84 = sshll.u32 [#allocation11], 4
      %s85 = int_to_ptr.vmem [resolvable:$true] %s84
      %87 = dma.hbm_to_vmem [thread:$0]  %s6, 16, %s85, [#allocation12]
    $region29: #{mlp_tail_forward.1} parent=1 // pred_fallthru
      _
    // Predicated region
    $region30: #{mlp_tail_forward.1} parent=1 // pred_check
      _
    $region31: #{mlp_tail_forward.1} parent=1 // pred_check_branch
      %89 = sbr.rel (0) target = $region33
    $region32: #{mlp_tail_forward.1} parent=1 // pred_region
      %s91 = ssub.s32 2048, 2048
      %92 = vsyncadd [#allocation12], %s91
      %s93 = sshll.u32 [#allocation13], 4
      %s94 = int_to_ptr.vmem [resolvable:$true] %s93
      %99 = dma.hbm_to_vmem [thread:$0]  %s7, 2048, %s94, [#allocation12], 128, 128, 8
    $region33: #{mlp_tail_forward.1} parent=1 // pred_fallthru
      _
    // Predicated region
    $region34: #{mlp_tail_forward.1} parent=1 // pred_check
      _
    $region35: #{mlp_tail_forward.1} parent=1 // pred_check_branch
      %101 = sbr.rel (0) target = $region37
    $region36: #{mlp_tail_forward.1} parent=1 // pred_region
      %s103 = ssub.s32 16, 16
      %104 = vsyncadd [#allocation15], %s103
      %s106 = sshll.u32 [#allocation14], 4
      %s107 = int_to_ptr.vmem [resolvable:$true] %s106
      %109 = dma.hbm_to_vmem [thread:$0]  %s8, 16, %s107, [#allocation15]
    $region37: #{mlp_tail_forward.1} parent=1 // pred_fallthru
      _
    // Predicated region
    $region38: #{mlp_tail_forward.1} parent=1 // pred_check
      _
    $region39: #{mlp_tail_forward.1} parent=1 // pred_check_branch
      %111 = sbr.rel (0) target = $region41
    $region40: #{mlp_tail_forward.1} parent=1 // pred_region
      %112 = dma.done [#allocation3], 147456
    $region41: #{mlp_tail_forward.1} parent=1 // pred_fallthru
      _
    // Predicated region
    $region42: #{mlp_tail_forward.1} parent=1 // pred_check
      _
    $region43: #{mlp_tail_forward.1} parent=1 // pred_check_branch
      %114 = sbr.rel (0) target = $region45
    $region44: #{mlp_tail_forward.1} parent=1 // pred_region
      %115 = dma.done [#allocation6], 64
    $region45: #{mlp_tail_forward.1} parent=1 // pred_fallthru
      _
    // Predicated region
    $region46: #{mlp_tail_forward.1} parent=1 // pred_check
      _
    $region47: #{mlp_tail_forward.1} parent=1 // pred_check_branch
      %117 = sbr.rel (0) target = $region49
    $region48: #{mlp_tail_forward.1} parent=1 // pred_region
      %118 = dma.done [#allocation6], 8192
    $region49: #{mlp_tail_forward.1} parent=1 // pred_fallthru
      _
    // Predicated region
    $region50: #{mlp_tail_forward.1} parent=1 // pred_check
      _
    $region51: #{mlp_tail_forward.1} parent=1 // pred_check_branch
      %120 = sbr.rel (0) target = $region53
    $region52: #{mlp_tail_forward.1} parent=1 // pred_region
      %121 = dma.done [#allocation9], 16
    $region53: #{mlp_tail_forward.1} parent=1 // pred_fallthru
      _
    // Predicated region
    $region54: #{mlp_tail_forward.1} parent=1 // pred_check
      _
    $region55: #{mlp_tail_forward.1} parent=1 // pred_check_branch
      %123 = sbr.rel (0) target = $region57
    $region56: #{mlp_tail_forward.1} parent=1 // pred_region
      %124 = dma.done [#allocation9], 2048
    $region57: #{mlp_tail_forward.1} parent=1 // pred_fallthru
      _
    // Predicated region
    $region58: #{mlp_tail_forward.1} parent=1 // pred_check
      _
    $region59: #{mlp_tail_forward.1} parent=1 // pred_check_branch
      %126 = sbr.rel (0) target = $region61
    $region60: #{mlp_tail_forward.1} parent=1 // pred_region
      %127 = dma.done [#allocation12], 16
    $region61: #{mlp_tail_forward.1} parent=1 // pred_fallthru
      _
    // Predicated region
    $region62: #{mlp_tail_forward.1} parent=1 // pred_check
      _
    $region63: #{mlp_tail_forward.1} parent=1 // pred_check_branch
      %129 = sbr.rel (0) target = $region65
    $region64: #{mlp_tail_forward.1} parent=1 // pred_region
      %130 = dma.done [#allocation12], 2048
    $region65: #{mlp_tail_forward.1} parent=1 // pred_fallthru
      _
    // Predicated region
    $region66: #{mlp_tail_forward.1} parent=1 // pred_check
      _
    $region67: #{mlp_tail_forward.1} parent=1 // pred_check_branch
      %132 = sbr.rel (0) target = $region69
    $region68: #{mlp_tail_forward.1} parent=1 // pred_region
      %133 = dma.done [#allocation15], 16
    $region69: #{mlp_tail_forward.1} parent=1 // pred_fallthru
      _
    %v134 = vld [vmem:[%s0] sm:$0xff]
    %v135 = vld [vmem:[%s0 + $0x8] sm:$0xff]
    %v136 = vld [vmem:[%s0 + $0x10] sm:$0xff]
    %v137 = vld [vmem:[%s0 + $0x18] sm:$0xff]
    %v138 = vld [vmem:[%s0 + $0x20] sm:$0xf]
    %v139 = vld [vmem:[#allocation2] sm:$0xff]
    %v140 = vld [vmem:[#allocation2 + $0x8] sm:$0xff]
    %v141 = vld [vmem:[#allocation2 + $0x10] sm:$0xff]
    %v142 = vld [vmem:[#allocation2 + $0x18] sm:$0xff]
    %v143 = vld [vmem:[#allocation2 + $0x20] sm:$0xff]
    %v144 = vld [vmem:[#allocation2 + $0x28] sm:$0xff]
    %v145 = vld [vmem:[#allocation2 + $0x30] sm:$0xff]
    %v146 = vld [vmem:[#allocation2 + $0x38] sm:$0xff]
    %v147 = vld [vmem:[#allocation2 + $0x40] sm:$0xff]
    %v148 = vld [vmem:[#allocation2 + $0x48] sm:$0xff]
    %v149 = vld [vmem:[#allocation2 + $0x50] sm:$0xff]
    %v150 = vld [vmem:[#allocation2 + $0x58] sm:$0xff]
    %v151 = vld [vmem:[#allocation2 + $0x60] sm:$0xff]
    %v152 = vld [vmem:[#allocation2 + $0x68] sm:$0xff]
    %v153 = vld [vmem:[#allocation2 + $0x70] sm:$0xff]
    %v154 = vld [vmem:[#allocation2 + $0x78] sm:$0xff]
    %v155 = vld [vmem:[#allocation2 + $0x80] sm:$0xff]
    %v156 = vld [vmem:[#allocation2 + $0x88] sm:$0xff]
    %v157 = vld [vmem:[#allocation2 + $0x90] sm:$0xff]
    %v158 = vld [vmem:[#allocation2 + $0x98] sm:$0xff]
    %v159 = vld [vmem:[#allocation2 + $0xa0] sm:$0xff]
    %v160 = vld [vmem:[#allocation2 + $0xa8] sm:$0xff]
    %v161 = vld [vmem:[#allocation2 + $0xb0] sm:$0xff]
    %v162 = vld [vmem:[#allocation2 + $0xb8] sm:$0xff]
    %v163 = vld [vmem:[#allocation2 + $0xc0] sm:$0xff]
    %v164 = vld [vmem:[#allocation2 + $0xc8] sm:$0xff]
    %v165 = vld [vmem:[#allocation2 + $0xd0] sm:$0xff]
    %v166 = vld [vmem:[#allocation2 + $0xd8] sm:$0xff]
    %v167 = vld [vmem:[#allocation2 + $0xe0] sm:$0xff]
    %v168 = vld [vmem:[#allocation2 + $0xe8] sm:$0xff]
    %v169 = vld [vmem:[#allocation2 + $0xf0] sm:$0xff]
    %v170 = vld [vmem:[#allocation2 + $0xf8] sm:$0xff]
    %v171 = vld [vmem:[#allocation2 + $0x100] sm:$0xff]
    %v172 = vld [vmem:[#allocation2 + $0x108] sm:$0xff]
    %v173 = vld [vmem:[#allocation2 + $0x110] sm:$0xff]
    %v174 = vld [vmem:[#allocation2 + $0x118] sm:$0xff]
    %v175 = vld [vmem:[#allocation2 + $0x120] sm:$0xff]
    %v176 = vld [vmem:[#allocation2 + $0x128] sm:$0xff]
    %v177 = vld [vmem:[#allocation2 + $0x130] sm:$0xff]
    %v178 = vld [vmem:[#allocation2 + $0x138] sm:$0xff]
    %v179 = vld [vmem:[#allocation2 + $0x140] sm:$0xff]
    %v180 = vld [vmem:[#allocation2 + $0x148] sm:$0xff]
    %v181 = vld [vmem:[#allocation2 + $0x150] sm:$0xff]
    %v182 = vld [vmem:[#allocation2 + $0x158] sm:$0xff]
    %v183 = vld [vmem:[#allocation2 + $0x160] sm:$0xff]
    %v184 = vld [vmem:[#allocation2 + $0x168] sm:$0xff]
    %v185 = vld [vmem:[#allocation2 + $0x170] sm:$0xff]
    %v186 = vld [vmem:[#allocation2 + $0x178] sm:$0xff]
    %v187 = vld [vmem:[#allocation2 + $0x180] sm:$0xff]
    %v188 = vld [vmem:[#allocation2 + $0x188] sm:$0xff]
    %v189 = vld [vmem:[#allocation2 + $0x190] sm:$0xff]
    %v190 = vld [vmem:[#allocation2 + $0x198] sm:$0xff]
    %v191 = vld [vmem:[#allocation2 + $0x1a0] sm:$0xff]
    %v192 = vld [vmem:[#allocation2 + $0x1a8] sm:$0xff]
    %v193 = vld [vmem:[#allocation2 + $0x1b0] sm:$0xff]
    %v194 = vld [vmem:[#allocation2 + $0x1b8] sm:$0xff]
    %v195 = vld [vmem:[#allocation2 + $0x1c0] sm:$0xff]
    %v196 = vld [vmem:[#allocation2 + $0x1c8] sm:$0xff]
    %v197 = vld [vmem:[#allocation2 + $0x1d0] sm:$0xff]
    %v198 = vld [vmem:[#allocation2 + $0x1d8] sm:$0xff]
    %v199 = vld [vmem:[#allocation2 + $0x1e0] sm:$0xff]
    %v200 = vld [vmem:[#allocation2 + $0x1e8] sm:$0xff]
    %v201 = vld [vmem:[#allocation2 + $0x1f0] sm:$0xff]
    %v202 = vld [vmem:[#allocation2 + $0x1f8] sm:$0xff]
    %v203 = vld [vmem:[#allocation2 + $0x200] sm:$0xff]
    %v204 = vld [vmem:[#allocation2 + $0x208] sm:$0xff]
    %v205 = vld [vmem:[#allocation2 + $0x210] sm:$0xff]
    %v206 = vld [vmem:[#allocation2 + $0x218] sm:$0xff]
    %v207 = vld [vmem:[#allocation2 + $0x220] sm:$0xff]
    %v208 = vld [vmem:[#allocation2 + $0x228] sm:$0xff]
    %v209 = vld [vmem:[#allocation2 + $0x230] sm:$0xff]
    %v210 = vld [vmem:[#allocation2 + $0x238] sm:$0xff]
    %v211 = vld [vmem:[#allocation2 + $0x240] sm:$0xff]
    %v212 = vld [vmem:[#allocation2 + $0x248] sm:$0xff]
    %v213 = vld [vmem:[#allocation2 + $0x250] sm:$0xff]
    %v214 = vld [vmem:[#allocation2 + $0x258] sm:$0xff]
    %v215 = vld [vmem:[#allocation2 + $0x260] sm:$0xff]
    %v216 = vld [vmem:[#allocation2 + $0x268] sm:$0xff]
    %v217 = vld [vmem:[#allocation2 + $0x270] sm:$0xff]
    %v218 = vld [vmem:[#allocation2 + $0x278] sm:$0xff]
    %v219 = vld [vmem:[#allocation2 + $0x280] sm:$0xff]
    %v220 = vld [vmem:[#allocation2 + $0x288] sm:$0xff]
    %v221 = vld [vmem:[#allocation2 + $0x290] sm:$0xff]
    %v222 = vld [vmem:[#allocation2 + $0x298] sm:$0xff]
    %v223 = vld [vmem:[#allocation2 + $0x2a0] sm:$0xff]
    %v224 = vld [vmem:[#allocation2 + $0x2a8] sm:$0xff]
    %v225 = vld [vmem:[#allocation2 + $0x2b0] sm:$0xff]
    %v226 = vld [vmem:[#allocation2 + $0x2b8] sm:$0xff]
    %v227 = vld [vmem:[#allocation2 + $0x2c0] sm:$0xff]
    %v228 = vld [vmem:[#allocation2 + $0x2c8] sm:$0xff]
    %v229 = vld [vmem:[#allocation2 + $0x2d0] sm:$0xff]
    %v230 = vld [vmem:[#allocation2 + $0x2d8] sm:$0xff]
    %v231 = vld [vmem:[#allocation2 + $0x2e0] sm:$0xff]
    %v232 = vld [vmem:[#allocation2 + $0x2e8] sm:$0xff]
    %v233 = vld [vmem:[#allocation2 + $0x2f0] sm:$0xff]
    %v234 = vld [vmem:[#allocation2 + $0x2f8] sm:$0xff]
    %v235 = vld [vmem:[#allocation2 + $0x300] sm:$0xff]
    %v236 = vld [vmem:[#allocation2 + $0x308] sm:$0xff]
    %v237 = vld [vmem:[#allocation2 + $0x310] sm:$0xff]
    %v238 = vld [vmem:[#allocation2 + $0x318] sm:$0xff]
    %v239 = vld [vmem:[#allocation2 + $0x320] sm:$0xff]
    %v240 = vld [vmem:[#allocation2 + $0x328] sm:$0xff]
    %v241 = vld [vmem:[#allocation2 + $0x330] sm:$0xff]
    %v242 = vld [vmem:[#allocation2 + $0x338] sm:$0xff]
    %v243 = vld [vmem:[#allocation2 + $0x340] sm:$0xff]
    %v244 = vld [vmem:[#allocation2 + $0x348] sm:$0xff]
    %v245 = vld [vmem:[#allocation2 + $0x350] sm:$0xff]
    %v246 = vld [vmem:[#allocation2 + $0x358] sm:$0xff]
    %v247 = vld [vmem:[#allocation2 + $0x360] sm:$0xff]
    %v248 = vld [vmem:[#allocation2 + $0x368] sm:$0xff]
    %v249 = vld [vmem:[#allocation2 + $0x370] sm:$0xff]
    %v250 = vld [vmem:[#allocation2 + $0x378] sm:$0xff]
    %v251 = vld [vmem:[#allocation2 + $0x380] sm:$0xff]
    %v252 = vld [vmem:[#allocation2 + $0x388] sm:$0xff]
    %v253 = vld [vmem:[#allocation2 + $0x390] sm:$0xff]
    %v254 = vld [vmem:[#allocation2 + $0x398] sm:$0xff]
    %v255 = vld [vmem:[#allocation2 + $0x3a0] sm:$0xff]
    %v256 = vld [vmem:[#allocation2 + $0x3a8] sm:$0xff]
    %v257 = vld [vmem:[#allocation2 + $0x3b0] sm:$0xff]
    %v258 = vld [vmem:[#allocation2 + $0x3b8] sm:$0xff]
    %v259 = vld [vmem:[#allocation2 + $0x3c0] sm:$0xff]
    %v260 = vld [vmem:[#allocation2 + $0x3c8] sm:$0xff]
    %v261 = vld [vmem:[#allocation2 + $0x3d0] sm:$0xff]
    %v262 = vld [vmem:[#allocation2 + $0x3d8] sm:$0xff]
    %v263 = vld [vmem:[#allocation2 + $0x3e0] sm:$0xff]
    %v264 = vld [vmem:[#allocation2 + $0x3e8] sm:$0xff]
    %v265 = vld [vmem:[#allocation2 + $0x3f0] sm:$0xff]
    %v266 = vld [vmem:[#allocation2 + $0x3f8] sm:$0xff]
    %v267 = vld [vmem:[#allocation2 + $0x400] sm:$0xff]
    %v268 = vld [vmem:[#allocation2 + $0x408] sm:$0xff]
    %v269 = vld [vmem:[#allocation2 + $0x410] sm:$0xff]
    %v270 = vld [vmem:[#allocation2 + $0x418] sm:$0xff]
    %v271 = vld [vmem:[#allocation2 + $0x420] sm:$0xff]
    %v272 = vld [vmem:[#allocation2 + $0x428] sm:$0xff]
    %v273 = vld [vmem:[#allocation2 + $0x430] sm:$0xff]
    %v274 = vld [vmem:[#allocation2 + $0x438] sm:$0xff]
    %v275 = vld [vmem:[#allocation2 + $0x440] sm:$0xff]
    %v276 = vld [vmem:[#allocation2 + $0x448] sm:$0xff]
    %v277 = vld [vmem:[#allocation2 + $0x450] sm:$0xff]
    %v278 = vld [vmem:[#allocation2 + $0x458] sm:$0xff]
    %v279 = vld [vmem:[#allocation2 + $0x460] sm:$0xff]
    %v280 = vld [vmem:[#allocation2 + $0x468] sm:$0xff]
    %v281 = vld [vmem:[#allocation2 + $0x470] sm:$0xff]
    %v282 = vld [vmem:[#allocation2 + $0x478] sm:$0xff]
    %v283 = vld [vmem:[#allocation2 + $0x480] sm:$0xff]
    %v284 = vld [vmem:[#allocation2 + $0x488] sm:$0xff]
    %v285 = vld [vmem:[#allocation2 + $0x490] sm:$0xff]
    %v286 = vld [vmem:[#allocation2 + $0x498] sm:$0xff]
    %v287 = vld [vmem:[#allocation2 + $0x4a0] sm:$0xff]
    %v288 = vld [vmem:[#allocation2 + $0x4a8] sm:$0xff]
    %v289 = vld [vmem:[#allocation2 + $0x4b0] sm:$0xff]
    %v290 = vld [vmem:[#allocation2 + $0x4b8] sm:$0xff]
    %v291 = vld [vmem:[#allocation2 + $0x4c0] sm:$0xff]
    %v292 = vld [vmem:[#allocation2 + $0x4c8] sm:$0xff]
    %v293 = vld [vmem:[#allocation2 + $0x4d0] sm:$0xff]
    %v294 = vld [vmem:[#allocation2 + $0x4d8] sm:$0xff]
    %v295 = vld [vmem:[#allocation2 + $0x4e0] sm:$0xff]
    %v296 = vld [vmem:[#allocation2 + $0x4e8] sm:$0xff]
    %v297 = vld [vmem:[#allocation2 + $0x4f0] sm:$0xff]
    %v298 = vld [vmem:[#allocation2 + $0x4f8] sm:$0xff]
    %v299 = vld [vmem:[#allocation2 + $0x500] sm:$0xff]
    %v300 = vld [vmem:[#allocation2 + $0x508] sm:$0xff]
    %v301 = vld [vmem:[#allocation2 + $0x510] sm:$0xff]
    %v302 = vld [vmem:[#allocation2 + $0x518] sm:$0xff]
    %v303 = vld [vmem:[#allocation2 + $0x520] sm:$0xff]
    %v304 = vld [vmem:[#allocation2 + $0x528] sm:$0xff]
    %v305 = vld [vmem:[#allocation2 + $0x530] sm:$0xff]
    %v306 = vld [vmem:[#allocation2 + $0x538] sm:$0xff]
    %v307 = vld [vmem:[#allocation2 + $0x540] sm:$0xff]
    %v308 = vld [vmem:[#allocation2 + $0x548] sm:$0xff]
    %v309 = vld [vmem:[#allocation2 + $0x550] sm:$0xff]
    %v310 = vld [vmem:[#allocation2 + $0x558] sm:$0xff]
    %v311 = vld [vmem:[#allocation2 + $0x560] sm:$0xff]
    %v312 = vld [vmem:[#allocation2 + $0x568] sm:$0xff]
    %v313 = vld [vmem:[#allocation2 + $0x570] sm:$0xff]
    %v314 = vld [vmem:[#allocation2 + $0x578] sm:$0xff]
    %v315 = vld [vmem:[#allocation2 + $0x580] sm:$0xff]
    %v316 = vld [vmem:[#allocation2 + $0x588] sm:$0xff]
    %v317 = vld [vmem:[#allocation2 + $0x590] sm:$0xff]
    %v318 = vld [vmem:[#allocation2 + $0x598] sm:$0xff]
    %v319 = vld [vmem:[#allocation2 + $0x5a0] sm:$0xff]
    %v320 = vld [vmem:[#allocation2 + $0x5a8] sm:$0xff]
    %v321 = vld [vmem:[#allocation2 + $0x5b0] sm:$0xff]
    %v322 = vld [vmem:[#allocation2 + $0x5b8] sm:$0xff]
    %v323 = vld [vmem:[#allocation2 + $0x5c0] sm:$0xff]
    %v324 = vld [vmem:[#allocation2 + $0x5c8] sm:$0xff]
    %v325 = vld [vmem:[#allocation2 + $0x5d0] sm:$0xff]
    %v326 = vld [vmem:[#allocation2 + $0x5d8] sm:$0xff]
    %v327 = vld [vmem:[#allocation2 + $0x5e0] sm:$0xff]
    %v328 = vld [vmem:[#allocation2 + $0x5e8] sm:$0xff]
    %v329 = vld [vmem:[#allocation2 + $0x5f0] sm:$0xff]
    %v330 = vld [vmem:[#allocation2 + $0x5f8] sm:$0xff]
    %v331 = vld [vmem:[#allocation2 + $0x600] sm:$0xff]
    %v332 = vld [vmem:[#allocation2 + $0x608] sm:$0xff]
    %v333 = vld [vmem:[#allocation2 + $0x610] sm:$0xff]
    %v334 = vld [vmem:[#allocation2 + $0x618] sm:$0xff]
    %v335 = vld [vmem:[#allocation2 + $0x620] sm:$0xff]
    %v336 = vld [vmem:[#allocation2 + $0x628] sm:$0xff]
    %v337 = vld [vmem:[#allocation2 + $0x630] sm:$0xff]
    %v338 = vld [vmem:[#allocation2 + $0x638] sm:$0xff]
    %v339 = vld [vmem:[#allocation2 + $0x640] sm:$0xff]
    %v340 = vld [vmem:[#allocation2 + $0x648] sm:$0xff]
    %v341 = vld [vmem:[#allocation2 + $0x650] sm:$0xff]
    %v342 = vld [vmem:[#allocation2 + $0x658] sm:$0xff]
    %v343 = vld [vmem:[#allocation2 + $0x660] sm:$0xff]
    %v344 = vld [vmem:[#allocation2 + $0x668] sm:$0xff]
    %v345 = vld [vmem:[#allocation2 + $0x670] sm:$0xff]
    %v346 = vld [vmem:[#allocation2 + $0x678] sm:$0xff]
    %v347 = vld [vmem:[#allocation2 + $0x680] sm:$0xff]
    %v348 = vld [vmem:[#allocation2 + $0x688] sm:$0xff]
    %v349 = vld [vmem:[#allocation2 + $0x690] sm:$0xff]
    %v350 = vld [vmem:[#allocation2 + $0x698] sm:$0xff]
    %v351 = vld [vmem:[#allocation2 + $0x6a0] sm:$0xff]
    %v352 = vld [vmem:[#allocation2 + $0x6a8] sm:$0xff]
    %v353 = vld [vmem:[#allocation2 + $0x6b0] sm:$0xff]
    %v354 = vld [vmem:[#allocation2 + $0x6b8] sm:$0xff]
    %v355 = vld [vmem:[#allocation2 + $0x6c0] sm:$0xff]
    %v356 = vld [vmem:[#allocation2 + $0x6c8] sm:$0xff]
    %v357 = vld [vmem:[#allocation2 + $0x6d0] sm:$0xff]
    %v358 = vld [vmem:[#allocation2 + $0x6d8] sm:$0xff]
    %v359 = vld [vmem:[#allocation2 + $0x6e0] sm:$0xff]
    %v360 = vld [vmem:[#allocation2 + $0x6e8] sm:$0xff]
    %v361 = vld [vmem:[#allocation2 + $0x6f0] sm:$0xff]
    %v362 = vld [vmem:[#allocation2 + $0x6f8] sm:$0xff]
    %v363 = vld [vmem:[#allocation2 + $0x700] sm:$0xff]
    %v364 = vld [vmem:[#allocation2 + $0x708] sm:$0xff]
    %v365 = vld [vmem:[#allocation2 + $0x710] sm:$0xff]
    %v366 = vld [vmem:[#allocation2 + $0x718] sm:$0xff]
    %v367 = vld [vmem:[#allocation2 + $0x720] sm:$0xff]
    %v368 = vld [vmem:[#allocation2 + $0x728] sm:$0xff]
    %v369 = vld [vmem:[#allocation2 + $0x730] sm:$0xff]
    %v370 = vld [vmem:[#allocation2 + $0x738] sm:$0xff]
    %v371 = vld [vmem:[#allocation2 + $0x740] sm:$0xff]
    %v372 = vld [vmem:[#allocation2 + $0x748] sm:$0xff]
    %v373 = vld [vmem:[#allocation2 + $0x750] sm:$0xff]
    %v374 = vld [vmem:[#allocation2 + $0x758] sm:$0xff]
    %v375 = vld [vmem:[#allocation2 + $0x760] sm:$0xff]
    %v376 = vld [vmem:[#allocation2 + $0x768] sm:$0xff]
    %v377 = vld [vmem:[#allocation2 + $0x770] sm:$0xff]
    %v378 = vld [vmem:[#allocation2 + $0x778] sm:$0xff]
    %v379 = vld [vmem:[#allocation2 + $0x780] sm:$0xff]
    %v380 = vld [vmem:[#allocation2 + $0x788] sm:$0xff]
    %v381 = vld [vmem:[#allocation2 + $0x790] sm:$0xff]
    %v382 = vld [vmem:[#allocation2 + $0x798] sm:$0xff]
    %v383 = vld [vmem:[#allocation2 + $0x7a0] sm:$0xff]
    %v384 = vld [vmem:[#allocation2 + $0x7a8] sm:$0xff]
    %v385 = vld [vmem:[#allocation2 + $0x7b0] sm:$0xff]
    %v386 = vld [vmem:[#allocation2 + $0x7b8] sm:$0xff]
    %v387 = vld [vmem:[#allocation2 + $0x7c0] sm:$0xff]
    %v388 = vld [vmem:[#allocation2 + $0x7c8] sm:$0xff]
    %v389 = vld [vmem:[#allocation2 + $0x7d0] sm:$0xff]
    %v390 = vld [vmem:[#allocation2 + $0x7d8] sm:$0xff]
    %v391 = vld [vmem:[#allocation2 + $0x7e0] sm:$0xff]
    %v392 = vld [vmem:[#allocation2 + $0x7e8] sm:$0xff]
    %v393 = vld [vmem:[#allocation2 + $0x7f0] sm:$0xff]
    %v394 = vld [vmem:[#allocation2 + $0x7f8] sm:$0xff]
    %v395 = vld [vmem:[#allocation2 + $0x800] sm:$0xff]
    %v396 = vld [vmem:[#allocation2 + $0x808] sm:$0xff]
    %v397 = vld [vmem:[#allocation2 + $0x810] sm:$0xff]
    %v398 = vld [vmem:[#allocation2 + $0x818] sm:$0xff]
    %v399 = vld [vmem:[#allocation2 + $0x820] sm:$0xff]
    %v400 = vld [vmem:[#allocation2 + $0x828] sm:$0xff]
    %v401 = vld [vmem:[#allocation2 + $0x830] sm:$0xff]
    %v402 = vld [vmem:[#allocation2 + $0x838] sm:$0xff]
    %v403 = vld [vmem:[#allocation2 + $0x840] sm:$0xff]
    %v404 = vld [vmem:[#allocation2 + $0x848] sm:$0xff]
    %v405 = vld [vmem:[#allocation2 + $0x850] sm:$0xff]
    %v406 = vld [vmem:[#allocation2 + $0x858] sm:$0xff]
    %v407 = vld [vmem:[#allocation2 + $0x860] sm:$0xff]
    %v408 = vld [vmem:[#allocation2 + $0x868] sm:$0xff]
    %v409 = vld [vmem:[#allocation2 + $0x870] sm:$0xff]
    %v410 = vld [vmem:[#allocation2 + $0x878] sm:$0xff]
    %v411 = vld [vmem:[#allocation2 + $0x880] sm:$0xff]
    %v412 = vld [vmem:[#allocation2 + $0x888] sm:$0xff]
    %v413 = vld [vmem:[#allocation2 + $0x890] sm:$0xff]
    %v414 = vld [vmem:[#allocation2 + $0x898] sm:$0xff]
    %v415 = vld [vmem:[#allocation2 + $0x8a0] sm:$0xff]
    %v416 = vld [vmem:[#allocation2 + $0x8a8] sm:$0xff]
    %v417 = vld [vmem:[#allocation2 + $0x8b0] sm:$0xff]
    %v418 = vld [vmem:[#allocation2 + $0x8b8] sm:$0xff]
    %v419 = vld [vmem:[#allocation2 + $0x8c0] sm:$0xff]
    %v420 = vld [vmem:[#allocation2 + $0x8c8] sm:$0xff]
    %v421 = vld [vmem:[#allocation2 + $0x8d0] sm:$0xff]
    %v422 = vld [vmem:[#allocation2 + $0x8d8] sm:$0xff]
    %v423 = vld [vmem:[#allocation2 + $0x8e0] sm:$0xff]
    %v424 = vld [vmem:[#allocation2 + $0x8e8] sm:$0xff]
    %v425 = vld [vmem:[#allocation2 + $0x8f0] sm:$0xff]
    %v426 = vld [vmem:[#allocation2 + $0x8f8] sm:$0xff]
    %v427 = vld [vmem:[#allocation2 + $0x900] sm:$0xff]
    %v428 = vld [vmem:[#allocation2 + $0x908] sm:$0xff]
    %v429 = vld [vmem:[#allocation2 + $0x910] sm:$0xff]
    %v430 = vld [vmem:[#allocation2 + $0x918] sm:$0xff]
    %v431 = vld [vmem:[#allocation2 + $0x920] sm:$0xff]
    %v432 = vld [vmem:[#allocation2 + $0x928] sm:$0xff]
    %v433 = vld [vmem:[#allocation2 + $0x930] sm:$0xff]
    %v434 = vld [vmem:[#allocation2 + $0x938] sm:$0xff]
    %v435 = vld [vmem:[#allocation2 + $0x940] sm:$0xff]
    %v436 = vld [vmem:[#allocation2 + $0x948] sm:$0xff]
    %v437 = vld [vmem:[#allocation2 + $0x950] sm:$0xff]
    %v438 = vld [vmem:[#allocation2 + $0x958] sm:$0xff]
    %v439 = vld [vmem:[#allocation2 + $0x960] sm:$0xff]
    %v440 = vld [vmem:[#allocation2 + $0x968] sm:$0xff]
    %v441 = vld [vmem:[#allocation2 + $0x970] sm:$0xff]
    %v442 = vld [vmem:[#allocation2 + $0x978] sm:$0xff]
    %v443 = vld [vmem:[#allocation2 + $0x980] sm:$0xff]
    %v444 = vld [vmem:[#allocation2 + $0x988] sm:$0xff]
    %v445 = vld [vmem:[#allocation2 + $0x990] sm:$0xff]
    %v446 = vld [vmem:[#allocation2 + $0x998] sm:$0xff]
    %v447 = vld [vmem:[#allocation2 + $0x9a0] sm:$0xff]
    %v448 = vld [vmem:[#allocation2 + $0x9a8] sm:$0xff]
    %v449 = vld [vmem:[#allocation2 + $0x9b0] sm:$0xff]
    %v450 = vld [vmem:[#allocation2 + $0x9b8] sm:$0xff]
    %v451 = vld [vmem:[#allocation2 + $0x9c0] sm:$0xff]
    %v452 = vld [vmem:[#allocation2 + $0x9c8] sm:$0xff]
    %v453 = vld [vmem:[#allocation2 + $0x9d0] sm:$0xff]
    %v454 = vld [vmem:[#allocation2 + $0x9d8] sm:$0xff]
    %v455 = vld [vmem:[#allocation2 + $0x9e0] sm:$0xff]
    %v456 = vld [vmem:[#allocation2 + $0x9e8] sm:$0xff]
    %v457 = vld [vmem:[#allocation2 + $0x9f0] sm:$0xff]
    %v458 = vld [vmem:[#allocation2 + $0x9f8] sm:$0xff]
    %v459 = vld [vmem:[#allocation2 + $0xa00] sm:$0xff]
    %v460 = vld [vmem:[#allocation2 + $0xa08] sm:$0xff]
    %v461 = vld [vmem:[#allocation2 + $0xa10] sm:$0xff]
    %v462 = vld [vmem:[#allocation2 + $0xa18] sm:$0xff]
    %v463 = vld [vmem:[#allocation2 + $0xa20] sm:$0xff]
    %v464 = vld [vmem:[#allocation2 + $0xa28] sm:$0xff]
    %v465 = vld [vmem:[#allocation2 + $0xa30] sm:$0xff]
    %v466 = vld [vmem:[#allocation2 + $0xa38] sm:$0xff]
    %v467 = vld [vmem:[#allocation2 + $0xa40] sm:$0xff]
    %v468 = vld [vmem:[#allocation2 + $0xa48] sm:$0xff]
    %v469 = vld [vmem:[#allocation2 + $0xa50] sm:$0xff]
    %v470 = vld [vmem:[#allocation2 + $0xa58] sm:$0xff]
    %v471 = vld [vmem:[#allocation2 + $0xa60] sm:$0xff]
    %v472 = vld [vmem:[#allocation2 + $0xa68] sm:$0xff]
    %v473 = vld [vmem:[#allocation2 + $0xa70] sm:$0xff]
    %v474 = vld [vmem:[#allocation2 + $0xa78] sm:$0xff]
    %v475 = vld [vmem:[#allocation2 + $0xa80] sm:$0xff]
    %v476 = vld [vmem:[#allocation2 + $0xa88] sm:$0xff]
    %v477 = vld [vmem:[#allocation2 + $0xa90] sm:$0xff]
    %v478 = vld [vmem:[#allocation2 + $0xa98] sm:$0xff]
    %v479 = vld [vmem:[#allocation2 + $0xaa0] sm:$0xff]
    %v480 = vld [vmem:[#allocation2 + $0xaa8] sm:$0xff]
    %v481 = vld [vmem:[#allocation2 + $0xab0] sm:$0xff]
    %v482 = vld [vmem:[#allocation2 + $0xab8] sm:$0xff]
    %v483 = vld [vmem:[#allocation2 + $0xac0] sm:$0xff]
    %v484 = vld [vmem:[#allocation2 + $0xac8] sm:$0xff]
    %v485 = vld [vmem:[#allocation2 + $0xad0] sm:$0xff]
    %v486 = vld [vmem:[#allocation2 + $0xad8] sm:$0xff]
    %v487 = vld [vmem:[#allocation2 + $0xae0] sm:$0xff]
    %v488 = vld [vmem:[#allocation2 + $0xae8] sm:$0xff]
    %v489 = vld [vmem:[#allocation2 + $0xaf0] sm:$0xff]
    %v490 = vld [vmem:[#allocation2 + $0xaf8] sm:$0xff]
    %v491 = vld [vmem:[#allocation2 + $0xb00] sm:$0xff]
    %v492 = vld [vmem:[#allocation2 + $0xb08] sm:$0xff]
    %v493 = vld [vmem:[#allocation2 + $0xb10] sm:$0xff]
    %v494 = vld [vmem:[#allocation2 + $0xb18] sm:$0xff]
    %v495 = vld [vmem:[#allocation2 + $0xb20] sm:$0xff]
    %v496 = vld [vmem:[#allocation2 + $0xb28] sm:$0xff]
    %v497 = vld [vmem:[#allocation2 + $0xb30] sm:$0xff]
    %v498 = vld [vmem:[#allocation2 + $0xb38] sm:$0xff]
    %v499 = vld [vmem:[#allocation2 + $0xb40] sm:$0xff]
    %v500 = vld [vmem:[#allocation2 + $0xb48] sm:$0xff]
    %v501 = vld [vmem:[#allocation2 + $0xb50] sm:$0xff]
    %v502 = vld [vmem:[#allocation2 + $0xb58] sm:$0xff]
    %v503 = vld [vmem:[#allocation2 + $0xb60] sm:$0xff]
    %v504 = vld [vmem:[#allocation2 + $0xb68] sm:$0xff]
    %v505 = vld [vmem:[#allocation2 + $0xb70] sm:$0xff]
    %v506 = vld [vmem:[#allocation2 + $0xb78] sm:$0xff]
    %v507 = vld [vmem:[#allocation2 + $0xb80] sm:$0xff]
    %v508 = vld [vmem:[#allocation2 + $0xb88] sm:$0xff]
    %v509 = vld [vmem:[#allocation2 + $0xb90] sm:$0xff]
    %v510 = vld [vmem:[#allocation2 + $0xb98] sm:$0xff]
    %v511 = vld [vmem:[#allocation2 + $0xba0] sm:$0xff]
    %v512 = vld [vmem:[#allocation2 + $0xba8] sm:$0xff]
    %v513 = vld [vmem:[#allocation2 + $0xbb0] sm:$0xff]
    %v514 = vld [vmem:[#allocation2 + $0xbb8] sm:$0xff]
    %v515 = vld [vmem:[#allocation2 + $0xbc0] sm:$0xff]
    %v516 = vld [vmem:[#allocation2 + $0xbc8] sm:$0xff]
    %v517 = vld [vmem:[#allocation2 + $0xbd0] sm:$0xff]
    %v518 = vld [vmem:[#allocation2 + $0xbd8] sm:$0xff]
    %v519 = vld [vmem:[#allocation2 + $0xbe0] sm:$0xff]
    %v520 = vld [vmem:[#allocation2 + $0xbe8] sm:$0xff]
    %v521 = vld [vmem:[#allocation2 + $0xbf0] sm:$0xff]
    %v522 = vld [vmem:[#allocation2 + $0xbf8] sm:$0xff]
    %v523 = vld [vmem:[#allocation2 + $0xc00] sm:$0xff]
    %v524 = vld [vmem:[#allocation2 + $0xc08] sm:$0xff]
    %v525 = vld [vmem:[#allocation2 + $0xc10] sm:$0xff]
    %v526 = vld [vmem:[#allocation2 + $0xc18] sm:$0xff]
    %v527 = vld [vmem:[#allocation2 + $0xc20] sm:$0xff]
    %v528 = vld [vmem:[#allocation2 + $0xc28] sm:$0xff]
    %v529 = vld [vmem:[#allocation2 + $0xc30] sm:$0xff]
    %v530 = vld [vmem:[#allocation2 + $0xc38] sm:$0xff]
    %v531 = vld [vmem:[#allocation2 + $0xc40] sm:$0xff]
    %v532 = vld [vmem:[#allocation2 + $0xc48] sm:$0xff]
    %v533 = vld [vmem:[#allocation2 + $0xc50] sm:$0xff]
    %v534 = vld [vmem:[#allocation2 + $0xc58] sm:$0xff]
    %v535 = vld [vmem:[#allocation2 + $0xc60] sm:$0xff]
    %v536 = vld [vmem:[#allocation2 + $0xc68] sm:$0xff]
    %v537 = vld [vmem:[#allocation2 + $0xc70] sm:$0xff]
    %v538 = vld [vmem:[#allocation2 + $0xc78] sm:$0xff]
    %v539 = vld [vmem:[#allocation2 + $0xc80] sm:$0xff]
    %v540 = vld [vmem:[#allocation2 + $0xc88] sm:$0xff]
    %v541 = vld [vmem:[#allocation2 + $0xc90] sm:$0xff]
    %v542 = vld [vmem:[#allocation2 + $0xc98] sm:$0xff]
    %v543 = vld [vmem:[#allocation2 + $0xca0] sm:$0xff]
    %v544 = vld [vmem:[#allocation2 + $0xca8] sm:$0xff]
    %v545 = vld [vmem:[#allocation2 + $0xcb0] sm:$0xff]
    %v546 = vld [vmem:[#allocation2 + $0xcb8] sm:$0xff]
    %v547 = vld [vmem:[#allocation2 + $0xcc0] sm:$0xff]
    %v548 = vld [vmem:[#allocation2 + $0xcc8] sm:$0xff]
    %v549 = vld [vmem:[#allocation2 + $0xcd0] sm:$0xff]
    %v550 = vld [vmem:[#allocation2 + $0xcd8] sm:$0xff]
    %v551 = vld [vmem:[#allocation2 + $0xce0] sm:$0xff]
    %v552 = vld [vmem:[#allocation2 + $0xce8] sm:$0xff]
    %v553 = vld [vmem:[#allocation2 + $0xcf0] sm:$0xff]
    %v554 = vld [vmem:[#allocation2 + $0xcf8] sm:$0xff]
    %v555 = vld [vmem:[#allocation2 + $0xd00] sm:$0xff]
    %v556 = vld [vmem:[#allocation2 + $0xd08] sm:$0xff]
    %v557 = vld [vmem:[#allocation2 + $0xd10] sm:$0xff]
    %v558 = vld [vmem:[#allocation2 + $0xd18] sm:$0xff]
    %v559 = vld [vmem:[#allocation2 + $0xd20] sm:$0xff]
    %v560 = vld [vmem:[#allocation2 + $0xd28] sm:$0xff]
    %v561 = vld [vmem:[#allocation2 + $0xd30] sm:$0xff]
    %v562 = vld [vmem:[#allocation2 + $0xd38] sm:$0xff]
    %v563 = vld [vmem:[#allocation2 + $0xd40] sm:$0xff]
    %v564 = vld [vmem:[#allocation2 + $0xd48] sm:$0xff]
    %v565 = vld [vmem:[#allocation2 + $0xd50] sm:$0xff]
    %v566 = vld [vmem:[#allocation2 + $0xd58] sm:$0xff]
    %v567 = vld [vmem:[#allocation2 + $0xd60] sm:$0xff]
    %v568 = vld [vmem:[#allocation2 + $0xd68] sm:$0xff]
    %v569 = vld [vmem:[#allocation2 + $0xd70] sm:$0xff]
    %v570 = vld [vmem:[#allocation2 + $0xd78] sm:$0xff]
    %v571 = vld [vmem:[#allocation2 + $0xd80] sm:$0xff]
    %v572 = vld [vmem:[#allocation2 + $0xd88] sm:$0xff]
    %v573 = vld [vmem:[#allocation2 + $0xd90] sm:$0xff]
    %v574 = vld [vmem:[#allocation2 + $0xd98] sm:$0xff]
    %v575 = vld [vmem:[#allocation2 + $0xda0] sm:$0xff]
    %v576 = vld [vmem:[#allocation2 + $0xda8] sm:$0xff]
    %v577 = vld [vmem:[#allocation2 + $0xdb0] sm:$0xff]
    %v578 = vld [vmem:[#allocation2 + $0xdb8] sm:$0xff]
    %v579 = vld [vmem:[#allocation2 + $0xdc0] sm:$0xff]
    %v580 = vld [vmem:[#allocation2 + $0xdc8] sm:$0xff]
    %v581 = vld [vmem:[#allocation2 + $0xdd0] sm:$0xff]
    %v582 = vld [vmem:[#allocation2 + $0xdd8] sm:$0xff]
    %v583 = vld [vmem:[#allocation2 + $0xde0] sm:$0xff]
    %v584 = vld [vmem:[#allocation2 + $0xde8] sm:$0xff]
    %v585 = vld [vmem:[#allocation2 + $0xdf0] sm:$0xff]
    %v586 = vld [vmem:[#allocation2 + $0xdf8] sm:$0xff]
    %v587 = vld [vmem:[#allocation2 + $0xe00] sm:$0xff]
    %v588 = vld [vmem:[#allocation2 + $0xe08] sm:$0xff]
    %v589 = vld [vmem:[#allocation2 + $0xe10] sm:$0xff]
    %v590 = vld [vmem:[#allocation2 + $0xe18] sm:$0xff]
    %v591 = vld [vmem:[#allocation2 + $0xe20] sm:$0xff]
    %v592 = vld [vmem:[#allocation2 + $0xe28] sm:$0xff]
    %v593 = vld [vmem:[#allocation2 + $0xe30] sm:$0xff]
    %v594 = vld [vmem:[#allocation2 + $0xe38] sm:$0xff]
    %v595 = vld [vmem:[#allocation2 + $0xe40] sm:$0xff]
    %v596 = vld [vmem:[#allocation2 + $0xe48] sm:$0xff]
    %v597 = vld [vmem:[#allocation2 + $0xe50] sm:$0xff]
    %v598 = vld [vmem:[#allocation2 + $0xe58] sm:$0xff]
    %v599 = vld [vmem:[#allocation2 + $0xe60] sm:$0xff]
    %v600 = vld [vmem:[#allocation2 + $0xe68] sm:$0xff]
    %v601 = vld [vmem:[#allocation2 + $0xe70] sm:$0xff]
    %v602 = vld [vmem:[#allocation2 + $0xe78] sm:$0xff]
    %v603 = vld [vmem:[#allocation2 + $0xe80] sm:$0xff]
    %v604 = vld [vmem:[#allocation2 + $0xe88] sm:$0xff]
    %v605 = vld [vmem:[#allocation2 + $0xe90] sm:$0xff]
    %v606 = vld [vmem:[#allocation2 + $0xe98] sm:$0xff]
    %v607 = vld [vmem:[#allocation2 + $0xea0] sm:$0xff]
    %v608 = vld [vmem:[#allocation2 + $0xea8] sm:$0xff]
    %v609 = vld [vmem:[#allocation2 + $0xeb0] sm:$0xff]
    %v610 = vld [vmem:[#allocation2 + $0xeb8] sm:$0xff]
    %v611 = vld [vmem:[#allocation2 + $0xec0] sm:$0xff]
    %v612 = vld [vmem:[#allocation2 + $0xec8] sm:$0xff]
    %v613 = vld [vmem:[#allocation2 + $0xed0] sm:$0xff]
    %v614 = vld [vmem:[#allocation2 + $0xed8] sm:$0xff]
    %v615 = vld [vmem:[#allocation2 + $0xee0] sm:$0xff]
    %v616 = vld [vmem:[#allocation2 + $0xee8] sm:$0xff]
    %v617 = vld [vmem:[#allocation2 + $0xef0] sm:$0xff]
    %v618 = vld [vmem:[#allocation2 + $0xef8] sm:$0xff]
    %v619 = vld [vmem:[#allocation2 + $0xf00] sm:$0xff]
    %v620 = vld [vmem:[#allocation2 + $0xf08] sm:$0xff]
    %v621 = vld [vmem:[#allocation2 + $0xf10] sm:$0xff]
    %v622 = vld [vmem:[#allocation2 + $0xf18] sm:$0xff]
    %v623 = vld [vmem:[#allocation2 + $0xf20] sm:$0xff]
    %v624 = vld [vmem:[#allocation2 + $0xf28] sm:$0xff]
    %v625 = vld [vmem:[#allocation2 + $0xf30] sm:$0xff]
    %v626 = vld [vmem:[#allocation2 + $0xf38] sm:$0xff]
    %v627 = vld [vmem:[#allocation2 + $0xf40] sm:$0xff]
    %v628 = vld [vmem:[#allocation2 + $0xf48] sm:$0xff]
    %v629 = vld [vmem:[#allocation2 + $0xf50] sm:$0xff]
    %v630 = vld [vmem:[#allocation2 + $0xf58] sm:$0xff]
    %v631 = vld [vmem:[#allocation2 + $0xf60] sm:$0xff]
    %v632 = vld [vmem:[#allocation2 + $0xf68] sm:$0xff]
    %v633 = vld [vmem:[#allocation2 + $0xf70] sm:$0xff]
    %v634 = vld [vmem:[#allocation2 + $0xf78] sm:$0xff]
    %v635 = vld [vmem:[#allocation2 + $0xf80] sm:$0xff]
    %v636 = vld [vmem:[#allocation2 + $0xf88] sm:$0xff]
    %v637 = vld [vmem:[#allocation2 + $0xf90] sm:$0xff]
    %v638 = vld [vmem:[#allocation2 + $0xf98] sm:$0xff]
    %v639 = vld [vmem:[#allocation2 + $0xfa0] sm:$0xff]
    %v640 = vld [vmem:[#allocation2 + $0xfa8] sm:$0xff]
    %v641 = vld [vmem:[#allocation2 + $0xfb0] sm:$0xff]
    %v642 = vld [vmem:[#allocation2 + $0xfb8] sm:$0xff]
    %v643 = vld [vmem:[#allocation2 + $0xfc0] sm:$0xff]
    %v644 = vld [vmem:[#allocation2 + $0xfc8] sm:$0xff]
    %v645 = vld [vmem:[#allocation2 + $0xfd0] sm:$0xff]
    %v646 = vld [vmem:[#allocation2 + $0xfd8] sm:$0xff]
    %v647 = vld [vmem:[#allocation2 + $0xfe0] sm:$0xff]
    %v648 = vld [vmem:[#allocation2 + $0xfe8] sm:$0xff]
    %v649 = vld [vmem:[#allocation2 + $0xff0] sm:$0xff]
    %v650 = vld [vmem:[#allocation2 + $0xff8] sm:$0xff]
    %v651 = vld [vmem:[#allocation2 + $0x1000] sm:$0xff]
    %v652 = vld [vmem:[#allocation2 + $0x1008] sm:$0xff]
    %v653 = vld [vmem:[#allocation2 + $0x1010] sm:$0xff]
    %v654 = vld [vmem:[#allocation2 + $0x1018] sm:$0xff]
    %v655 = vld [vmem:[#allocation2 + $0x1020] sm:$0xff]
    %v656 = vld [vmem:[#allocation2 + $0x1028] sm:$0xff]
    %v657 = vld [vmem:[#allocation2 + $0x1030] sm:$0xff]
    %v658 = vld [vmem:[#allocation2 + $0x1038] sm:$0xff]
    %v659 = vld [vmem:[#allocation2 + $0x1040] sm:$0xff]
    %v660 = vld [vmem:[#allocation2 + $0x1048] sm:$0xff]
    %v661 = vld [vmem:[#allocation2 + $0x1050] sm:$0xff]
    %v662 = vld [vmem:[#allocation2 + $0x1058] sm:$0xff]
    %v663 = vld [vmem:[#allocation2 + $0x1060] sm:$0xff]
    %v664 = vld [vmem:[#allocation2 + $0x1068] sm:$0xff]
    %v665 = vld [vmem:[#allocation2 + $0x1070] sm:$0xff]
    %v666 = vld [vmem:[#allocation2 + $0x1078] sm:$0xff]
    %v667 = vld [vmem:[#allocation2 + $0x1080] sm:$0xff]
    %v668 = vld [vmem:[#allocation2 + $0x1088] sm:$0xff]
    %v669 = vld [vmem:[#allocation2 + $0x1090] sm:$0xff]
    %v670 = vld [vmem:[#allocation2 + $0x1098] sm:$0xff]
    %v671 = vld [vmem:[#allocation2 + $0x10a0] sm:$0xff]
    %v672 = vld [vmem:[#allocation2 + $0x10a8] sm:$0xff]
    %v673 = vld [vmem:[#allocation2 + $0x10b0] sm:$0xff]
    %v674 = vld [vmem:[#allocation2 + $0x10b8] sm:$0xff]
    %v675 = vld [vmem:[#allocation2 + $0x10c0] sm:$0xff]
    %v676 = vld [vmem:[#allocation2 + $0x10c8] sm:$0xff]
    %v677 = vld [vmem:[#allocation2 + $0x10d0] sm:$0xff]
    %v678 = vld [vmem:[#allocation2 + $0x10d8] sm:$0xff]
    %v679 = vld [vmem:[#allocation2 + $0x10e0] sm:$0xff]
    %v680 = vld [vmem:[#allocation2 + $0x10e8] sm:$0xff]
    %v681 = vld [vmem:[#allocation2 + $0x10f0] sm:$0xff]
    %v682 = vld [vmem:[#allocation2 + $0x10f8] sm:$0xff]
    %v683 = vld [vmem:[#allocation2 + $0x1100] sm:$0xff]
    %v684 = vld [vmem:[#allocation2 + $0x1108] sm:$0xff]
    %v685 = vld [vmem:[#allocation2 + $0x1110] sm:$0xff]
    %v686 = vld [vmem:[#allocation2 + $0x1118] sm:$0xff]
    %v687 = vld [vmem:[#allocation2 + $0x1120] sm:$0xff]
    %v688 = vld [vmem:[#allocation2 + $0x1128] sm:$0xff]
    %v689 = vld [vmem:[#allocation2 + $0x1130] sm:$0xff]
    %v690 = vld [vmem:[#allocation2 + $0x1138] sm:$0xff]
    %v691 = vld [vmem:[#allocation2 + $0x1140] sm:$0xff]
    %v692 = vld [vmem:[#allocation2 + $0x1148] sm:$0xff]
    %v693 = vld [vmem:[#allocation2 + $0x1150] sm:$0xff]
    %v694 = vld [vmem:[#allocation2 + $0x1158] sm:$0xff]
    %v695 = vld [vmem:[#allocation2 + $0x1160] sm:$0xff]
    %v696 = vld [vmem:[#allocation2 + $0x1168] sm:$0xff]
    %v697 = vld [vmem:[#allocation2 + $0x1170] sm:$0xff]
    %v698 = vld [vmem:[#allocation2 + $0x1178] sm:$0xff]
    %v699 = vld [vmem:[#allocation2 + $0x1180] sm:$0xff]
    %v700 = vld [vmem:[#allocation2 + $0x1188] sm:$0xff]
    %v701 = vld [vmem:[#allocation2 + $0x1190] sm:$0xff]
    %v702 = vld [vmem:[#allocation2 + $0x1198] sm:$0xff]
    %v703 = vld [vmem:[#allocation2 + $0x11a0] sm:$0xff]
    %v704 = vld [vmem:[#allocation2 + $0x11a8] sm:$0xff]
    %v705 = vld [vmem:[#allocation2 + $0x11b0] sm:$0xff]
    %v706 = vld [vmem:[#allocation2 + $0x11b8] sm:$0xff]
    %v707 = vld [vmem:[#allocation2 + $0x11c0] sm:$0xff]
    %v708 = vld [vmem:[#allocation2 + $0x11c8] sm:$0xff]
    %v709 = vld [vmem:[#allocation2 + $0x11d0] sm:$0xff]
    %v710 = vld [vmem:[#allocation2 + $0x11d8] sm:$0xff]
    %v711 = vld [vmem:[#allocation2 + $0x11e0] sm:$0xff]
    %v712 = vld [vmem:[#allocation2 + $0x11e8] sm:$0xff]
    %v713 = vld [vmem:[#allocation2 + $0x11f0] sm:$0xff]
    %v714 = vld [vmem:[#allocation2 + $0x11f8] sm:$0xff]
    %v715 = vld [vmem:[#allocation2 + $0x1200] sm:$0xff]
    %v716 = vld [vmem:[#allocation2 + $0x1208] sm:$0xff]
    %v717 = vld [vmem:[#allocation2 + $0x1210] sm:$0xff]
    %v718 = vld [vmem:[#allocation2 + $0x1218] sm:$0xff]
    %v719 = vld [vmem:[#allocation2 + $0x1220] sm:$0xff]
    %v720 = vld [vmem:[#allocation2 + $0x1228] sm:$0xff]
    %v721 = vld [vmem:[#allocation2 + $0x1230] sm:$0xff]
    %v722 = vld [vmem:[#allocation2 + $0x1238] sm:$0xff]
    %v723 = vld [vmem:[#allocation2 + $0x1240] sm:$0xff]
    %v724 = vld [vmem:[#allocation2 + $0x1248] sm:$0xff]
    %v725 = vld [vmem:[#allocation2 + $0x1250] sm:$0xff]
    %v726 = vld [vmem:[#allocation2 + $0x1258] sm:$0xff]
    %v727 = vld [vmem:[#allocation2 + $0x1260] sm:$0xff]
    %v728 = vld [vmem:[#allocation2 + $0x1268] sm:$0xff]
    %v729 = vld [vmem:[#allocation2 + $0x1270] sm:$0xff]
    %v730 = vld [vmem:[#allocation2 + $0x1278] sm:$0xff]
    %v731 = vld [vmem:[#allocation2 + $0x1280] sm:$0xff]
    %v732 = vld [vmem:[#allocation2 + $0x1288] sm:$0xff]
    %v733 = vld [vmem:[#allocation2 + $0x1290] sm:$0xff]
    %v734 = vld [vmem:[#allocation2 + $0x1298] sm:$0xff]
    %v735 = vld [vmem:[#allocation2 + $0x12a0] sm:$0xff]
    %v736 = vld [vmem:[#allocation2 + $0x12a8] sm:$0xff]
    %v737 = vld [vmem:[#allocation2 + $0x12b0] sm:$0xff]
    %v738 = vld [vmem:[#allocation2 + $0x12b8] sm:$0xff]
    %v739 = vld [vmem:[#allocation2 + $0x12c0] sm:$0xff]
    %v740 = vld [vmem:[#allocation2 + $0x12c8] sm:$0xff]
    %v741 = vld [vmem:[#allocation2 + $0x12d0] sm:$0xff]
    %v742 = vld [vmem:[#allocation2 + $0x12d8] sm:$0xff]
    %v743 = vld [vmem:[#allocation2 + $0x12e0] sm:$0xff]
    %v744 = vld [vmem:[#allocation2 + $0x12e8] sm:$0xff]
    %v745 = vld [vmem:[#allocation2 + $0x12f0] sm:$0xff]
    %v746 = vld [vmem:[#allocation2 + $0x12f8] sm:$0xff]
    %v747 = vld [vmem:[#allocation2 + $0x1300] sm:$0xff]
    %v748 = vld [vmem:[#allocation2 + $0x1308] sm:$0xff]
    %v749 = vld [vmem:[#allocation2 + $0x1310] sm:$0xff]
    %v750 = vld [vmem:[#allocation2 + $0x1318] sm:$0xff]
    %v751 = vld [vmem:[#allocation2 + $0x1320] sm:$0xff]
    %v752 = vld [vmem:[#allocation2 + $0x1328] sm:$0xff]
    %v753 = vld [vmem:[#allocation2 + $0x1330] sm:$0xff]
    %v754 = vld [vmem:[#allocation2 + $0x1338] sm:$0xff]
    %v755 = vld [vmem:[#allocation2 + $0x1340] sm:$0xff]
    %v756 = vld [vmem:[#allocation2 + $0x1348] sm:$0xff]
    %v757 = vld [vmem:[#allocation2 + $0x1350] sm:$0xff]
    %v758 = vld [vmem:[#allocation2 + $0x1358] sm:$0xff]
    %v759 = vld [vmem:[#allocation2 + $0x1360] sm:$0xff]
    %v760 = vld [vmem:[#allocation2 + $0x1368] sm:$0xff]
    %v761 = vld [vmem:[#allocation2 + $0x1370] sm:$0xff]
    %v762 = vld [vmem:[#allocation2 + $0x1378] sm:$0xff]
    %v763 = vld [vmem:[#allocation2 + $0x1380] sm:$0xff]
    %v764 = vld [vmem:[#allocation2 + $0x1388] sm:$0xff]
    %v765 = vld [vmem:[#allocation2 + $0x1390] sm:$0xff]
    %v766 = vld [vmem:[#allocation2 + $0x1398] sm:$0xff]
    %v767 = vld [vmem:[#allocation2 + $0x13a0] sm:$0xff]
    %v768 = vld [vmem:[#allocation2 + $0x13a8] sm:$0xff]
    %v769 = vld [vmem:[#allocation2 + $0x13b0] sm:$0xff]
    %v770 = vld [vmem:[#allocation2 + $0x13b8] sm:$0xff]
    %v771 = vld [vmem:[#allocation2 + $0x13c0] sm:$0xff]
    %v772 = vld [vmem:[#allocation2 + $0x13c8] sm:$0xff]
    %v773 = vld [vmem:[#allocation2 + $0x13d0] sm:$0xff]
    %v774 = vld [vmem:[#allocation2 + $0x13d8] sm:$0xff]
    %v775 = vld [vmem:[#allocation2 + $0x13e0] sm:$0xff]
    %v776 = vld [vmem:[#allocation2 + $0x13e8] sm:$0xff]
    %v777 = vld [vmem:[#allocation2 + $0x13f0] sm:$0xff]
    %v778 = vld [vmem:[#allocation2 + $0x13f8] sm:$0xff]
    %v779 = vld [vmem:[#allocation2 + $0x1400] sm:$0xff]
    %v780 = vld [vmem:[#allocation2 + $0x1408] sm:$0xff]
    %v781 = vld [vmem:[#allocation2 + $0x1410] sm:$0xff]
    %v782 = vld [vmem:[#allocation2 + $0x1418] sm:$0xff]
    %v783 = vld [vmem:[#allocation2 + $0x1420] sm:$0xff]
    %v784 = vld [vmem:[#allocation2 + $0x1428] sm:$0xff]
    %v785 = vld [vmem:[#allocation2 + $0x1430] sm:$0xff]
    %v786 = vld [vmem:[#allocation2 + $0x1438] sm:$0xff]
    %v787 = vld [vmem:[#allocation2 + $0x1440] sm:$0xff]
    %v788 = vld [vmem:[#allocation2 + $0x1448] sm:$0xff]
    %v789 = vld [vmem:[#allocation2 + $0x1450] sm:$0xff]
    %v790 = vld [vmem:[#allocation2 + $0x1458] sm:$0xff]
    %v791 = vld [vmem:[#allocation2 + $0x1460] sm:$0xff]
    %v792 = vld [vmem:[#allocation2 + $0x1468] sm:$0xff]
    %v793 = vld [vmem:[#allocation2 + $0x1470] sm:$0xff]
    %v794 = vld [vmem:[#allocation2 + $0x1478] sm:$0xff]
    %v795 = vld [vmem:[#allocation2 + $0x1480] sm:$0xff]
    %v796 = vld [vmem:[#allocation2 + $0x1488] sm:$0xff]
    %v797 = vld [vmem:[#allocation2 + $0x1490] sm:$0xff]
    %v798 = vld [vmem:[#allocation2 + $0x1498] sm:$0xff]
    %v799 = vld [vmem:[#allocation2 + $0x14a0] sm:$0xff]
    %v800 = vld [vmem:[#allocation2 + $0x14a8] sm:$0xff]
    %v801 = vld [vmem:[#allocation2 + $0x14b0] sm:$0xff]
    %v802 = vld [vmem:[#allocation2 + $0x14b8] sm:$0xff]
    %v803 = vld [vmem:[#allocation2 + $0x14c0] sm:$0xff]
    %v804 = vld [vmem:[#allocation2 + $0x14c8] sm:$0xff]
    %v805 = vld [vmem:[#allocation2 + $0x14d0] sm:$0xff]
    %v806 = vld [vmem:[#allocation2 + $0x14d8] sm:$0xff]
    %v807 = vld [vmem:[#allocation2 + $0x14e0] sm:$0xff]
    %v808 = vld [vmem:[#allocation2 + $0x14e8] sm:$0xff]
    %v809 = vld [vmem:[#allocation2 + $0x14f0] sm:$0xff]
    %v810 = vld [vmem:[#allocation2 + $0x14f8] sm:$0xff]
    %v811 = vld [vmem:[#allocation2 + $0x1500] sm:$0xff]
    %v812 = vld [vmem:[#allocation2 + $0x1508] sm:$0xff]
    %v813 = vld [vmem:[#allocation2 + $0x1510] sm:$0xff]
    %v814 = vld [vmem:[#allocation2 + $0x1518] sm:$0xff]
    %v815 = vld [vmem:[#allocation2 + $0x1520] sm:$0xff]
    %v816 = vld [vmem:[#allocation2 + $0x1528] sm:$0xff]
    %v817 = vld [vmem:[#allocation2 + $0x1530] sm:$0xff]
    %v818 = vld [vmem:[#allocation2 + $0x1538] sm:$0xff]
    %v819 = vld [vmem:[#allocation2 + $0x1540] sm:$0xff]
    %v820 = vld [vmem:[#allocation2 + $0x1548] sm:$0xff]
    %v821 = vld [vmem:[#allocation2 + $0x1550] sm:$0xff]
    %v822 = vld [vmem:[#allocation2 + $0x1558] sm:$0xff]
    %v823 = vld [vmem:[#allocation2 + $0x1560] sm:$0xff]
    %v824 = vld [vmem:[#allocation2 + $0x1568] sm:$0xff]
    %v825 = vld [vmem:[#allocation2 + $0x1570] sm:$0xff]
    %v826 = vld [vmem:[#allocation2 + $0x1578] sm:$0xff]
    %v827 = vld [vmem:[#allocation2 + $0x1580] sm:$0xff]
    %v828 = vld [vmem:[#allocation2 + $0x1588] sm:$0xff]
    %v829 = vld [vmem:[#allocation2 + $0x1590] sm:$0xff]
    %v830 = vld [vmem:[#allocation2 + $0x1598] sm:$0xff]
    %v831 = vld [vmem:[#allocation2 + $0x15a0] sm:$0xff]
    %v832 = vld [vmem:[#allocation2 + $0x15a8] sm:$0xff]
    %v833 = vld [vmem:[#allocation2 + $0x15b0] sm:$0xff]
    %v834 = vld [vmem:[#allocation2 + $0x15b8] sm:$0xff]
    %v835 = vld [vmem:[#allocation2 + $0x15c0] sm:$0xff]
    %v836 = vld [vmem:[#allocation2 + $0x15c8] sm:$0xff]
    %v837 = vld [vmem:[#allocation2 + $0x15d0] sm:$0xff]
    %v838 = vld [vmem:[#allocation2 + $0x15d8] sm:$0xff]
    %v839 = vld [vmem:[#allocation2 + $0x15e0] sm:$0xff]
    %v840 = vld [vmem:[#allocation2 + $0x15e8] sm:$0xff]
    %v841 = vld [vmem:[#allocation2 + $0x15f0] sm:$0xff]
    %v842 = vld [vmem:[#allocation2 + $0x15f8] sm:$0xff]
    %v843 = vld [vmem:[#allocation2 + $0x1600] sm:$0xff]
    %v844 = vld [vmem:[#allocation2 + $0x1608] sm:$0xff]
    %v845 = vld [vmem:[#allocation2 + $0x1610] sm:$0xff]
    %v846 = vld [vmem:[#allocation2 + $0x1618] sm:$0xff]
    %v847 = vld [vmem:[#allocation2 + $0x1620] sm:$0xff]
    %v848 = vld [vmem:[#allocation2 + $0x1628] sm:$0xff]
    %v849 = vld [vmem:[#allocation2 + $0x1630] sm:$0xff]
    %v850 = vld [vmem:[#allocation2 + $0x1638] sm:$0xff]
    %v851 = vld [vmem:[#allocation2 + $0x1640] sm:$0xff]
    %v852 = vld [vmem:[#allocation2 + $0x1648] sm:$0xff]
    %v853 = vld [vmem:[#allocation2 + $0x1650] sm:$0xff]
    %v854 = vld [vmem:[#allocation2 + $0x1658] sm:$0xff]
    %v855 = vld [vmem:[#allocation2 + $0x1660] sm:$0xff]
    %v856 = vld [vmem:[#allocation2 + $0x1668] sm:$0xff]
    %v857 = vld [vmem:[#allocation2 + $0x1670] sm:$0xff]
    %v858 = vld [vmem:[#allocation2 + $0x1678] sm:$0xff]
    %v859 = vld [vmem:[#allocation2 + $0x1680] sm:$0xff]
    %v860 = vld [vmem:[#allocation2 + $0x1688] sm:$0xff]
    %v861 = vld [vmem:[#allocation2 + $0x1690] sm:$0xff]
    %v862 = vld [vmem:[#allocation2 + $0x1698] sm:$0xff]
    %v863 = vld [vmem:[#allocation2 + $0x16a0] sm:$0xff]
    %v864 = vld [vmem:[#allocation2 + $0x16a8] sm:$0xff]
    %v865 = vld [vmem:[#allocation2 + $0x16b0] sm:$0xff]
    %v866 = vld [vmem:[#allocation2 + $0x16b8] sm:$0xff]
    %v867 = vld [vmem:[#allocation2 + $0x16c0] sm:$0xff]
    %v868 = vld [vmem:[#allocation2 + $0x16c8] sm:$0xff]
    %v869 = vld [vmem:[#allocation2 + $0x16d0] sm:$0xff]
    %v870 = vld [vmem:[#allocation2 + $0x16d8] sm:$0xff]
    %v871 = vld [vmem:[#allocation2 + $0x16e0] sm:$0xff]
    %v872 = vld [vmem:[#allocation2 + $0x16e8] sm:$0xff]
    %v873 = vld [vmem:[#allocation2 + $0x16f0] sm:$0xff]
    %v874 = vld [vmem:[#allocation2 + $0x16f8] sm:$0xff]
    %v875 = vld [vmem:[#allocation2 + $0x1700] sm:$0xff]
    %v876 = vld [vmem:[#allocation2 + $0x1708] sm:$0xff]
    %v877 = vld [vmem:[#allocation2 + $0x1710] sm:$0xff]
    %v878 = vld [vmem:[#allocation2 + $0x1718] sm:$0xff]
    %v879 = vld [vmem:[#allocation2 + $0x1720] sm:$0xff]
    %v880 = vld [vmem:[#allocation2 + $0x1728] sm:$0xff]
    %v881 = vld [vmem:[#allocation2 + $0x1730] sm:$0xff]
    %v882 = vld [vmem:[#allocation2 + $0x1738] sm:$0xff]
    %v883 = vld [vmem:[#allocation2 + $0x1740] sm:$0xff]
    %v884 = vld [vmem:[#allocation2 + $0x1748] sm:$0xff]
    %v885 = vld [vmem:[#allocation2 + $0x1750] sm:$0xff]
    %v886 = vld [vmem:[#allocation2 + $0x1758] sm:$0xff]
    %v887 = vld [vmem:[#allocation2 + $0x1760] sm:$0xff]
    %v888 = vld [vmem:[#allocation2 + $0x1768] sm:$0xff]
    %v889 = vld [vmem:[#allocation2 + $0x1770] sm:$0xff]
    %v890 = vld [vmem:[#allocation2 + $0x1778] sm:$0xff]
    %v891 = vld [vmem:[#allocation2 + $0x1780] sm:$0xff]
    %v892 = vld [vmem:[#allocation2 + $0x1788] sm:$0xff]
    %v893 = vld [vmem:[#allocation2 + $0x1790] sm:$0xff]
    %v894 = vld [vmem:[#allocation2 + $0x1798] sm:$0xff]
    %v895 = vld [vmem:[#allocation2 + $0x17a0] sm:$0xff]
    %v896 = vld [vmem:[#allocation2 + $0x17a8] sm:$0xff]
    %v897 = vld [vmem:[#allocation2 + $0x17b0] sm:$0xff]
    %v898 = vld [vmem:[#allocation2 + $0x17b8] sm:$0xff]
    %v899 = vld [vmem:[#allocation2 + $0x17c0] sm:$0xff]
    %v900 = vld [vmem:[#allocation2 + $0x17c8] sm:$0xff]
    %v901 = vld [vmem:[#allocation2 + $0x17d0] sm:$0xff]
    %v902 = vld [vmem:[#allocation2 + $0x17d8] sm:$0xff]
    %v903 = vld [vmem:[#allocation2 + $0x17e0] sm:$0xff]
    %v904 = vld [vmem:[#allocation2 + $0x17e8] sm:$0xff]
    %v905 = vld [vmem:[#allocation2 + $0x17f0] sm:$0xff]
    %v906 = vld [vmem:[#allocation2 + $0x17f8] sm:$0xff]
    %v907 = vld [vmem:[#allocation2 + $0x1800] sm:$0xff]
    %v908 = vld [vmem:[#allocation2 + $0x1808] sm:$0xff]
    %v909 = vld [vmem:[#allocation2 + $0x1810] sm:$0xff]
    %v910 = vld [vmem:[#allocation2 + $0x1818] sm:$0xff]
    %v911 = vld [vmem:[#allocation2 + $0x1820] sm:$0xff]
    %v912 = vld [vmem:[#allocation2 + $0x1828] sm:$0xff]
    %v913 = vld [vmem:[#allocation2 + $0x1830] sm:$0xff]
    %v914 = vld [vmem:[#allocation2 + $0x1838] sm:$0xff]
    %v915 = vld [vmem:[#allocation2 + $0x1840] sm:$0xff]
    %v916 = vld [vmem:[#allocation2 + $0x1848] sm:$0xff]
    %v917 = vld [vmem:[#allocation2 + $0x1850] sm:$0xff]
    %v918 = vld [vmem:[#allocation2 + $0x1858] sm:$0xff]
    %v919 = vld [vmem:[#allocation2 + $0x1860] sm:$0xff]
    %v920 = vld [vmem:[#allocation2 + $0x1868] sm:$0xff]
    %v921 = vld [vmem:[#allocation2 + $0x1870] sm:$0xff]
    %v922 = vld [vmem:[#allocation2 + $0x1878] sm:$0xff]
    %v923 = vld [vmem:[#allocation2 + $0x1880] sm:$0xff]
    %v924 = vld [vmem:[#allocation2 + $0x1888] sm:$0xff]
    %v925 = vld [vmem:[#allocation2 + $0x1890] sm:$0xff]
    %v926 = vld [vmem:[#allocation2 + $0x1898] sm:$0xff]
    %v927 = vld [vmem:[#allocation2 + $0x18a0] sm:$0xff]
    %v928 = vld [vmem:[#allocation2 + $0x18a8] sm:$0xff]
    %v929 = vld [vmem:[#allocation2 + $0x18b0] sm:$0xff]
    %v930 = vld [vmem:[#allocation2 + $0x18b8] sm:$0xff]
    %v931 = vld [vmem:[#allocation2 + $0x18c0] sm:$0xff]
    %v932 = vld [vmem:[#allocation2 + $0x18c8] sm:$0xff]
    %v933 = vld [vmem:[#allocation2 + $0x18d0] sm:$0xff]
    %v934 = vld [vmem:[#allocation2 + $0x18d8] sm:$0xff]
    %v935 = vld [vmem:[#allocation2 + $0x18e0] sm:$0xff]
    %v936 = vld [vmem:[#allocation2 + $0x18e8] sm:$0xff]
    %v937 = vld [vmem:[#allocation2 + $0x18f0] sm:$0xff]
    %v938 = vld [vmem:[#allocation2 + $0x18f8] sm:$0xff]
    %v939 = vld [vmem:[#allocation2 + $0x1900] sm:$0xff]
    %v940 = vld [vmem:[#allocation2 + $0x1908] sm:$0xff]
    %v941 = vld [vmem:[#allocation2 + $0x1910] sm:$0xff]
    %v942 = vld [vmem:[#allocation2 + $0x1918] sm:$0xff]
    %v943 = vld [vmem:[#allocation2 + $0x1920] sm:$0xff]
    %v944 = vld [vmem:[#allocation2 + $0x1928] sm:$0xff]
    %v945 = vld [vmem:[#allocation2 + $0x1930] sm:$0xff]
    %v946 = vld [vmem:[#allocation2 + $0x1938] sm:$0xff]
    %v947 = vld [vmem:[#allocation2 + $0x1940] sm:$0xff]
    %v948 = vld [vmem:[#allocation2 + $0x1948] sm:$0xff]
    %v949 = vld [vmem:[#allocation2 + $0x1950] sm:$0xff]
    %v950 = vld [vmem:[#allocation2 + $0x1958] sm:$0xff]
    %v951 = vld [vmem:[#allocation2 + $0x1960] sm:$0xff]
    %v952 = vld [vmem:[#allocation2 + $0x1968] sm:$0xff]
    %v953 = vld [vmem:[#allocation2 + $0x1970] sm:$0xff]
    %v954 = vld [vmem:[#allocation2 + $0x1978] sm:$0xff]
    %v955 = vld [vmem:[#allocation2 + $0x1980] sm:$0xff]
    %v956 = vld [vmem:[#allocation2 + $0x1988] sm:$0xff]
    %v957 = vld [vmem:[#allocation2 + $0x1990] sm:$0xff]
    %v958 = vld [vmem:[#allocation2 + $0x1998] sm:$0xff]
    %v959 = vld [vmem:[#allocation2 + $0x19a0] sm:$0xff]
    %v960 = vld [vmem:[#allocation2 + $0x19a8] sm:$0xff]
    %v961 = vld [vmem:[#allocation2 + $0x19b0] sm:$0xff]
    %v962 = vld [vmem:[#allocation2 + $0x19b8] sm:$0xff]
    %v963 = vld [vmem:[#allocation2 + $0x19c0] sm:$0xff]
    %v964 = vld [vmem:[#allocation2 + $0x19c8] sm:$0xff]
    %v965 = vld [vmem:[#allocation2 + $0x19d0] sm:$0xff]
    %v966 = vld [vmem:[#allocation2 + $0x19d8] sm:$0xff]
    %v967 = vld [vmem:[#allocation2 + $0x19e0] sm:$0xff]
    %v968 = vld [vmem:[#allocation2 + $0x19e8] sm:$0xff]
    %v969 = vld [vmem:[#allocation2 + $0x19f0] sm:$0xff]
    %v970 = vld [vmem:[#allocation2 + $0x19f8] sm:$0xff]
    %v971 = vld [vmem:[#allocation2 + $0x1a00] sm:$0xff]
    %v972 = vld [vmem:[#allocation2 + $0x1a08] sm:$0xff]
    %v973 = vld [vmem:[#allocation2 + $0x1a10] sm:$0xff]
    %v974 = vld [vmem:[#allocation2 + $0x1a18] sm:$0xff]
    %v975 = vld [vmem:[#allocation2 + $0x1a20] sm:$0xff]
    %v976 = vld [vmem:[#allocation2 + $0x1a28] sm:$0xff]
    %v977 = vld [vmem:[#allocation2 + $0x1a30] sm:$0xff]
    %v978 = vld [vmem:[#allocation2 + $0x1a38] sm:$0xff]
    %v979 = vld [vmem:[#allocation2 + $0x1a40] sm:$0xff]
    %v980 = vld [vmem:[#allocation2 + $0x1a48] sm:$0xff]
    %v981 = vld [vmem:[#allocation2 + $0x1a50] sm:$0xff]
    %v982 = vld [vmem:[#allocation2 + $0x1a58] sm:$0xff]
    %v983 = vld [vmem:[#allocation2 + $0x1a60] sm:$0xff]
    %v984 = vld [vmem:[#allocation2 + $0x1a68] sm:$0xff]
    %v985 = vld [vmem:[#allocation2 + $0x1a70] sm:$0xff]
    %v986 = vld [vmem:[#allocation2 + $0x1a78] sm:$0xff]
    %v987 = vld [vmem:[#allocation2 + $0x1a80] sm:$0xff]
    %v988 = vld [vmem:[#allocation2 + $0x1a88] sm:$0xff]
    %v989 = vld [vmem:[#allocation2 + $0x1a90] sm:$0xff]
    %v990 = vld [vmem:[#allocation2 + $0x1a98] sm:$0xff]
    %v991 = vld [vmem:[#allocation2 + $0x1aa0] sm:$0xff]
    %v992 = vld [vmem:[#allocation2 + $0x1aa8] sm:$0xff]
    %v993 = vld [vmem:[#allocation2 + $0x1ab0] sm:$0xff]
    %v994 = vld [vmem:[#allocation2 + $0x1ab8] sm:$0xff]
    %v995 = vld [vmem:[#allocation2 + $0x1ac0] sm:$0xff]
    %v996 = vld [vmem:[#allocation2 + $0x1ac8] sm:$0xff]
    %v997 = vld [vmem:[#allocation2 + $0x1ad0] sm:$0xff]
    %v998 = vld [vmem:[#allocation2 + $0x1ad8] sm:$0xff]
    %v999 = vld [vmem:[#allocation2 + $0x1ae0] sm:$0xff]
    %v1000 = vld [vmem:[#allocation2 + $0x1ae8] sm:$0xff]
    %v1001 = vld [vmem:[#allocation2 + $0x1af0] sm:$0xff]
    %v1002 = vld [vmem:[#allocation2 + $0x1af8] sm:$0xff]
    %v1003 = vld [vmem:[#allocation2 + $0x1b00] sm:$0xff]
    %v1004 = vld [vmem:[#allocation2 + $0x1b08] sm:$0xff]
    %v1005 = vld [vmem:[#allocation2 + $0x1b10] sm:$0xff]
    %v1006 = vld [vmem:[#allocation2 + $0x1b18] sm:$0xff]
    %v1007 = vld [vmem:[#allocation2 + $0x1b20] sm:$0xff]
    %v1008 = vld [vmem:[#allocation2 + $0x1b28] sm:$0xff]
    %v1009 = vld [vmem:[#allocation2 + $0x1b30] sm:$0xff]
    %v1010 = vld [vmem:[#allocation2 + $0x1b38] sm:$0xff]
    %v1011 = vld [vmem:[#allocation2 + $0x1b40] sm:$0xff]
    %v1012 = vld [vmem:[#allocation2 + $0x1b48] sm:$0xff]
    %v1013 = vld [vmem:[#allocation2 + $0x1b50] sm:$0xff]
    %v1014 = vld [vmem:[#allocation2 + $0x1b58] sm:$0xff]
    %v1015 = vld [vmem:[#allocation2 + $0x1b60] sm:$0xff]
    %v1016 = vld [vmem:[#allocation2 + $0x1b68] sm:$0xff]
    %v1017 = vld [vmem:[#allocation2 + $0x1b70] sm:$0xff]
    %v1018 = vld [vmem:[#allocation2 + $0x1b78] sm:$0xff]
    %v1019 = vld [vmem:[#allocation2 + $0x1b80] sm:$0xff]
    %v1020 = vld [vmem:[#allocation2 + $0x1b88] sm:$0xff]
    %v1021 = vld [vmem:[#allocation2 + $0x1b90] sm:$0xff]
    %v1022 = vld [vmem:[#allocation2 + $0x1b98] sm:$0xff]
    %v1023 = vld [vmem:[#allocation2 + $0x1ba0] sm:$0xff]
    %v1024 = vld [vmem:[#allocation2 + $0x1ba8] sm:$0xff]
    %v1025 = vld [vmem:[#allocation2 + $0x1bb0] sm:$0xff]
    %v1026 = vld [vmem:[#allocation2 + $0x1bb8] sm:$0xff]
    %v1027 = vld [vmem:[#allocation2 + $0x1bc0] sm:$0xff]
    %v1028 = vld [vmem:[#allocation2 + $0x1bc8] sm:$0xff]
    %v1029 = vld [vmem:[#allocation2 + $0x1bd0] sm:$0xff]
    %v1030 = vld [vmem:[#allocation2 + $0x1bd8] sm:$0xff]
    %v1031 = vld [vmem:[#allocation2 + $0x1be0] sm:$0xff]
    %v1032 = vld [vmem:[#allocation2 + $0x1be8] sm:$0xff]
    %v1033 = vld [vmem:[#allocation2 + $0x1bf0] sm:$0xff]
    %v1034 = vld [vmem:[#allocation2 + $0x1bf8] sm:$0xff]
    %v1035 = vld [vmem:[#allocation2 + $0x1c00] sm:$0xff]
    %v1036 = vld [vmem:[#allocation2 + $0x1c08] sm:$0xff]
    %v1037 = vld [vmem:[#allocation2 + $0x1c10] sm:$0xff]
    %v1038 = vld [vmem:[#allocation2 + $0x1c18] sm:$0xff]
    %v1039 = vld [vmem:[#allocation2 + $0x1c20] sm:$0xff]
    %v1040 = vld [vmem:[#allocation2 + $0x1c28] sm:$0xff]
    %v1041 = vld [vmem:[#allocation2 + $0x1c30] sm:$0xff]
    %v1042 = vld [vmem:[#allocation2 + $0x1c38] sm:$0xff]
    %v1043 = vld [vmem:[#allocation2 + $0x1c40] sm:$0xff]
    %v1044 = vld [vmem:[#allocation2 + $0x1c48] sm:$0xff]
    %v1045 = vld [vmem:[#allocation2 + $0x1c50] sm:$0xff]
    %v1046 = vld [vmem:[#allocation2 + $0x1c58] sm:$0xff]
    %v1047 = vld [vmem:[#allocation2 + $0x1c60] sm:$0xff]
    %v1048 = vld [vmem:[#allocation2 + $0x1c68] sm:$0xff]
    %v1049 = vld [vmem:[#allocation2 + $0x1c70] sm:$0xff]
    %v1050 = vld [vmem:[#allocation2 + $0x1c78] sm:$0xff]
    %v1051 = vld [vmem:[#allocation2 + $0x1c80] sm:$0xff]
    %v1052 = vld [vmem:[#allocation2 + $0x1c88] sm:$0xff]
    %v1053 = vld [vmem:[#allocation2 + $0x1c90] sm:$0xff]
    %v1054 = vld [vmem:[#allocation2 + $0x1c98] sm:$0xff]
    %v1055 = vld [vmem:[#allocation2 + $0x1ca0] sm:$0xff]
    %v1056 = vld [vmem:[#allocation2 + $0x1ca8] sm:$0xff]
    %v1057 = vld [vmem:[#allocation2 + $0x1cb0] sm:$0xff]
    %v1058 = vld [vmem:[#allocation2 + $0x1cb8] sm:$0xff]
    %v1059 = vld [vmem:[#allocation2 + $0x1cc0] sm:$0xff]
    %v1060 = vld [vmem:[#allocation2 + $0x1cc8] sm:$0xff]
    %v1061 = vld [vmem:[#allocation2 + $0x1cd0] sm:$0xff]
    %v1062 = vld [vmem:[#allocation2 + $0x1cd8] sm:$0xff]
    %v1063 = vld [vmem:[#allocation2 + $0x1ce0] sm:$0xff]
    %v1064 = vld [vmem:[#allocation2 + $0x1ce8] sm:$0xff]
    %v1065 = vld [vmem:[#allocation2 + $0x1cf0] sm:$0xff]
    %v1066 = vld [vmem:[#allocation2 + $0x1cf8] sm:$0xff]
    %v1067 = vld [vmem:[#allocation2 + $0x1d00] sm:$0xff]
    %v1068 = vld [vmem:[#allocation2 + $0x1d08] sm:$0xff]
    %v1069 = vld [vmem:[#allocation2 + $0x1d10] sm:$0xff]
    %v1070 = vld [vmem:[#allocation2 + $0x1d18] sm:$0xff]
    %v1071 = vld [vmem:[#allocation2 + $0x1d20] sm:$0xff]
    %v1072 = vld [vmem:[#allocation2 + $0x1d28] sm:$0xff]
    %v1073 = vld [vmem:[#allocation2 + $0x1d30] sm:$0xff]
    %v1074 = vld [vmem:[#allocation2 + $0x1d38] sm:$0xff]
    %v1075 = vld [vmem:[#allocation2 + $0x1d40] sm:$0xff]
    %v1076 = vld [vmem:[#allocation2 + $0x1d48] sm:$0xff]
    %v1077 = vld [vmem:[#allocation2 + $0x1d50] sm:$0xff]
    %v1078 = vld [vmem:[#allocation2 + $0x1d58] sm:$0xff]
    %v1079 = vld [vmem:[#allocation2 + $0x1d60] sm:$0xff]
    %v1080 = vld [vmem:[#allocation2 + $0x1d68] sm:$0xff]
    %v1081 = vld [vmem:[#allocation2 + $0x1d70] sm:$0xff]
    %v1082 = vld [vmem:[#allocation2 + $0x1d78] sm:$0xff]
    %v1083 = vld [vmem:[#allocation2 + $0x1d80] sm:$0xff]
    %v1084 = vld [vmem:[#allocation2 + $0x1d88] sm:$0xff]
    %v1085 = vld [vmem:[#allocation2 + $0x1d90] sm:$0xff]
    %v1086 = vld [vmem:[#allocation2 + $0x1d98] sm:$0xff]
    %v1087 = vld [vmem:[#allocation2 + $0x1da0] sm:$0xff]
    %v1088 = vld [vmem:[#allocation2 + $0x1da8] sm:$0xff]
    %v1089 = vld [vmem:[#allocation2 + $0x1db0] sm:$0xff]
    %v1090 = vld [vmem:[#allocation2 + $0x1db8] sm:$0xff]
    %v1091 = vld [vmem:[#allocation2 + $0x1dc0] sm:$0xff]
    %v1092 = vld [vmem:[#allocation2 + $0x1dc8] sm:$0xff]
    %v1093 = vld [vmem:[#allocation2 + $0x1dd0] sm:$0xff]
    %v1094 = vld [vmem:[#allocation2 + $0x1dd8] sm:$0xff]
    %v1095 = vld [vmem:[#allocation2 + $0x1de0] sm:$0xff]
    %v1096 = vld [vmem:[#allocation2 + $0x1de8] sm:$0xff]
    %v1097 = vld [vmem:[#allocation2 + $0x1df0] sm:$0xff]
    %v1098 = vld [vmem:[#allocation2 + $0x1df8] sm:$0xff]
    %v1099 = vld [vmem:[#allocation2 + $0x1e00] sm:$0xff]
    %v1100 = vld [vmem:[#allocation2 + $0x1e08] sm:$0xff]
    %v1101 = vld [vmem:[#allocation2 + $0x1e10] sm:$0xff]
    %v1102 = vld [vmem:[#allocation2 + $0x1e18] sm:$0xff]
    %v1103 = vld [vmem:[#allocation2 + $0x1e20] sm:$0xff]
    %v1104 = vld [vmem:[#allocation2 + $0x1e28] sm:$0xff]
    %v1105 = vld [vmem:[#allocation2 + $0x1e30] sm:$0xff]
    %v1106 = vld [vmem:[#allocation2 + $0x1e38] sm:$0xff]
    %v1107 = vld [vmem:[#allocation2 + $0x1e40] sm:$0xff]
    %v1108 = vld [vmem:[#allocation2 + $0x1e48] sm:$0xff]
    %v1109 = vld [vmem:[#allocation2 + $0x1e50] sm:$0xff]
    %v1110 = vld [vmem:[#allocation2 + $0x1e58] sm:$0xff]
    %v1111 = vld [vmem:[#allocation2 + $0x1e60] sm:$0xff]
    %v1112 = vld [vmem:[#allocation2 + $0x1e68] sm:$0xff]
    %v1113 = vld [vmem:[#allocation2 + $0x1e70] sm:$0xff]
    %v1114 = vld [vmem:[#allocation2 + $0x1e78] sm:$0xff]
    %v1115 = vld [vmem:[#allocation2 + $0x1e80] sm:$0xff]
    %v1116 = vld [vmem:[#allocation2 + $0x1e88] sm:$0xff]
    %v1117 = vld [vmem:[#allocation2 + $0x1e90] sm:$0xff]
    %v1118 = vld [vmem:[#allocation2 + $0x1e98] sm:$0xff]
    %v1119 = vld [vmem:[#allocation2 + $0x1ea0] sm:$0xff]
    %v1120 = vld [vmem:[#allocation2 + $0x1ea8] sm:$0xff]
    %v1121 = vld [vmem:[#allocation2 + $0x1eb0] sm:$0xff]
    %v1122 = vld [vmem:[#allocation2 + $0x1eb8] sm:$0xff]
    %v1123 = vld [vmem:[#allocation2 + $0x1ec0] sm:$0xff]
    %v1124 = vld [vmem:[#allocation2 + $0x1ec8] sm:$0xff]
    %v1125 = vld [vmem:[#allocation2 + $0x1ed0] sm:$0xff]
    %v1126 = vld [vmem:[#allocation2 + $0x1ed8] sm:$0xff]
    %v1127 = vld [vmem:[#allocation2 + $0x1ee0] sm:$0xff]
    %v1128 = vld [vmem:[#allocation2 + $0x1ee8] sm:$0xff]
    %v1129 = vld [vmem:[#allocation2 + $0x1ef0] sm:$0xff]
    %v1130 = vld [vmem:[#allocation2 + $0x1ef8] sm:$0xff]
    %v1131 = vld [vmem:[#allocation2 + $0x1f00] sm:$0xff]
    %v1132 = vld [vmem:[#allocation2 + $0x1f08] sm:$0xff]
    %v1133 = vld [vmem:[#allocation2 + $0x1f10] sm:$0xff]
    %v1134 = vld [vmem:[#allocation2 + $0x1f18] sm:$0xff]
    %v1135 = vld [vmem:[#allocation2 + $0x1f20] sm:$0xff]
    %v1136 = vld [vmem:[#allocation2 + $0x1f28] sm:$0xff]
    %v1137 = vld [vmem:[#allocation2 + $0x1f30] sm:$0xff]
    %v1138 = vld [vmem:[#allocation2 + $0x1f38] sm:$0xff]
    %v1139 = vld [vmem:[#allocation2 + $0x1f40] sm:$0xff]
    %v1140 = vld [vmem:[#allocation2 + $0x1f48] sm:$0xff]
    %v1141 = vld [vmem:[#allocation2 + $0x1f50] sm:$0xff]
    %v1142 = vld [vmem:[#allocation2 + $0x1f58] sm:$0xff]
    %v1143 = vld [vmem:[#allocation2 + $0x1f60] sm:$0xff]
    %v1144 = vld [vmem:[#allocation2 + $0x1f68] sm:$0xff]
    %v1145 = vld [vmem:[#allocation2 + $0x1f70] sm:$0xff]
    %v1146 = vld [vmem:[#allocation2 + $0x1f78] sm:$0xff]
    %v1147 = vld [vmem:[#allocation2 + $0x1f80] sm:$0xff]
    %v1148 = vld [vmem:[#allocation2 + $0x1f88] sm:$0xff]
    %v1149 = vld [vmem:[#allocation2 + $0x1f90] sm:$0xff]
    %v1150 = vld [vmem:[#allocation2 + $0x1f98] sm:$0xff]
    %v1151 = vld [vmem:[#allocation2 + $0x1fa0] sm:$0xff]
    %v1152 = vld [vmem:[#allocation2 + $0x1fa8] sm:$0xff]
    %v1153 = vld [vmem:[#allocation2 + $0x1fb0] sm:$0xff]
    %v1154 = vld [vmem:[#allocation2 + $0x1fb8] sm:$0xff]
    %v1155 = vld [vmem:[#allocation2 + $0x1fc0] sm:$0xff]
    %v1156 = vld [vmem:[#allocation2 + $0x1fc8] sm:$0xff]
    %v1157 = vld [vmem:[#allocation2 + $0x1fd0] sm:$0xff]
    %v1158 = vld [vmem:[#allocation2 + $0x1fd8] sm:$0xff]
    %v1159 = vld [vmem:[#allocation2 + $0x1fe0] sm:$0xff]
    %v1160 = vld [vmem:[#allocation2 + $0x1fe8] sm:$0xff]
    %v1161 = vld [vmem:[#allocation2 + $0x1ff0] sm:$0xff]
    %v1162 = vld [vmem:[#allocation2 + $0x1ff8] sm:$0xff]
    %v1163 = vld [vmem:[#allocation2 + $0x2000] sm:$0xff]
    %v1164 = vld [vmem:[#allocation2 + $0x2008] sm:$0xff]
    %v1165 = vld [vmem:[#allocation2 + $0x2010] sm:$0xff]
    %v1166 = vld [vmem:[#allocation2 + $0x2018] sm:$0xff]
    %v1167 = vld [vmem:[#allocation2 + $0x2020] sm:$0xff]
    %v1168 = vld [vmem:[#allocation2 + $0x2028] sm:$0xff]
    %v1169 = vld [vmem:[#allocation2 + $0x2030] sm:$0xff]
    %v1170 = vld [vmem:[#allocation2 + $0x2038] sm:$0xff]
    %v1171 = vld [vmem:[#allocation2 + $0x2040] sm:$0xff]
    %v1172 = vld [vmem:[#allocation2 + $0x2048] sm:$0xff]
    %v1173 = vld [vmem:[#allocation2 + $0x2050] sm:$0xff]
    %v1174 = vld [vmem:[#allocation2 + $0x2058] sm:$0xff]
    %v1175 = vld [vmem:[#allocation2 + $0x2060] sm:$0xff]
    %v1176 = vld [vmem:[#allocation2 + $0x2068] sm:$0xff]
    %v1177 = vld [vmem:[#allocation2 + $0x2070] sm:$0xff]
    %v1178 = vld [vmem:[#allocation2 + $0x2078] sm:$0xff]
    %v1179 = vld [vmem:[#allocation2 + $0x2080] sm:$0xff]
    %v1180 = vld [vmem:[#allocation2 + $0x2088] sm:$0xff]
    %v1181 = vld [vmem:[#allocation2 + $0x2090] sm:$0xff]
    %v1182 = vld [vmem:[#allocation2 + $0x2098] sm:$0xff]
    %v1183 = vld [vmem:[#allocation2 + $0x20a0] sm:$0xff]
    %v1184 = vld [vmem:[#allocation2 + $0x20a8] sm:$0xff]
    %v1185 = vld [vmem:[#allocation2 + $0x20b0] sm:$0xff]
    %v1186 = vld [vmem:[#allocation2 + $0x20b8] sm:$0xff]
    %v1187 = vld [vmem:[#allocation2 + $0x20c0] sm:$0xff]
    %v1188 = vld [vmem:[#allocation2 + $0x20c8] sm:$0xff]
    %v1189 = vld [vmem:[#allocation2 + $0x20d0] sm:$0xff]
    %v1190 = vld [vmem:[#allocation2 + $0x20d8] sm:$0xff]
    %v1191 = vld [vmem:[#allocation2 + $0x20e0] sm:$0xff]
    %v1192 = vld [vmem:[#allocation2 + $0x20e8] sm:$0xff]
    %v1193 = vld [vmem:[#allocation2 + $0x20f0] sm:$0xff]
    %v1194 = vld [vmem:[#allocation2 + $0x20f8] sm:$0xff]
    %v1195 = vld [vmem:[#allocation2 + $0x2100] sm:$0xff]
    %v1196 = vld [vmem:[#allocation2 + $0x2108] sm:$0xff]
    %v1197 = vld [vmem:[#allocation2 + $0x2110] sm:$0xff]
    %v1198 = vld [vmem:[#allocation2 + $0x2118] sm:$0xff]
    %v1199 = vld [vmem:[#allocation2 + $0x2120] sm:$0xff]
    %v1200 = vld [vmem:[#allocation2 + $0x2128] sm:$0xff]
    %v1201 = vld [vmem:[#allocation2 + $0x2130] sm:$0xff]
    %v1202 = vld [vmem:[#allocation2 + $0x2138] sm:$0xff]
    %v1203 = vld [vmem:[#allocation2 + $0x2140] sm:$0xff]
    %v1204 = vld [vmem:[#allocation2 + $0x2148] sm:$0xff]
    %v1205 = vld [vmem:[#allocation2 + $0x2150] sm:$0xff]
    %v1206 = vld [vmem:[#allocation2 + $0x2158] sm:$0xff]
    %v1207 = vld [vmem:[#allocation2 + $0x2160] sm:$0xff]
    %v1208 = vld [vmem:[#allocation2 + $0x2168] sm:$0xff]
    %v1209 = vld [vmem:[#allocation2 + $0x2170] sm:$0xff]
    %v1210 = vld [vmem:[#allocation2 + $0x2178] sm:$0xff]
    %v1211 = vld [vmem:[#allocation2 + $0x2180] sm:$0xff]
    %v1212 = vld [vmem:[#allocation2 + $0x2188] sm:$0xff]
    %v1213 = vld [vmem:[#allocation2 + $0x2190] sm:$0xff]
    %v1214 = vld [vmem:[#allocation2 + $0x2198] sm:$0xff]
    %v1215 = vld [vmem:[#allocation2 + $0x21a0] sm:$0xff]
    %v1216 = vld [vmem:[#allocation2 + $0x21a8] sm:$0xff]
    %v1217 = vld [vmem:[#allocation2 + $0x21b0] sm:$0xff]
    %v1218 = vld [vmem:[#allocation2 + $0x21b8] sm:$0xff]
    %v1219 = vld [vmem:[#allocation2 + $0x21c0] sm:$0xff]
    %v1220 = vld [vmem:[#allocation2 + $0x21c8] sm:$0xff]
    %v1221 = vld [vmem:[#allocation2 + $0x21d0] sm:$0xff]
    %v1222 = vld [vmem:[#allocation2 + $0x21d8] sm:$0xff]
    %v1223 = vld [vmem:[#allocation2 + $0x21e0] sm:$0xff]
    %v1224 = vld [vmem:[#allocation2 + $0x21e8] sm:$0xff]
    %v1225 = vld [vmem:[#allocation2 + $0x21f0] sm:$0xff]
    %v1226 = vld [vmem:[#allocation2 + $0x21f8] sm:$0xff]
    %v1227 = vld [vmem:[#allocation2 + $0x2200] sm:$0xff]
    %v1228 = vld [vmem:[#allocation2 + $0x2208] sm:$0xff]
    %v1229 = vld [vmem:[#allocation2 + $0x2210] sm:$0xff]
    %v1230 = vld [vmem:[#allocation2 + $0x2218] sm:$0xff]
    %v1231 = vld [vmem:[#allocation2 + $0x2220] sm:$0xff]
    %v1232 = vld [vmem:[#allocation2 + $0x2228] sm:$0xff]
    %v1233 = vld [vmem:[#allocation2 + $0x2230] sm:$0xff]
    %v1234 = vld [vmem:[#allocation2 + $0x2238] sm:$0xff]
    %v1235 = vld [vmem:[#allocation2 + $0x2240] sm:$0xff]
    %v1236 = vld [vmem:[#allocation2 + $0x2248] sm:$0xff]
    %v1237 = vld [vmem:[#allocation2 + $0x2250] sm:$0xff]
    %v1238 = vld [vmem:[#allocation2 + $0x2258] sm:$0xff]
    %v1239 = vld [vmem:[#allocation2 + $0x2260] sm:$0xff]
    %v1240 = vld [vmem:[#allocation2 + $0x2268] sm:$0xff]
    %v1241 = vld [vmem:[#allocation2 + $0x2270] sm:$0xff]
    %v1242 = vld [vmem:[#allocation2 + $0x2278] sm:$0xff]
    %v1243 = vld [vmem:[#allocation2 + $0x2280] sm:$0xff]
    %v1244 = vld [vmem:[#allocation2 + $0x2288] sm:$0xff]
    %v1245 = vld [vmem:[#allocation2 + $0x2290] sm:$0xff]
    %v1246 = vld [vmem:[#allocation2 + $0x2298] sm:$0xff]
    %v1247 = vld [vmem:[#allocation2 + $0x22a0] sm:$0xff]
    %v1248 = vld [vmem:[#allocation2 + $0x22a8] sm:$0xff]
    %v1249 = vld [vmem:[#allocation2 + $0x22b0] sm:$0xff]
    %v1250 = vld [vmem:[#allocation2 + $0x22b8] sm:$0xff]
    %v1251 = vld [vmem:[#allocation2 + $0x22c0] sm:$0xff]
    %v1252 = vld [vmem:[#allocation2 + $0x22c8] sm:$0xff]
    %v1253 = vld [vmem:[#allocation2 + $0x22d0] sm:$0xff]
    %v1254 = vld [vmem:[#allocation2 + $0x22d8] sm:$0xff]
    %v1255 = vld [vmem:[#allocation2 + $0x22e0] sm:$0xff]
    %v1256 = vld [vmem:[#allocation2 + $0x22e8] sm:$0xff]
    %v1257 = vld [vmem:[#allocation2 + $0x22f0] sm:$0xff]
    %v1258 = vld [vmem:[#allocation2 + $0x22f8] sm:$0xff]
    %v1259 = vld [vmem:[#allocation2 + $0x2300] sm:$0xff]
    %v1260 = vld [vmem:[#allocation2 + $0x2308] sm:$0xff]
    %v1261 = vld [vmem:[#allocation2 + $0x2310] sm:$0xff]
    %v1262 = vld [vmem:[#allocation2 + $0x2318] sm:$0xff]
    %v1263 = vld [vmem:[#allocation2 + $0x2320] sm:$0xff]
    %v1264 = vld [vmem:[#allocation2 + $0x2328] sm:$0xff]
    %v1265 = vld [vmem:[#allocation2 + $0x2330] sm:$0xff]
    %v1266 = vld [vmem:[#allocation2 + $0x2338] sm:$0xff]
    %v1267 = vld [vmem:[#allocation2 + $0x2340] sm:$0xff]
    %v1268 = vld [vmem:[#allocation2 + $0x2348] sm:$0xff]
    %v1269 = vld [vmem:[#allocation2 + $0x2350] sm:$0xff]
    %v1270 = vld [vmem:[#allocation2 + $0x2358] sm:$0xff]
    %v1271 = vld [vmem:[#allocation2 + $0x2360] sm:$0xff]
    %v1272 = vld [vmem:[#allocation2 + $0x2368] sm:$0xff]
    %v1273 = vld [vmem:[#allocation2 + $0x2370] sm:$0xff]
    %v1274 = vld [vmem:[#allocation2 + $0x2378] sm:$0xff]
    %v1275 = vld [vmem:[#allocation2 + $0x2380] sm:$0xff]
    %v1276 = vld [vmem:[#allocation2 + $0x2388] sm:$0xff]
    %v1277 = vld [vmem:[#allocation2 + $0x2390] sm:$0xff]
    %v1278 = vld [vmem:[#allocation2 + $0x2398] sm:$0xff]
    %v1279 = vld [vmem:[#allocation2 + $0x23a0] sm:$0xff]
    %v1280 = vld [vmem:[#allocation2 + $0x23a8] sm:$0xff]
    %v1281 = vld [vmem:[#allocation2 + $0x23b0] sm:$0xff]
    %v1282 = vld [vmem:[#allocation2 + $0x23b8] sm:$0xff]
    %v1283 = vld [vmem:[#allocation2 + $0x23c0] sm:$0xff]
    %v1284 = vld [vmem:[#allocation2 + $0x23c8] sm:$0xff]
    %v1285 = vld [vmem:[#allocation2 + $0x23d0] sm:$0xff]
    %v1286 = vld [vmem:[#allocation2 + $0x23d8] sm:$0xff]
    %v1287 = vld [vmem:[#allocation2 + $0x23e0] sm:$0xff]
    %v1288 = vld [vmem:[#allocation2 + $0x23e8] sm:$0xff]
    %v1289 = vld [vmem:[#allocation2 + $0x23f0] sm:$0xff]
    %v1290 = vld [vmem:[#allocation2 + $0x23f8] sm:$0xff]
    %v1291 = vld [vmem:[#allocation5] sm:$0xf]
    %v1293 = vlaneseq
    %v1294 = vshrl.u32 %v1293, 7
    %v1295 = vsub.s32 0, %v1294
    %v1296 = vrot.slane %v1291, %v1295
    %v1297 = vlaneseq
    %v1298 = vshrl.u32 %v1297, 7
    %v1299 = vsub.s32 1, %v1298
    %v1300 = vrot.slane %v1291, %v1299
    %v1301 = vlaneseq
    %v1302 = vshrl.u32 %v1301, 7
    %v1303 = vsub.s32 2, %v1302
    %v1304 = vrot.slane %v1291, %v1303
    %v1305 = vlaneseq
    %v1306 = vshrl.u32 %v1305, 7
    %v1307 = vsub.s32 3, %v1306
    %v1308 = vrot.slane %v1291, %v1307
    %v1318 = vcombine.high %v134, %v134
    %v1320 = vunpack.c.l.s4 1983009808
    %v1321 = vunpack.c.0.s8 %v1320
    %v1322 = vlaneseq
    %v1323 = vshrl.u32 %v1322, 7
    %v1324 = vsub.s32 %v1321, %v1323
    %v1325 = vrot.slane %v134, %v1324
    %v1327 = vunpack.c.l.s4 1983009808
    %v1328 = vunpack.c.0.s8 %v1327
    %v1329 = vlaneseq
    %v1330 = vshrl.u32 %v1329, 7
    %v1331 = vsub.s32 %v1328, %v1330
    %v1332 = vrot.slane %v1318, %v1331
    %v1333 = vcombine.high %v1325, %v1325
    %v1334 = vcombine.high %v1332, %v1332
    %v1335 = vcombine.high %v135, %v135
    %v1337 = vunpack.c.l.s4 1983009808
    %v1338 = vunpack.c.0.s8 %v1337
    %v1339 = vlaneseq
    %v1340 = vshrl.u32 %v1339, 7
    %v1341 = vsub.s32 %v1338, %v1340
    %v1342 = vrot.slane %v135, %v1341
    %v1344 = vunpack.c.l.s4 1983009808
    %v1345 = vunpack.c.0.s8 %v1344
    %v1346 = vlaneseq
    %v1347 = vshrl.u32 %v1346, 7
    %v1348 = vsub.s32 %v1345, %v1347
    %v1349 = vrot.slane %v1335, %v1348
    %v1350 = vcombine.high %v1342, %v1342
    %v1351 = vcombine.high %v1349, %v1349
    %v1352 = vcombine.high %v136, %v136
    %v1354 = vunpack.c.l.s4 1983009808
    %v1355 = vunpack.c.0.s8 %v1354
    %v1356 = vlaneseq
    %v1357 = vshrl.u32 %v1356, 7
    %v1358 = vsub.s32 %v1355, %v1357
    %v1359 = vrot.slane %v136, %v1358
    %v1361 = vunpack.c.l.s4 1983009808
    %v1362 = vunpack.c.0.s8 %v1361
    %v1363 = vlaneseq
    %v1364 = vshrl.u32 %v1363, 7
    %v1365 = vsub.s32 %v1362, %v1364
    %v1366 = vrot.slane %v1352, %v1365
    %v1367 = vcombine.high %v1359, %v1359
    %v1368 = vcombine.high %v1366, %v1366
    %v1369 = vcombine.high %v137, %v137
    %v1371 = vunpack.c.l.s4 1983009808
    %v1372 = vunpack.c.0.s8 %v1371
    %v1373 = vlaneseq
    %v1374 = vshrl.u32 %v1373, 7
    %v1375 = vsub.s32 %v1372, %v1374
    %v1376 = vrot.slane %v137, %v1375
    %v1378 = vunpack.c.l.s4 1983009808
    %v1379 = vunpack.c.0.s8 %v1378
    %v1380 = vlaneseq
    %v1381 = vshrl.u32 %v1380, 7
    %v1382 = vsub.s32 %v1379, %v1381
    %v1383 = vrot.slane %v1369, %v1382
    %v1384 = vcombine.high %v1376, %v1376
    %v1385 = vcombine.high %v1383, %v1383
    %v1387 = vunpack.c.l.s4 1983009808
    %v1388 = vunpack.c.0.s8 %v1387
    %v1389 = vlaneseq
    %v1390 = vshrl.u32 %v1389, 7
    %v1391 = vsub.s32 %v1388, %v1390
    %v1392 = vrot.slane %v138, %v1391
    %v1393 = vcombine.high %v1392, %v1392
    %1412 = vmatprep.subr.mxu0 %v140
    %1413 = vmatpush1.msra.mxu0 %v139
    %1414 = vmatprep.subr.mxu0 %v144
    %1415 = vmatpush1.msra.mxu0 %v143
    %1416 = vmatprep.subr.mxu0 %v148
    %1417 = vmatpush1.msra.mxu0 %v147
    %1418 = vmatprep.subr.mxu0 %v152
    %1419 = vmatpush1.msra.mxu0 %v151
    %1420 = vmatprep.subr.mxu0 %v156
    %1421 = vmatpush1.msra.mxu0 %v155
    %1422 = vmatprep.subr.mxu0 %v160
    %1423 = vmatpush1.msra.mxu0 %v159
    %1424 = vmatprep.subr.mxu0 %v164
    %1425 = vmatpush1.msra.mxu0 %v163
    %1426 = vmatprep.subr.mxu0 %v168
    %1427 = vmatpush1.msra.mxu0 %v167
    %1428 = vmatprep.subr.mxu0 %v172
    %1429 = vmatpush1.msra.mxu0 %v171
    %1430 = vmatprep.subr.mxu0 %v176
    %1431 = vmatpush1.msra.mxu0 %v175
    %1432 = vmatprep.subr.mxu0 %v180
    %1433 = vmatpush1.msra.mxu0 %v179
    %1434 = vmatprep.subr.mxu0 %v184
    %1435 = vmatpush1.msra.mxu0 %v183
    %1436 = vmatprep.subr.mxu0 %v188
    %1437 = vmatpush1.msra.mxu0 %v187
    %1438 = vmatprep.subr.mxu0 %v192
    %1439 = vmatpush1.msra.mxu0 %v191
    %1440 = vmatprep.subr.mxu0 %v196
    %1441 = vmatpush1.msra.mxu0 %v195
    %1442 = vmatprep.subr.mxu0 %v200
    %1443 = vmatpush1.msra.mxu0 %v199
    %1444 = vmatprep.subr.mxu0 %v204
    %1445 = vmatpush1.msra.mxu0 %v203
    %1446 = vmatprep.subr.mxu0 %v208
    %1447 = vmatpush1.msra.mxu0 %v207
    %1448 = vmatprep.subr.mxu0 %v212
    %1449 = vmatpush1.msra.mxu0 %v211
    %1450 = vmatprep.subr.mxu0 %v216
    %1451 = vmatpush1.msra.mxu0 %v215
    %1452 = vmatprep.subr.mxu0 %v220
    %1453 = vmatpush1.msra.mxu0 %v219
    %1454 = vmatprep.subr.mxu0 %v224
    %1455 = vmatpush1.msra.mxu0 %v223
    %1456 = vmatprep.subr.mxu0 %v228
    %1457 = vmatpush1.msra.mxu0 %v227
    %1458 = vmatprep.subr.mxu0 %v232
    %1459 = vmatpush1.msra.mxu0 %v231
    %1460 = vmatprep.subr.mxu0 %v236
    %1461 = vmatpush1.msra.mxu0 %v235
    %1462 = vmatprep.subr.mxu0 %v240
    %1463 = vmatpush1.msra.mxu0 %v239
    %1464 = vmatprep.subr.mxu0 %v244
    %1465 = vmatpush1.msra.mxu0 %v243
    %1466 = vmatprep.subr.mxu0 %v248
    %1467 = vmatpush1.msra.mxu0 %v247
    %1468 = vmatprep.subr.mxu0 %v252
    %1469 = vmatpush1.msra.mxu0 %v251
    %1470 = vmatprep.subr.mxu0 %v256
    %1471 = vmatpush1.msra.mxu0 %v255
    %1472 = vmatprep.subr.mxu0 %v260
    %1473 = vmatpush1.msra.mxu0 %v259
    %1474 = vmatprep.subr.mxu0 %v264
    %1475 = vmatpush1.msra.mxu0 %v263
    %1476 = vmatprep.mubr.f32.mxu0 %v1333
    %1477 = vmatmul.mubr.f32.gmra.mrb[0].mxu0 %v1325
    %v1478 = vpop.f32.mrb[0].mxu0
    %v1479 = vadd.f32 %v1296, %v1478
    %v1480 = vpop.f32.mrb[0].mxu0
    %v1481 = vadd.f32 %v1300, %v1480
    %1482 = vdwg.mxu0
    %1483 = vmatprep.subr.mxu0 %v268
    %1484 = vmatpush1.msra.mxu0 %v267
    %1485 = vmatprep.subr.mxu0 %v272
    %1486 = vmatpush1.msra.mxu0 %v271
    %1487 = vmatprep.subr.mxu0 %v276
    %1488 = vmatpush1.msra.mxu0 %v275
    %1489 = vmatprep.subr.mxu0 %v280
    %1490 = vmatpush1.msra.mxu0 %v279
    %1491 = vmatprep.subr.mxu0 %v284
    %1492 = vmatpush1.msra.mxu0 %v283
    %1493 = vmatprep.subr.mxu0 %v288
    %1494 = vmatpush1.msra.mxu0 %v287
    %1495 = vmatprep.subr.mxu0 %v292
    %1496 = vmatpush1.msra.mxu0 %v291
    %1497 = vmatprep.subr.mxu0 %v296
    %1498 = vmatpush1.msra.mxu0 %v295
    %1499 = vmatprep.subr.mxu0 %v300
    %1500 = vmatpush1.msra.mxu0 %v299
    %1501 = vmatprep.subr.mxu0 %v304
    %1502 = vmatpush1.msra.mxu0 %v303
    %1503 = vmatprep.subr.mxu0 %v308
    %1504 = vmatpush1.msra.mxu0 %v307
    %1505 = vmatprep.subr.mxu0 %v312
    %1506 = vmatpush1.msra.mxu0 %v311
    %1507 = vmatprep.subr.mxu0 %v316
    %1508 = vmatpush1.msra.mxu0 %v315
    %1509 = vmatprep.subr.mxu0 %v320
    %1510 = vmatpush1.msra.mxu0 %v319
    %1511 = vmatprep.subr.mxu0 %v324
    %1512 = vmatpush1.msra.mxu0 %v323
    %1513 = vmatprep.subr.mxu0 %v328
    %1514 = vmatpush1.msra.mxu0 %v327
    %1515 = vmatprep.subr.mxu0 %v332
    %1516 = vmatpush1.msra.mxu0 %v331
    %1517 = vmatprep.subr.mxu0 %v336
    %1518 = vmatpush1.msra.mxu0 %v335
    %1519 = vmatprep.subr.mxu0 %v340
    %1520 = vmatpush1.msra.mxu0 %v339
    %1521 = vmatprep.subr.mxu0 %v344
    %1522 = vmatpush1.msra.mxu0 %v343
    %1523 = vmatprep.subr.mxu0 %v348
    %1524 = vmatpush1.msra.mxu0 %v347
    %1525 = vmatprep.subr.mxu0 %v352
    %1526 = vmatpush1.msra.mxu0 %v351
    %1527 = vmatprep.subr.mxu0 %v356
    %1528 = vmatpush1.msra.mxu0 %v355
    %1529 = vmatprep.subr.mxu0 %v360
    %1530 = vmatpush1.msra.mxu0 %v359
    %1531 = vmatprep.subr.mxu0 %v364
    %1532 = vmatpush1.msra.mxu0 %v363
    %1533 = vmatprep.subr.mxu0 %v368
    %1534 = vmatpush1.msra.mxu0 %v367
    %1535 = vmatprep.subr.mxu0 %v372
    %1536 = vmatpush1.msra.mxu0 %v371
    %1537 = vmatprep.subr.mxu0 %v376
    %1538 = vmatpush1.msra.mxu0 %v375
    %1539 = vmatprep.subr.mxu0 %v380
    %1540 = vmatpush1.msra.mxu0 %v379
    %1541 = vmatprep.subr.mxu0 %v384
    %1542 = vmatpush1.msra.mxu0 %v383
    %1543 = vmatprep.subr.mxu0 %v388
    %1544 = vmatpush1.msra.mxu0 %v387
    %1545 = vmatprep.subr.mxu0 %v392
    %1546 = vmatpush1.msra.mxu0 %v391
    %1547 = vmatprep.mubr.f32.mxu0 %v1334
    %1548 = vmatmul.mubr.f32.gmra.mrb[0].mxu0 %v1332
    %v1549 = vpop.f32.mrb[0].mxu0
    %v1550 = vadd.f32 %v1479, %v1549
    %v1551 = vpop.f32.mrb[0].mxu0
    %v1552 = vadd.f32 %v1481, %v1551
    %1553 = vdwg.mxu0
    %1554 = vmatprep.subr.mxu0 %v396
    %1555 = vmatpush1.msra.mxu0 %v395
    %1556 = vmatprep.subr.mxu0 %v400
    %1557 = vmatpush1.msra.mxu0 %v399
    %1558 = vmatprep.subr.mxu0 %v404
    %1559 = vmatpush1.msra.mxu0 %v403
    %1560 = vmatprep.subr.mxu0 %v408
    %1561 = vmatpush1.msra.mxu0 %v407
    %1562 = vmatprep.subr.mxu0 %v412
    %1563 = vmatpush1.msra.mxu0 %v411
    %1564 = vmatprep.subr.mxu0 %v416
    %1565 = vmatpush1.msra.mxu0 %v415
    %1566 = vmatprep.subr.mxu0 %v420
    %1567 = vmatpush1.msra.mxu0 %v419
    %1568 = vmatprep.subr.mxu0 %v424
    %1569 = vmatpush1.msra.mxu0 %v423
    %1570 = vmatprep.subr.mxu0 %v428
    %1571 = vmatpush1.msra.mxu0 %v427
    %1572 = vmatprep.subr.mxu0 %v432
    %1573 = vmatpush1.msra.mxu0 %v431
    %1574 = vmatprep.subr.mxu0 %v436
    %1575 = vmatpush1.msra.mxu0 %v435
    %1576 = vmatprep.subr.mxu0 %v440
    %1577 = vmatpush1.msra.mxu0 %v439
    %1578 = vmatprep.subr.mxu0 %v444
    %1579 = vmatpush1.msra.mxu0 %v443
    %1580 = vmatprep.subr.mxu0 %v448
    %1581 = vmatpush1.msra.mxu0 %v447
    %1582 = vmatprep.subr.mxu0 %v452
    %1583 = vmatpush1.msra.mxu0 %v451
    %1584 = vmatprep.subr.mxu0 %v456
    %1585 = vmatpush1.msra.mxu0 %v455
    %1586 = vmatprep.subr.mxu0 %v460
    %1587 = vmatpush1.msra.mxu0 %v459
    %1588 = vmatprep.subr.mxu0 %v464
    %1589 = vmatpush1.msra.mxu0 %v463
    %1590 = vmatprep.subr.mxu0 %v468
    %1591 = vmatpush1.msra.mxu0 %v467
    %1592 = vmatprep.subr.mxu0 %v472
    %1593 = vmatpush1.msra.mxu0 %v471
    %1594 = vmatprep.subr.mxu0 %v476
    %1595 = vmatpush1.msra.mxu0 %v475
    %1596 = vmatprep.subr.mxu0 %v480
    %1597 = vmatpush1.msra.mxu0 %v479
    %1598 = vmatprep.subr.mxu0 %v484
    %1599 = vmatpush1.msra.mxu0 %v483
    %1600 = vmatprep.subr.mxu0 %v488
    %1601 = vmatpush1.msra.mxu0 %v487
    %1602 = vmatprep.subr.mxu0 %v492
    %1603 = vmatpush1.msra.mxu0 %v491
    %1604 = vmatprep.subr.mxu0 %v496
    %1605 = vmatpush1.msra.mxu0 %v495
    %1606 = vmatprep.subr.mxu0 %v500
    %1607 = vmatpush1.msra.mxu0 %v499
    %1608 = vmatprep.subr.mxu0 %v504
    %1609 = vmatpush1.msra.mxu0 %v503
    %1610 = vmatprep.subr.mxu0 %v508
    %1611 = vmatpush1.msra.mxu0 %v507
    %1612 = vmatprep.subr.mxu0 %v512
    %1613 = vmatpush1.msra.mxu0 %v511
    %1614 = vmatprep.subr.mxu0 %v516
    %1615 = vmatpush1.msra.mxu0 %v515
    %1616 = vmatprep.subr.mxu0 %v520
    %1617 = vmatpush1.msra.mxu0 %v519
    %1618 = vmatprep.mubr.f32.mxu0 %v1350
    %1619 = vmatmul.mubr.f32.gmra.mrb[0].mxu0 %v1342
    %v1620 = vpop.f32.mrb[0].mxu0
    %v1621 = vadd.f32 %v1550, %v1620
    %v1622 = vpop.f32.mrb[0].mxu0
    %v1623 = vadd.f32 %v1552, %v1622
    %1624 = vdwg.mxu0
    %1625 = vmatprep.subr.mxu0 %v524
    %1626 = vmatpush1.msra.mxu0 %v523
    %1627 = vmatprep.subr.mxu0 %v528
    %1628 = vmatpush1.msra.mxu0 %v527
    %1629 = vmatprep.subr.mxu0 %v532
    %1630 = vmatpush1.msra.mxu0 %v531
    %1631 = vmatprep.subr.mxu0 %v536
    %1632 = vmatpush1.msra.mxu0 %v535
    %1633 = vmatprep.subr.mxu0 %v540
    %1634 = vmatpush1.msra.mxu0 %v539
    %1635 = vmatprep.subr.mxu0 %v544
    %1636 = vmatpush1.msra.mxu0 %v543
    %1637 = vmatprep.subr.mxu0 %v548
    %1638 = vmatpush1.msra.mxu0 %v547
    %1639 = vmatprep.subr.mxu0 %v552
    %1640 = vmatpush1.msra.mxu0 %v551
    %1641 = vmatprep.subr.mxu0 %v556
    %1642 = vmatpush1.msra.mxu0 %v555
    %1643 = vmatprep.subr.mxu0 %v560
    %1644 = vmatpush1.msra.mxu0 %v559
    %1645 = vmatprep.subr.mxu0 %v564
    %1646 = vmatpush1.msra.mxu0 %v563
    %1647 = vmatprep.subr.mxu0 %v568
    %1648 = vmatpush1.msra.mxu0 %v567
    %1649 = vmatprep.subr.mxu0 %v572
    %1650 = vmatpush1.msra.mxu0 %v571
    %1651 = vmatprep.subr.mxu0 %v576
    %1652 = vmatpush1.msra.mxu0 %v575
    %1653 = vmatprep.subr.mxu0 %v580
    %1654 = vmatpush1.msra.mxu0 %v579
    %1655 = vmatprep.subr.mxu0 %v584
    %1656 = vmatpush1.msra.mxu0 %v583
    %1657 = vmatprep.subr.mxu0 %v588
    %1658 = vmatpush1.msra.mxu0 %v587
    %1659 = vmatprep.subr.mxu0 %v592
    %1660 = vmatpush1.msra.mxu0 %v591
    %1661 = vmatprep.subr.mxu0 %v596
    %1662 = vmatpush1.msra.mxu0 %v595
    %1663 = vmatprep.subr.mxu0 %v600
    %1664 = vmatpush1.msra.mxu0 %v599
    %1665 = vmatprep.subr.mxu0 %v604
    %1666 = vmatpush1.msra.mxu0 %v603
    %1667 = vmatprep.subr.mxu0 %v608
    %1668 = vmatpush1.msra.mxu0 %v607
    %1669 = vmatprep.subr.mxu0 %v612
    %1670 = vmatpush1.msra.mxu0 %v611
    %1671 = vmatprep.subr.mxu0 %v616
    %1672 = vmatpush1.msra.mxu0 %v615
    %1673 = vmatprep.subr.mxu0 %v620
    %1674 = vmatpush1.msra.mxu0 %v619
    %1675 = vmatprep.subr.mxu0 %v624
    %1676 = vmatpush1.msra.mxu0 %v623
    %1677 = vmatprep.subr.mxu0 %v628
    %1678 = vmatpush1.msra.mxu0 %v627
    %1679 = vmatprep.subr.mxu0 %v632
    %1680 = vmatpush1.msra.mxu0 %v631
    %1681 = vmatprep.subr.mxu0 %v636
    %1682 = vmatpush1.msra.mxu0 %v635
    %1683 = vmatprep.subr.mxu0 %v640
    %1684 = vmatpush1.msra.mxu0 %v639
    %1685 = vmatprep.subr.mxu0 %v644
    %1686 = vmatpush1.msra.mxu0 %v643
    %1687 = vmatprep.subr.mxu0 %v648
    %1688 = vmatpush1.msra.mxu0 %v647
    %1689 = vmatprep.mubr.f32.mxu0 %v1351
    %1690 = vmatmul.mubr.f32.gmra.mrb[0].mxu0 %v1349
    %v1691 = vpop.f32.mrb[0].mxu0
    %v1692 = vadd.f32 %v1621, %v1691
    %v1693 = vpop.f32.mrb[0].mxu0
    %v1694 = vadd.f32 %v1623, %v1693
    %1695 = vdwg.mxu0
    %1696 = vmatprep.subr.mxu0 %v652
    %1697 = vmatpush1.msra.mxu0 %v651
    %1698 = vmatprep.subr.mxu0 %v656
    %1699 = vmatpush1.msra.mxu0 %v655
    %1700 = vmatprep.subr.mxu0 %v660
    %1701 = vmatpush1.msra.mxu0 %v659
    %1702 = vmatprep.subr.mxu0 %v664
    %1703 = vmatpush1.msra.mxu0 %v663
    %1704 = vmatprep.subr.mxu0 %v668
    %1705 = vmatpush1.msra.mxu0 %v667
    %1706 = vmatprep.subr.mxu0 %v672
    %1707 = vmatpush1.msra.mxu0 %v671
    %1708 = vmatprep.subr.mxu0 %v676
    %1709 = vmatpush1.msra.mxu0 %v675
    %1710 = vmatprep.subr.mxu0 %v680
    %1711 = vmatpush1.msra.mxu0 %v679
    %1712 = vmatprep.subr.mxu0 %v684
    %1713 = vmatpush1.msra.mxu0 %v683
    %1714 = vmatprep.subr.mxu0 %v688
    %1715 = vmatpush1.msra.mxu0 %v687
    %1716 = vmatprep.subr.mxu0 %v692
    %1717 = vmatpush1.msra.mxu0 %v691
    %1718 = vmatprep.subr.mxu0 %v696
    %1719 = vmatpush1.msra.mxu0 %v695
    %1720 = vmatprep.subr.mxu0 %v700
    %1721 = vmatpush1.msra.mxu0 %v699
    %1722 = vmatprep.subr.mxu0 %v704
    %1723 = vmatpush1.msra.mxu0 %v703
    %1724 = vmatprep.subr.mxu0 %v708
    %1725 = vmatpush1.msra.mxu0 %v707
    %1726 = vmatprep.subr.mxu0 %v712
    %1727 = vmatpush1.msra.mxu0 %v711
    %1728 = vmatprep.subr.mxu0 %v716
    %1729 = vmatpush1.msra.mxu0 %v715
    %1730 = vmatprep.subr.mxu0 %v720
    %1731 = vmatpush1.msra.mxu0 %v719
    %1732 = vmatprep.subr.mxu0 %v724
    %1733 = vmatpush1.msra.mxu0 %v723
    %1734 = vmatprep.subr.mxu0 %v728
    %1735 = vmatpush1.msra.mxu0 %v727
    %1736 = vmatprep.subr.mxu0 %v732
    %1737 = vmatpush1.msra.mxu0 %v731
    %1738 = vmatprep.subr.mxu0 %v736
    %1739 = vmatpush1.msra.mxu0 %v735
    %1740 = vmatprep.subr.mxu0 %v740
    %1741 = vmatpush1.msra.mxu0 %v739
    %1742 = vmatprep.subr.mxu0 %v744
    %1743 = vmatpush1.msra.mxu0 %v743
    %1744 = vmatprep.subr.mxu0 %v748
    %1745 = vmatpush1.msra.mxu0 %v747
    %1746 = vmatprep.subr.mxu0 %v752
    %1747 = vmatpush1.msra.mxu0 %v751
    %1748 = vmatprep.subr.mxu0 %v756
    %1749 = vmatpush1.msra.mxu0 %v755
    %1750 = vmatprep.subr.mxu0 %v760
    %1751 = vmatpush1.msra.mxu0 %v759
    %1752 = vmatprep.subr.mxu0 %v764
    %1753 = vmatpush1.msra.mxu0 %v763
    %1754 = vmatprep.subr.mxu0 %v768
    %1755 = vmatpush1.msra.mxu0 %v767
    %1756 = vmatprep.subr.mxu0 %v772
    %1757 = vmatpush1.msra.mxu0 %v771
    %1758 = vmatprep.subr.mxu0 %v776
    %1759 = vmatpush1.msra.mxu0 %v775
    %1760 = vmatprep.mubr.f32.mxu0 %v1367
    %1761 = vmatmul.mubr.f32.gmra.mrb[0].mxu0 %v1359
    %v1762 = vpop.f32.mrb[0].mxu0
    %v1763 = vadd.f32 %v1692, %v1762
    %v1764 = vpop.f32.mrb[0].mxu0
    %v1765 = vadd.f32 %v1694, %v1764
    %1766 = vdwg.mxu0
    %1767 = vmatprep.subr.mxu0 %v780
    %1768 = vmatpush1.msra.mxu0 %v779
    %1769 = vmatprep.subr.mxu0 %v784
    %1770 = vmatpush1.msra.mxu0 %v783
    %1771 = vmatprep.subr.mxu0 %v788
    %1772 = vmatpush1.msra.mxu0 %v787
    %1773 = vmatprep.subr.mxu0 %v792
    %1774 = vmatpush1.msra.mxu0 %v791
    %1775 = vmatprep.subr.mxu0 %v796
    %1776 = vmatpush1.msra.mxu0 %v795
    %1777 = vmatprep.subr.mxu0 %v800
    %1778 = vmatpush1.msra.mxu0 %v799
    %1779 = vmatprep.subr.mxu0 %v804
    %1780 = vmatpush1.msra.mxu0 %v803
    %1781 = vmatprep.subr.mxu0 %v808
    %1782 = vmatpush1.msra.mxu0 %v807
    %1783 = vmatprep.subr.mxu0 %v812
    %1784 = vmatpush1.msra.mxu0 %v811
    %1785 = vmatprep.subr.mxu0 %v816
    %1786 = vmatpush1.msra.mxu0 %v815
    %1787 = vmatprep.subr.mxu0 %v820
    %1788 = vmatpush1.msra.mxu0 %v819
    %1789 = vmatprep.subr.mxu0 %v824
    %1790 = vmatpush1.msra.mxu0 %v823
    %1791 = vmatprep.subr.mxu0 %v828
    %1792 = vmatpush1.msra.mxu0 %v827
    %1793 = vmatprep.subr.mxu0 %v832
    %1794 = vmatpush1.msra.mxu0 %v831
    %1795 = vmatprep.subr.mxu0 %v836
    %1796 = vmatpush1.msra.mxu0 %v835
    %1797 = vmatprep.subr.mxu0 %v840
    %1798 = vmatpush1.msra.mxu0 %v839
    %1799 = vmatprep.subr.mxu0 %v844
    %1800 = vmatpush1.msra.mxu0 %v843
    %1801 = vmatprep.subr.mxu0 %v848
    %1802 = vmatpush1.msra.mxu0 %v847
    %1803 = vmatprep.subr.mxu0 %v852
    %1804 = vmatpush1.msra.mxu0 %v851
    %1805 = vmatprep.subr.mxu0 %v856
    %1806 = vmatpush1.msra.mxu0 %v855
    %1807 = vmatprep.subr.mxu0 %v860
    %1808 = vmatpush1.msra.mxu0 %v859
    %1809 = vmatprep.subr.mxu0 %v864
    %1810 = vmatpush1.msra.mxu0 %v863
    %1811 = vmatprep.subr.mxu0 %v868
    %1812 = vmatpush1.msra.mxu0 %v867
    %1813 = vmatprep.subr.mxu0 %v872
    %1814 = vmatpush1.msra.mxu0 %v871
    %1815 = vmatprep.subr.mxu0 %v876
    %1816 = vmatpush1.msra.mxu0 %v875
    %1817 = vmatprep.subr.mxu0 %v880
    %1818 = vmatpush1.msra.mxu0 %v879
    %1819 = vmatprep.subr.mxu0 %v884
    %1820 = vmatpush1.msra.mxu0 %v883
    %1821 = vmatprep.subr.mxu0 %v888
    %1822 = vmatpush1.msra.mxu0 %v887
    %1823 = vmatprep.subr.mxu0 %v892
    %1824 = vmatpush1.msra.mxu0 %v891
    %1825 = vmatprep.subr.mxu0 %v896
    %1826 = vmatpush1.msra.mxu0 %v895
    %1827 = vmatprep.subr.mxu0 %v900
    %1828 = vmatpush1.msra.mxu0 %v899
    %1829 = vmatprep.subr.mxu0 %v904
    %1830 = vmatpush1.msra.mxu0 %v903
    %1831 = vmatprep.mubr.f32.mxu0 %v1368
    %1832 = vmatmul.mubr.f32.gmra.mrb[0].mxu0 %v1366
    %v1833 = vpop.f32.mrb[0].mxu0
    %v1834 = vadd.f32 %v1763, %v1833
    %v1835 = vpop.f32.mrb[0].mxu0
    %v1836 = vadd.f32 %v1765, %v1835
    %1837 = vdwg.mxu0
    %1838 = vmatprep.subr.mxu0 %v908
    %1839 = vmatpush1.msra.mxu0 %v907
    %1840 = vmatprep.subr.mxu0 %v912
    %1841 = vmatpush1.msra.mxu0 %v911
    %1842 = vmatprep.subr.mxu0 %v916
    %1843 = vmatpush1.msra.mxu0 %v915
    %1844 = vmatprep.subr.mxu0 %v920
    %1845 = vmatpush1.msra.mxu0 %v919
    %1846 = vmatprep.subr.mxu0 %v924
    %1847 = vmatpush1.msra.mxu0 %v923
    %1848 = vmatprep.subr.mxu0 %v928
    %1849 = vmatpush1.msra.mxu0 %v927
    %1850 = vmatprep.subr.mxu0 %v932
    %1851 = vmatpush1.msra.mxu0 %v931
    %1852 = vmatprep.subr.mxu0 %v936
    %1853 = vmatpush1.msra.mxu0 %v935
    %1854 = vmatprep.subr.mxu0 %v940
    %1855 = vmatpush1.msra.mxu0 %v939
    %1856 = vmatprep.subr.mxu0 %v944
    %1857 = vmatpush1.msra.mxu0 %v943
    %1858 = vmatprep.subr.mxu0 %v948
    %1859 = vmatpush1.msra.mxu0 %v947
    %1860 = vmatprep.subr.mxu0 %v952
    %1861 = vmatpush1.msra.mxu0 %v951
    %1862 = vmatprep.subr.mxu0 %v956
    %1863 = vmatpush1.msra.mxu0 %v955
    %1864 = vmatprep.subr.mxu0 %v960
    %1865 = vmatpush1.msra.mxu0 %v959
    %1866 = vmatprep.subr.mxu0 %v964
    %1867 = vmatpush1.msra.mxu0 %v963
    %1868 = vmatprep.subr.mxu0 %v968
    %1869 = vmatpush1.msra.mxu0 %v967
    %1870 = vmatprep.subr.mxu0 %v972
    %1871 = vmatpush1.msra.mxu0 %v971
    %1872 = vmatprep.subr.mxu0 %v976
    %1873 = vmatpush1.msra.mxu0 %v975
    %1874 = vmatprep.subr.mxu0 %v980
    %1875 = vmatpush1.msra.mxu0 %v979
    %1876 = vmatprep.subr.mxu0 %v984
    %1877 = vmatpush1.msra.mxu0 %v983
    %1878 = vmatprep.subr.mxu0 %v988
    %1879 = vmatpush1.msra.mxu0 %v987
    %1880 = vmatprep.subr.mxu0 %v992
    %1881 = vmatpush1.msra.mxu0 %v991
    %1882 = vmatprep.subr.mxu0 %v996
    %1883 = vmatpush1.msra.mxu0 %v995
    %1884 = vmatprep.subr.mxu0 %v1000
    %1885 = vmatpush1.msra.mxu0 %v999
    %1886 = vmatprep.subr.mxu0 %v1004
    %1887 = vmatpush1.msra.mxu0 %v1003
    %1888 = vmatprep.subr.mxu0 %v1008
    %1889 = vmatpush1.msra.mxu0 %v1007
    %1890 = vmatprep.subr.mxu0 %v1012
    %1891 = vmatpush1.msra.mxu0 %v1011
    %1892 = vmatprep.subr.mxu0 %v1016
    %1893 = vmatpush1.msra.mxu0 %v1015
    %1894 = vmatprep.subr.mxu0 %v1020
    %1895 = vmatpush1.msra.mxu0 %v1019
    %1896 = vmatprep.subr.mxu0 %v1024
    %1897 = vmatpush1.msra.mxu0 %v1023
    %1898 = vmatprep.subr.mxu0 %v1028
    %1899 = vmatpush1.msra.mxu0 %v1027
    %1900 = vmatprep.subr.mxu0 %v1032
    %1901 = vmatpush1.msra.mxu0 %v1031
    %1902 = vmatprep.mubr.f32.mxu0 %v1384
    %1903 = vmatmul.mubr.f32.gmra.mrb[0].mxu0 %v1376
    %v1904 = vpop.f32.mrb[0].mxu0
    %v1905 = vadd.f32 %v1834, %v1904
    %v1906 = vpop.f32.mrb[0].mxu0
    %v1907 = vadd.f32 %v1836, %v1906
    %1908 = vdwg.mxu0
    %1909 = vmatprep.subr.mxu0 %v1036
    %1910 = vmatpush1.msra.mxu0 %v1035
    %1911 = vmatprep.subr.mxu0 %v1040
    %1912 = vmatpush1.msra.mxu0 %v1039
    %1913 = vmatprep.subr.mxu0 %v1044
    %1914 = vmatpush1.msra.mxu0 %v1043
    %1915 = vmatprep.subr.mxu0 %v1048
    %1916 = vmatpush1.msra.mxu0 %v1047
    %1917 = vmatprep.subr.mxu0 %v1052
    %1918 = vmatpush1.msra.mxu0 %v1051
    %1919 = vmatprep.subr.mxu0 %v1056
    %1920 = vmatpush1.msra.mxu0 %v1055
    %1921 = vmatprep.subr.mxu0 %v1060
    %1922 = vmatpush1.msra.mxu0 %v1059
    %1923 = vmatprep.subr.mxu0 %v1064
    %1924 = vmatpush1.msra.mxu0 %v1063
    %1925 = vmatprep.subr.mxu0 %v1068
    %1926 = vmatpush1.msra.mxu0 %v1067
    %1927 = vmatprep.subr.mxu0 %v1072
    %1928 = vmatpush1.msra.mxu0 %v1071
    %1929 = vmatprep.subr.mxu0 %v1076
    %1930 = vmatpush1.msra.mxu0 %v1075
    %1931 = vmatprep.subr.mxu0 %v1080
    %1932 = vmatpush1.msra.mxu0 %v1079
    %1933 = vmatprep.subr.mxu0 %v1084
    %1934 = vmatpush1.msra.mxu0 %v1083
    %1935 = vmatprep.subr.mxu0 %v1088
    %1936 = vmatpush1.msra.mxu0 %v1087
    %1937 = vmatprep.subr.mxu0 %v1092
    %1938 = vmatpush1.msra.mxu0 %v1091
    %1939 = vmatprep.subr.mxu0 %v1096
    %1940 = vmatpush1.msra.mxu0 %v1095
    %1941 = vmatprep.subr.mxu0 %v1100
    %1942 = vmatpush1.msra.mxu0 %v1099
    %1943 = vmatprep.subr.mxu0 %v1104
    %1944 = vmatpush1.msra.mxu0 %v1103
    %1945 = vmatprep.subr.mxu0 %v1108
    %1946 = vmatpush1.msra.mxu0 %v1107
    %1947 = vmatprep.subr.mxu0 %v1112
    %1948 = vmatpush1.msra.mxu0 %v1111
    %1949 = vmatprep.subr.mxu0 %v1116
    %1950 = vmatpush1.msra.mxu0 %v1115
    %1951 = vmatprep.subr.mxu0 %v1120
    %1952 = vmatpush1.msra.mxu0 %v1119
    %1953 = vmatprep.subr.mxu0 %v1124
    %1954 = vmatpush1.msra.mxu0 %v1123
    %1955 = vmatprep.subr.mxu0 %v1128
    %1956 = vmatpush1.msra.mxu0 %v1127
    %1957 = vmatprep.subr.mxu0 %v1132
    %1958 = vmatpush1.msra.mxu0 %v1131
    %1959 = vmatprep.subr.mxu0 %v1136
    %1960 = vmatpush1.msra.mxu0 %v1135
    %1961 = vmatprep.subr.mxu0 %v1140
    %1962 = vmatpush1.msra.mxu0 %v1139
    %1963 = vmatprep.subr.mxu0 %v1144
    %1964 = vmatpush1.msra.mxu0 %v1143
    %1965 = vmatprep.subr.mxu0 %v1148
    %1966 = vmatpush1.msra.mxu0 %v1147
    %1967 = vmatprep.subr.mxu0 %v1152
    %1968 = vmatpush1.msra.mxu0 %v1151
    %1969 = vmatprep.subr.mxu0 %v1156
    %1970 = vmatpush1.msra.mxu0 %v1155
    %1971 = vmatprep.subr.mxu0 %v1160
    %1972 = vmatpush1.msra.mxu0 %v1159
    %1973 = vmatprep.mubr.f32.mxu0 %v1385
    %1974 = vmatmul.mubr.f32.gmra.mrb[0].mxu0 %v1383
    %v1975 = vpop.f32.mrb[0].mxu0
    %v1976 = vadd.f32 %v1905, %v1975
    %v1977 = vpop.f32.mrb[0].mxu0
    %v1978 = vadd.f32 %v1907, %v1977
    %1979 = vdwg.mxu0
    %1980 = vmatprep.subr.mxu0 %v1164
    %1981 = vmatpush1.msra.mxu0 %v1163
    %1982 = vmatprep.subr.mxu0 %v1168
    %1983 = vmatpush1.msra.mxu0 %v1167
    %1984 = vmatprep.subr.mxu0 %v1172
    %1985 = vmatpush1.msra.mxu0 %v1171
    %1986 = vmatprep.subr.mxu0 %v1176
    %1987 = vmatpush1.msra.mxu0 %v1175
    %1988 = vmatprep.subr.mxu0 %v1180
    %1989 = vmatpush1.msra.mxu0 %v1179
    %1990 = vmatprep.subr.mxu0 %v1184
    %1991 = vmatpush1.msra.mxu0 %v1183
    %1992 = vmatprep.subr.mxu0 %v1188
    %1993 = vmatpush1.msra.mxu0 %v1187
    %1994 = vmatprep.subr.mxu0 %v1192
    %1995 = vmatpush1.msra.mxu0 %v1191
    %1996 = vmatprep.subr.mxu0 %v1196
    %1997 = vmatpush1.msra.mxu0 %v1195
    %1998 = vmatprep.subr.mxu0 %v1200
    %1999 = vmatpush1.msra.mxu0 %v1199
    %2000 = vmatprep.subr.mxu0 %v1204
    %2001 = vmatpush1.msra.mxu0 %v1203
    %2002 = vmatprep.subr.mxu0 %v1208
    %2003 = vmatpush1.msra.mxu0 %v1207
    %2004 = vmatprep.subr.mxu0 %v1212
    %2005 = vmatpush1.msra.mxu0 %v1211
    %2006 = vmatprep.subr.mxu0 %v1216
    %2007 = vmatpush1.msra.mxu0 %v1215
    %2008 = vmatprep.subr.mxu0 %v1220
    %2009 = vmatpush1.msra.mxu0 %v1219
    %2010 = vmatprep.subr.mxu0 %v1224
    %2011 = vmatpush1.msra.mxu0 %v1223
    %2012 = vmatprep.subr.mxu0 %v1228
    %2013 = vmatpush1.msra.mxu0 %v1227
    %2014 = vmatprep.subr.mxu0 %v1232
    %2015 = vmatpush1.msra.mxu0 %v1231
    %2016 = vmatprep.subr.mxu0 %v1236
    %2017 = vmatpush1.msra.mxu0 %v1235
    %2018 = vmatprep.subr.mxu0 %v1240
    %2019 = vmatpush1.msra.mxu0 %v1239
    %2020 = vmatprep.subr.mxu0 %v1244
    %2021 = vmatpush1.msra.mxu0 %v1243
    %2022 = vmatprep.subr.mxu0 %v1248
    %2023 = vmatpush1.msra.mxu0 %v1247
    %2024 = vmatprep.subr.mxu0 %v1252
    %2025 = vmatpush1.msra.mxu0 %v1251
    %2026 = vmatprep.subr.mxu0 %v1256
    %2027 = vmatpush1.msra.mxu0 %v1255
    %2028 = vmatprep.subr.mxu0 %v1260
    %2029 = vmatpush1.msra.mxu0 %v1259
    %2030 = vmatprep.subr.mxu0 %v1264
    %2031 = vmatpush1.msra.mxu0 %v1263
    %2032 = vmatprep.subr.mxu0 %v1268
    %2033 = vmatpush1.msra.mxu0 %v1267
    %2034 = vmatprep.subr.mxu0 %v1272
    %2035 = vmatpush1.msra.mxu0 %v1271
    %2036 = vmatprep.subr.mxu0 %v1276
    %2037 = vmatpush1.msra.mxu0 %v1275
    %2038 = vmatprep.subr.mxu0 %v1280
    %2039 = vmatpush1.msra.mxu0 %v1279
    %2040 = vmatprep.subr.mxu0 %v1284
    %2041 = vmatpush1.msra.mxu0 %v1283
    %2042 = vmatprep.subr.mxu0 %v1288
    %2043 = vmatpush1.msra.mxu0 %v1287
    %2044 = vmatprep.mubr.f32.mxu0 %v1393
    %2045 = vmatmul.mubr.f32.gmra.mrb[0].mxu0 %v1392
    %v2046 = vpop.f32.mrb[0].mxu0
    %v2047 = vadd.f32 %v1976, %v2046
    %v2048 = vpop.f32.mrb[0].mxu0
    %v2049 = vadd.f32 %v1978, %v2048
    %2050 = vdwg.mxu0
    %2051 = vmatprep.subr.mxu0 %v142
    %2052 = vmatpush1.msra.mxu0 %v141
    %2053 = vmatprep.subr.mxu0 %v146
    %2054 = vmatpush1.msra.mxu0 %v145
    %2055 = vmatprep.subr.mxu0 %v150
    %2056 = vmatpush1.msra.mxu0 %v149
    %2057 = vmatprep.subr.mxu0 %v154
    %2058 = vmatpush1.msra.mxu0 %v153
    %2059 = vmatprep.subr.mxu0 %v158
    %2060 = vmatpush1.msra.mxu0 %v157
    %2061 = vmatprep.subr.mxu0 %v162
    %2062 = vmatpush1.msra.mxu0 %v161
    %2063 = vmatprep.subr.mxu0 %v166
    %2064 = vmatpush1.msra.mxu0 %v165
    %2065 = vmatprep.subr.mxu0 %v170
    %2066 = vmatpush1.msra.mxu0 %v169
    %2067 = vmatprep.subr.mxu0 %v174
    %2068 = vmatpush1.msra.mxu0 %v173
    %2069 = vmatprep.subr.mxu0 %v178
    %2070 = vmatpush1.msra.mxu0 %v177
    %2071 = vmatprep.subr.mxu0 %v182
    %2072 = vmatpush1.msra.mxu0 %v181
    %2073 = vmatprep.subr.mxu0 %v186
    %2074 = vmatpush1.msra.mxu0 %v185
    %2075 = vmatprep.subr.mxu0 %v190
    %2076 = vmatpush1.msra.mxu0 %v189
    %2077 = vmatprep.subr.mxu0 %v194
    %2078 = vmatpush1.msra.mxu0 %v193
    %2079 = vmatprep.subr.mxu0 %v198
    %2080 = vmatpush1.msra.mxu0 %v197
    %2081 = vmatprep.subr.mxu0 %v202
    %2082 = vmatpush1.msra.mxu0 %v201
    %2083 = vmatprep.subr.mxu0 %v206
    %2084 = vmatpush1.msra.mxu0 %v205
    %2085 = vmatprep.subr.mxu0 %v210
    %2086 = vmatpush1.msra.mxu0 %v209
    %2087 = vmatprep.subr.mxu0 %v214
    %2088 = vmatpush1.msra.mxu0 %v213
    %2089 = vmatprep.subr.mxu0 %v218
    %2090 = vmatpush1.msra.mxu0 %v217
    %2091 = vmatprep.subr.mxu0 %v222
    %2092 = vmatpush1.msra.mxu0 %v221
    %2093 = vmatprep.subr.mxu0 %v226
    %2094 = vmatpush1.msra.mxu0 %v225
    %2095 = vmatprep.subr.mxu0 %v230
    %2096 = vmatpush1.msra.mxu0 %v229
    %2097 = vmatprep.subr.mxu0 %v234
    %2098 = vmatpush1.msra.mxu0 %v233
    %2099 = vmatprep.subr.mxu0 %v238
    %2100 = vmatpush1.msra.mxu0 %v237
    %2101 = vmatprep.subr.mxu0 %v242
    %2102 = vmatpush1.msra.mxu0 %v241
    %2103 = vmatprep.subr.mxu0 %v246
    %2104 = vmatpush1.msra.mxu0 %v245
    %2105 = vmatprep.subr.mxu0 %v250
    %2106 = vmatpush1.msra.mxu0 %v249
    %2107 = vmatprep.subr.mxu0 %v254
    %2108 = vmatpush1.msra.mxu0 %v253
    %2109 = vmatprep.subr.mxu0 %v258
    %2110 = vmatpush1.msra.mxu0 %v257
    %2111 = vmatprep.subr.mxu0 %v262
    %2112 = vmatpush1.msra.mxu0 %v261
    %2113 = vmatprep.subr.mxu0 %v266
    %2114 = vmatpush1.msra.mxu0 %v265
    %2115 = vmatprep.mubr.f32.mxu0 %v1333
    %2116 = vmatmul.mubr.f32.gmra.mrb[0].mxu0 %v1325
    %v2117 = vpop.f32.mrb[0].mxu0
    %v2118 = vadd.f32 %v1304, %v2117
    %v2119 = vpop.f32.mrb[0].mxu0
    %v2120 = vadd.f32 %v1308, %v2119
    %2121 = vdwg.mxu0
    %2122 = vmatprep.subr.mxu0 %v270
    %2123 = vmatpush1.msra.mxu0 %v269
    %2124 = vmatprep.subr.mxu0 %v274
    %2125 = vmatpush1.msra.mxu0 %v273
    %2126 = vmatprep.subr.mxu0 %v278
    %2127 = vmatpush1.msra.mxu0 %v277
    %2128 = vmatprep.subr.mxu0 %v282
    %2129 = vmatpush1.msra.mxu0 %v281
    %2130 = vmatprep.subr.mxu0 %v286
    %2131 = vmatpush1.msra.mxu0 %v285
    %2132 = vmatprep.subr.mxu0 %v290
    %2133 = vmatpush1.msra.mxu0 %v289
    %2134 = vmatprep.subr.mxu0 %v294
    %2135 = vmatpush1.msra.mxu0 %v293
    %2136 = vmatprep.subr.mxu0 %v298
    %2137 = vmatpush1.msra.mxu0 %v297
    %2138 = vmatprep.subr.mxu0 %v302
    %2139 = vmatpush1.msra.mxu0 %v301
    %2140 = vmatprep.subr.mxu0 %v306
    %2141 = vmatpush1.msra.mxu0 %v305
    %2142 = vmatprep.subr.mxu0 %v310
    %2143 = vmatpush1.msra.mxu0 %v309
    %2144 = vmatprep.subr.mxu0 %v314
    %2145 = vmatpush1.msra.mxu0 %v313
    %2146 = vmatprep.subr.mxu0 %v318
    %2147 = vmatpush1.msra.mxu0 %v317
    %2148 = vmatprep.subr.mxu0 %v322
    %2149 = vmatpush1.msra.mxu0 %v321
    %2150 = vmatprep.subr.mxu0 %v326
    %2151 = vmatpush1.msra.mxu0 %v325
    %2152 = vmatprep.subr.mxu0 %v330
    %2153 = vmatpush1.msra.mxu0 %v329
    %2154 = vmatprep.subr.mxu0 %v334
    %2155 = vmatpush1.msra.mxu0 %v333
    %2156 = vmatprep.subr.mxu0 %v338
    %2157 = vmatpush1.msra.mxu0 %v337
    %2158 = vmatprep.subr.mxu0 %v342
    %2159 = vmatpush1.msra.mxu0 %v341
    %2160 = vmatprep.subr.mxu0 %v346
    %2161 = vmatpush1.msra.mxu0 %v345
    %2162 = vmatprep.subr.mxu0 %v350
    %2163 = vmatpush1.msra.mxu0 %v349
    %2164 = vmatprep.subr.mxu0 %v354
    %2165 = vmatpush1.msra.mxu0 %v353
    %2166 = vmatprep.subr.mxu0 %v358
    %2167 = vmatpush1.msra.mxu0 %v357
    %2168 = vmatprep.subr.mxu0 %v362
    %2169 = vmatpush1.msra.mxu0 %v361
    %2170 = vmatprep.subr.mxu0 %v366
    %2171 = vmatpush1.msra.mxu0 %v365
    %2172 = vmatprep.subr.mxu0 %v370
    %2173 = vmatpush1.msra.mxu0 %v369
    %2174 = vmatprep.subr.mxu0 %v374
    %2175 = vmatpush1.msra.mxu0 %v373
    %2176 = vmatprep.subr.mxu0 %v378
    %2177 = vmatpush1.msra.mxu0 %v377
    %2178 = vmatprep.subr.mxu0 %v382
    %2179 = vmatpush1.msra.mxu0 %v381
    %2180 = vmatprep.subr.mxu0 %v386
    %2181 = vmatpush1.msra.mxu0 %v385
    %2182 = vmatprep.subr.mxu0 %v390
    %2183 = vmatpush1.msra.mxu0 %v389
    %2184 = vmatprep.subr.mxu0 %v394
    %2185 = vmatpush1.msra.mxu0 %v393
    %2186 = vmatprep.mubr.f32.mxu0 %v1334
    %2187 = vmatmul.mubr.f32.gmra.mrb[0].mxu0 %v1332
    %v2188 = vpop.f32.mrb[0].mxu0
    %v2189 = vadd.f32 %v2118, %v2188
    %v2190 = vpop.f32.mrb[0].mxu0
    %v2191 = vadd.f32 %v2120, %v2190
    %2192 = vdwg.mxu0
    %2193 = vmatprep.subr.mxu0 %v398
    %2194 = vmatpush1.msra.mxu0 %v397
    %2195 = vmatprep.subr.mxu0 %v402
    %2196 = vmatpush1.msra.mxu0 %v401
    %2197 = vmatprep.subr.mxu0 %v406
    %2198 = vmatpush1.msra.mxu0 %v405
    %2199 = vmatprep.subr.mxu0 %v410
    %2200 = vmatpush1.msra.mxu0 %v409
    %2201 = vmatprep.subr.mxu0 %v414
    %2202 = vmatpush1.msra.mxu0 %v413
    %2203 = vmatprep.subr.mxu0 %v418
    %2204 = vmatpush1.msra.mxu0 %v417
    %2205 = vmatprep.subr.mxu0 %v422
    %2206 = vmatpush1.msra.mxu0 %v421
    %2207 = vmatprep.subr.mxu0 %v426
    %2208 = vmatpush1.msra.mxu0 %v425
    %2209 = vmatprep.subr.mxu0 %v430
    %2210 = vmatpush1.msra.mxu0 %v429
    %2211 = vmatprep.subr.mxu0 %v434
    %2212 = vmatpush1.msra.mxu0 %v433
    %2213 = vmatprep.subr.mxu0 %v438
    %2214 = vmatpush1.msra.mxu0 %v437
    %2215 = vmatprep.subr.mxu0 %v442
    %2216 = vmatpush1.msra.mxu0 %v441
    %2217 = vmatprep.subr.mxu0 %v446
    %2218 = vmatpush1.msra.mxu0 %v445
    %2219 = vmatprep.subr.mxu0 %v450
    %2220 = vmatpush1.msra.mxu0 %v449
    %2221 = vmatprep.subr.mxu0 %v454
    %2222 = vmatpush1.msra.mxu0 %v453
    %2223 = vmatprep.subr.mxu0 %v458
    %2224 = vmatpush1.msra.mxu0 %v457
    %2225 = vmatprep.subr.mxu0 %v462
    %2226 = vmatpush1.msra.mxu0 %v461
    %2227 = vmatprep.subr.mxu0 %v466
    %2228 = vmatpush1.msra.mxu0 %v465
    %2229 = vmatprep.subr.mxu0 %v470
    %2230 = vmatpush1.msra.mxu0 %v469
    %2231 = vmatprep.subr.mxu0 %v474
    %2232 = vmatpush1.msra.mxu0 %v473
    %2233 = vmatprep.subr.mxu0 %v478
    %2234 = vmatpush1.msra.mxu0 %v477
    %2235 = vmatprep.subr.mxu0 %v482
    %2236 = vmatpush1.msra.mxu0 %v481
    %2237 = vmatprep.subr.mxu0 %v486
    %2238 = vmatpush1.msra.mxu0 %v485
    %2239 = vmatprep.subr.mxu0 %v490
    %2240 = vmatpush1.msra.mxu0 %v489
    %2241 = vmatprep.subr.mxu0 %v494
    %2242 = vmatpush1.msra.mxu0 %v493
    %2243 = vmatprep.subr.mxu0 %v498
    %2244 = vmatpush1.msra.mxu0 %v497
    %2245 = vmatprep.subr.mxu0 %v502
    %2246 = vmatpush1.msra.mxu0 %v501
    %2247 = vmatprep.subr.mxu0 %v506
    %2248 = vmatpush1.msra.mxu0 %v505
    %2249 = vmatprep.subr.mxu0 %v510
    %2250 = vmatpush1.msra.mxu0 %v509
    %2251 = vmatprep.subr.mxu0 %v514
    %2252 = vmatpush1.msra.mxu0 %v513
    %2253 = vmatprep.subr.mxu0 %v518
    %2254 = vmatpush1.msra.mxu0 %v517
    %2255 = vmatprep.subr.mxu0 %v522
    %2256 = vmatpush1.msra.mxu0 %v521
    %2257 = vmatprep.mubr.f32.mxu0 %v1350
    %2258 = vmatmul.mubr.f32.gmra.mrb[0].mxu0 %v1342
    %v2259 = vpop.f32.mrb[0].mxu0
    %v2260 = vadd.f32 %v2189, %v2259
    %v2261 = vpop.f32.mrb[0].mxu0
    %v2262 = vadd.f32 %v2191, %v2261
    %2263 = vdwg.mxu0
    %2264 = vmatprep.subr.mxu0 %v526
    %2265 = vmatpush1.msra.mxu0 %v525
    %2266 = vmatprep.subr.mxu0 %v530
    %2267 = vmatpush1.msra.mxu0 %v529
    %2268 = vmatprep.subr.mxu0 %v534
    %2269 = vmatpush1.msra.mxu0 %v533
    %2270 = vmatprep.subr.mxu0 %v538
    %2271 = vmatpush1.msra.mxu0 %v537
    %2272 = vmatprep.subr.mxu0 %v542
    %2273 = vmatpush1.msra.mxu0 %v541
    %2274 = vmatprep.subr.mxu0 %v546
    %2275 = vmatpush1.msra.mxu0 %v545
    %2276 = vmatprep.subr.mxu0 %v550
    %2277 = vmatpush1.msra.mxu0 %v549
    %2278 = vmatprep.subr.mxu0 %v554
    %2279 = vmatpush1.msra.mxu0 %v553
    %2280 = vmatprep.subr.mxu0 %v558
    %2281 = vmatpush1.msra.mxu0 %v557
    %2282 = vmatprep.subr.mxu0 %v562
    %2283 = vmatpush1.msra.mxu0 %v561
    %2284 = vmatprep.subr.mxu0 %v566
    %2285 = vmatpush1.msra.mxu0 %v565
    %2286 = vmatprep.subr.mxu0 %v570
    %2287 = vmatpush1.msra.mxu0 %v569
    %2288 = vmatprep.subr.mxu0 %v574
    %2289 = vmatpush1.msra.mxu0 %v573
    %2290 = vmatprep.subr.mxu0 %v578
    %2291 = vmatpush1.msra.mxu0 %v577
    %2292 = vmatprep.subr.mxu0 %v582
    %2293 = vmatpush1.msra.mxu0 %v581
    %2294 = vmatprep.subr.mxu0 %v586
    %2295 = vmatpush1.msra.mxu0 %v585
    %2296 = vmatprep.subr.mxu0 %v590
    %2297 = vmatpush1.msra.mxu0 %v589
    %2298 = vmatprep.subr.mxu0 %v594
    %2299 = vmatpush1.msra.mxu0 %v593
    %2300 = vmatprep.subr.mxu0 %v598
    %2301 = vmatpush1.msra.mxu0 %v597
    %2302 = vmatprep.subr.mxu0 %v602
    %2303 = vmatpush1.msra.mxu0 %v601
    %2304 = vmatprep.subr.mxu0 %v606
    %2305 = vmatpush1.msra.mxu0 %v605
    %2306 = vmatprep.subr.mxu0 %v610
    %2307 = vmatpush1.msra.mxu0 %v609
    %2308 = vmatprep.subr.mxu0 %v614
    %2309 = vmatpush1.msra.mxu0 %v613
    %2310 = vmatprep.subr.mxu0 %v618
    %2311 = vmatpush1.msra.mxu0 %v617
    %2312 = vmatprep.subr.mxu0 %v622
    %2313 = vmatpush1.msra.mxu0 %v621
    %2314 = vmatprep.subr.mxu0 %v626
    %2315 = vmatpush1.msra.mxu0 %v625
    %2316 = vmatprep.subr.mxu0 %v630
    %2317 = vmatpush1.msra.mxu0 %v629
    %2318 = vmatprep.subr.mxu0 %v634
    %2319 = vmatpush1.msra.mxu0 %v633
    %2320 = vmatprep.subr.mxu0 %v638
    %2321 = vmatpush1.msra.mxu0 %v637
    %2322 = vmatprep.subr.mxu0 %v642
    %2323 = vmatpush1.msra.mxu0 %v641
    %2324 = vmatprep.subr.mxu0 %v646
    %2325 = vmatpush1.msra.mxu0 %v645
    %2326 = vmatprep.subr.mxu0 %v650
    %2327 = vmatpush1.msra.mxu0 %v649
    %2328 = vmatprep.mubr.f32.mxu0 %v1351
    %2329 = vmatmul.mubr.f32.gmra.mrb[0].mxu0 %v1349
    %v2330 = vpop.f32.mrb[0].mxu0
    %v2331 = vadd.f32 %v2260, %v2330
    %v2332 = vpop.f32.mrb[0].mxu0
    %v2333 = vadd.f32 %v2262, %v2332
    %2334 = vdwg.mxu0
    %2335 = vmatprep.subr.mxu0 %v654
    %2336 = vmatpush1.msra.mxu0 %v653
    %2337 = vmatprep.subr.mxu0 %v658
    %2338 = vmatpush1.msra.mxu0 %v657
    %2339 = vmatprep.subr.mxu0 %v662
    %2340 = vmatpush1.msra.mxu0 %v661
    %2341 = vmatprep.subr.mxu0 %v666
    %2342 = vmatpush1.msra.mxu0 %v665
    %2343 = vmatprep.subr.mxu0 %v670
    %2344 = vmatpush1.msra.mxu0 %v669
    %2345 = vmatprep.subr.mxu0 %v674
    %2346 = vmatpush1.msra.mxu0 %v673
    %2347 = vmatprep.subr.mxu0 %v678
    %2348 = vmatpush1.msra.mxu0 %v677
    %2349 = vmatprep.subr.mxu0 %v682
    %2350 = vmatpush1.msra.mxu0 %v681
    %2351 = vmatprep.subr.mxu0 %v686
    %2352 = vmatpush1.msra.mxu0 %v685
    %2353 = vmatprep.subr.mxu0 %v690
    %2354 = vmatpush1.msra.mxu0 %v689
    %2355 = vmatprep.subr.mxu0 %v694
    %2356 = vmatpush1.msra.mxu0 %v693
    %2357 = vmatprep.subr.mxu0 %v698
    %2358 = vmatpush1.msra.mxu0 %v697
    %2359 = vmatprep.subr.mxu0 %v702
    %2360 = vmatpush1.msra.mxu0 %v701
    %2361 = vmatprep.subr.mxu0 %v706
    %2362 = vmatpush1.msra.mxu0 %v705
    %2363 = vmatprep.subr.mxu0 %v710
    %2364 = vmatpush1.msra.mxu0 %v709
    %2365 = vmatprep.subr.mxu0 %v714
    %2366 = vmatpush1.msra.mxu0 %v713
    %2367 = vmatprep.subr.mxu0 %v718
    %2368 = vmatpush1.msra.mxu0 %v717
    %2369 = vmatprep.subr.mxu0 %v722
    %2370 = vmatpush1.msra.mxu0 %v721
    %2371 = vmatprep.subr.mxu0 %v726
    %2372 = vmatpush1.msra.mxu0 %v725
    %2373 = vmatprep.subr.mxu0 %v730
    %2374 = vmatpush1.msra.mxu0 %v729
    %2375 = vmatprep.subr.mxu0 %v734
    %2376 = vmatpush1.msra.mxu0 %v733
    %2377 = vmatprep.subr.mxu0 %v738
    %2378 = vmatpush1.msra.mxu0 %v737
    %2379 = vmatprep.subr.mxu0 %v742
    %2380 = vmatpush1.msra.mxu0 %v741
    %2381 = vmatprep.subr.mxu0 %v746
    %2382 = vmatpush1.msra.mxu0 %v745
    %2383 = vmatprep.subr.mxu0 %v750
    %2384 = vmatpush1.msra.mxu0 %v749
    %2385 = vmatprep.subr.mxu0 %v754
    %2386 = vmatpush1.msra.mxu0 %v753
    %2387 = vmatprep.subr.mxu0 %v758
    %2388 = vmatpush1.msra.mxu0 %v757
    %2389 = vmatprep.subr.mxu0 %v762
    %2390 = vmatpush1.msra.mxu0 %v761
    %2391 = vmatprep.subr.mxu0 %v766
    %2392 = vmatpush1.msra.mxu0 %v765
    %2393 = vmatprep.subr.mxu0 %v770
    %2394 = vmatpush1.msra.mxu0 %v769
    %2395 = vmatprep.subr.mxu0 %v774
    %2396 = vmatpush1.msra.mxu0 %v773
    %2397 = vmatprep.subr.mxu0 %v778
    %2398 = vmatpush1.msra.mxu0 %v777
    %2399 = vmatprep.mubr.f32.mxu0 %v1367
    %2400 = vmatmul.mubr.f32.gmra.mrb[0].mxu0 %v1359
    %v2401 = vpop.f32.mrb[0].mxu0
    %v2402 = vadd.f32 %v2331, %v2401
    %v2403 = vpop.f32.mrb[0].mxu0
    %v2404 = vadd.f32 %v2333, %v2403
    %2405 = vdwg.mxu0
    %2406 = vmatprep.subr.mxu0 %v782
    %2407 = vmatpush1.msra.mxu0 %v781
    %2408 = vmatprep.subr.mxu0 %v786
    %2409 = vmatpush1.msra.mxu0 %v785
    %2410 = vmatprep.subr.mxu0 %v790
    %2411 = vmatpush1.msra.mxu0 %v789
    %2412 = vmatprep.subr.mxu0 %v794
    %2413 = vmatpush1.msra.mxu0 %v793
    %2414 = vmatprep.subr.mxu0 %v798
    %2415 = vmatpush1.msra.mxu0 %v797
    %2416 = vmatprep.subr.mxu0 %v802
    %2417 = vmatpush1.msra.mxu0 %v801
    %2418 = vmatprep.subr.mxu0 %v806
    %2419 = vmatpush1.msra.mxu0 %v805
    %2420 = vmatprep.subr.mxu0 %v810
    %2421 = vmatpush1.msra.mxu0 %v809
    %2422 = vmatprep.subr.mxu0 %v814
    %2423 = vmatpush1.msra.mxu0 %v813
    %2424 = vmatprep.subr.mxu0 %v818
    %2425 = vmatpush1.msra.mxu0 %v817
    %2426 = vmatprep.subr.mxu0 %v822
    %2427 = vmatpush1.msra.mxu0 %v821
    %2428 = vmatprep.subr.mxu0 %v826
    %2429 = vmatpush1.msra.mxu0 %v825
    %2430 = vmatprep.subr.mxu0 %v830
    %2431 = vmatpush1.msra.mxu0 %v829
    %2432 = vmatprep.subr.mxu0 %v834
    %2433 = vmatpush1.msra.mxu0 %v833
    %2434 = vmatprep.subr.mxu0 %v838
    %2435 = vmatpush1.msra.mxu0 %v837
    %2436 = vmatprep.subr.mxu0 %v842
    %2437 = vmatpush1.msra.mxu0 %v841
    %2438 = vmatprep.subr.mxu0 %v846
    %2439 = vmatpush1.msra.mxu0 %v845
    %2440 = vmatprep.subr.mxu0 %v850
    %2441 = vmatpush1.msra.mxu0 %v849
    %2442 = vmatprep.subr.mxu0 %v854
    %2443 = vmatpush1.msra.mxu0 %v853
    %2444 = vmatprep.subr.mxu0 %v858
    %2445 = vmatpush1.msra.mxu0 %v857
    %2446 = vmatprep.subr.mxu0 %v862
    %2447 = vmatpush1.msra.mxu0 %v861
    %2448 = vmatprep.subr.mxu0 %v866
    %2449 = vmatpush1.msra.mxu0 %v865
    %2450 = vmatprep.subr.mxu0 %v870
    %2451 = vmatpush1.msra.mxu0 %v869
    %2452 = vmatprep.subr.mxu0 %v874
    %2453 = vmatpush1.msra.mxu0 %v873
    %2454 = vmatprep.subr.mxu0 %v878
    %2455 = vmatpush1.msra.mxu0 %v877
    %2456 = vmatprep.subr.mxu0 %v882
    %2457 = vmatpush1.msra.mxu0 %v881
    %2458 = vmatprep.subr.mxu0 %v886
    %2459 = vmatpush1.msra.mxu0 %v885
    %2460 = vmatprep.subr.mxu0 %v890
    %2461 = vmatpush1.msra.mxu0 %v889
    %2462 = vmatprep.subr.mxu0 %v894
    %2463 = vmatpush1.msra.mxu0 %v893
    %2464 = vmatprep.subr.mxu0 %v898
    %2465 = vmatpush1.msra.mxu0 %v897
    %2466 = vmatprep.subr.mxu0 %v902
    %2467 = vmatpush1.msra.mxu0 %v901
    %2468 = vmatprep.subr.mxu0 %v906
    %2469 = vmatpush1.msra.mxu0 %v905
    %2470 = vmatprep.mubr.f32.mxu0 %v1368
    %2471 = vmatmul.mubr.f32.gmra.mrb[0].mxu0 %v1366
    %v2472 = vpop.f32.mrb[0].mxu0
    %v2473 = vadd.f32 %v2402, %v2472
    %v2474 = vpop.f32.mrb[0].mxu0
    %v2475 = vadd.f32 %v2404, %v2474
    %2476 = vdwg.mxu0
    %2477 = vmatprep.subr.mxu0 %v910
    %2478 = vmatpush1.msra.mxu0 %v909
    %2479 = vmatprep.subr.mxu0 %v914
    %2480 = vmatpush1.msra.mxu0 %v913
    %2481 = vmatprep.subr.mxu0 %v918
    %2482 = vmatpush1.msra.mxu0 %v917
    %2483 = vmatprep.subr.mxu0 %v922
    %2484 = vmatpush1.msra.mxu0 %v921
    %2485 = vmatprep.subr.mxu0 %v926
    %2486 = vmatpush1.msra.mxu0 %v925
    %2487 = vmatprep.subr.mxu0 %v930
    %2488 = vmatpush1.msra.mxu0 %v929
    %2489 = vmatprep.subr.mxu0 %v934
    %2490 = vmatpush1.msra.mxu0 %v933
    %2491 = vmatprep.subr.mxu0 %v938
    %2492 = vmatpush1.msra.mxu0 %v937
    %2493 = vmatprep.subr.mxu0 %v942
    %2494 = vmatpush1.msra.mxu0 %v941
    %2495 = vmatprep.subr.mxu0 %v946
    %2496 = vmatpush1.msra.mxu0 %v945
    %2497 = vmatprep.subr.mxu0 %v950
    %2498 = vmatpush1.msra.mxu0 %v949
    %2499 = vmatprep.subr.mxu0 %v954
    %2500 = vmatpush1.msra.mxu0 %v953
    %2501 = vmatprep.subr.mxu0 %v958
    %2502 = vmatpush1.msra.mxu0 %v957
    %2503 = vmatprep.subr.mxu0 %v962
    %2504 = vmatpush1.msra.mxu0 %v961
    %2505 = vmatprep.subr.mxu0 %v966
    %2506 = vmatpush1.msra.mxu0 %v965
    %2507 = vmatprep.subr.mxu0 %v970
    %2508 = vmatpush1.msra.mxu0 %v969
    %2509 = vmatprep.subr.mxu0 %v974
    %2510 = vmatpush1.msra.mxu0 %v973
    %2511 = vmatprep.subr.mxu0 %v978
    %2512 = vmatpush1.msra.mxu0 %v977
    %2513 = vmatprep.subr.mxu0 %v982
    %2514 = vmatpush1.msra.mxu0 %v981
    %2515 = vmatprep.subr.mxu0 %v986
    %2516 = vmatpush1.msra.mxu0 %v985
    %2517 = vmatprep.subr.mxu0 %v990
    %2518 = vmatpush1.msra.mxu0 %v989
    %2519 = vmatprep.subr.mxu0 %v994
    %2520 = vmatpush1.msra.mxu0 %v993
    %2521 = vmatprep.subr.mxu0 %v998
    %2522 = vmatpush1.msra.mxu0 %v997
    %2523 = vmatprep.subr.mxu0 %v1002
    %2524 = vmatpush1.msra.mxu0 %v1001
    %2525 = vmatprep.subr.mxu0 %v1006
    %2526 = vmatpush1.msra.mxu0 %v1005
    %2527 = vmatprep.subr.mxu0 %v1010
    %2528 = vmatpush1.msra.mxu0 %v1009
    %2529 = vmatprep.subr.mxu0 %v1014
    %2530 = vmatpush1.msra.mxu0 %v1013
    %2531 = vmatprep.subr.mxu0 %v1018
    %2532 = vmatpush1.msra.mxu0 %v1017
    %2533 = vmatprep.subr.mxu0 %v1022
    %2534 = vmatpush1.msra.mxu0 %v1021
    %2535 = vmatprep.subr.mxu0 %v1026
    %2536 = vmatpush1.msra.mxu0 %v1025
    %2537 = vmatprep.subr.mxu0 %v1030
    %2538 = vmatpush1.msra.mxu0 %v1029
    %2539 = vmatprep.subr.mxu0 %v1034
    %2540 = vmatpush1.msra.mxu0 %v1033
    %2541 = vmatprep.mubr.f32.mxu0 %v1384
    %2542 = vmatmul.mubr.f32.gmra.mrb[0].mxu0 %v1376
    %v2543 = vpop.f32.mrb[0].mxu0
    %v2544 = vadd.f32 %v2473, %v2543
    %v2545 = vpop.f32.mrb[0].mxu0
    %v2546 = vadd.f32 %v2475, %v2545
    %2547 = vdwg.mxu0
    %2548 = vmatprep.subr.mxu0 %v1038
    %2549 = vmatpush1.msra.mxu0 %v1037
    %2550 = vmatprep.subr.mxu0 %v1042
    %2551 = vmatpush1.msra.mxu0 %v1041
    %2552 = vmatprep.subr.mxu0 %v1046
    %2553 = vmatpush1.msra.mxu0 %v1045
    %2554 = vmatprep.subr.mxu0 %v1050
    %2555 = vmatpush1.msra.mxu0 %v1049
    %2556 = vmatprep.subr.mxu0 %v1054
    %2557 = vmatpush1.msra.mxu0 %v1053
    %2558 = vmatprep.subr.mxu0 %v1058
    %2559 = vmatpush1.msra.mxu0 %v1057
    %2560 = vmatprep.subr.mxu0 %v1062
    %2561 = vmatpush1.msra.mxu0 %v1061
    %2562 = vmatprep.subr.mxu0 %v1066
    %2563 = vmatpush1.msra.mxu0 %v1065
    %2564 = vmatprep.subr.mxu0 %v1070
    %2565 = vmatpush1.msra.mxu0 %v1069
    %2566 = vmatprep.subr.mxu0 %v1074
    %2567 = vmatpush1.msra.mxu0 %v1073
    %2568 = vmatprep.subr.mxu0 %v1078
    %2569 = vmatpush1.msra.mxu0 %v1077
    %2570 = vmatprep.subr.mxu0 %v1082
    %2571 = vmatpush1.msra.mxu0 %v1081
    %2572 = vmatprep.subr.mxu0 %v1086
    %2573 = vmatpush1.msra.mxu0 %v1085
    %2574 = vmatprep.subr.mxu0 %v1090
    %2575 = vmatpush1.msra.mxu0 %v1089
    %2576 = vmatprep.subr.mxu0 %v1094
    %2577 = vmatpush1.msra.mxu0 %v1093
    %2578 = vmatprep.subr.mxu0 %v1098
    %2579 = vmatpush1.msra.mxu0 %v1097
    %2580 = vmatprep.subr.mxu0 %v1102
    %2581 = vmatpush1.msra.mxu0 %v1101
    %2582 = vmatprep.subr.mxu0 %v1106
    %2583 = vmatpush1.msra.mxu0 %v1105
    %2584 = vmatprep.subr.mxu0 %v1110
    %2585 = vmatpush1.msra.mxu0 %v1109
    %2586 = vmatprep.subr.mxu0 %v1114
    %2587 = vmatpush1.msra.mxu0 %v1113
    %2588 = vmatprep.subr.mxu0 %v1118
    %2589 = vmatpush1.msra.mxu0 %v1117
    %2590 = vmatprep.subr.mxu0 %v1122
    %2591 = vmatpush1.msra.mxu0 %v1121
    %2592 = vmatprep.subr.mxu0 %v1126
    %2593 = vmatpush1.msra.mxu0 %v1125
    %2594 = vmatprep.subr.mxu0 %v1130
    %2595 = vmatpush1.msra.mxu0 %v1129
    %2596 = vmatprep.subr.mxu0 %v1134
    %2597 = vmatpush1.msra.mxu0 %v1133
    %2598 = vmatprep.subr.mxu0 %v1138
    %2599 = vmatpush1.msra.mxu0 %v1137
    %2600 = vmatprep.subr.mxu0 %v1142
    %2601 = vmatpush1.msra.mxu0 %v1141
    %2602 = vmatprep.subr.mxu0 %v1146
    %2603 = vmatpush1.msra.mxu0 %v1145
    %2604 = vmatprep.subr.mxu0 %v1150
    %2605 = vmatpush1.msra.mxu0 %v1149
    %2606 = vmatprep.subr.mxu0 %v1154
    %2607 = vmatpush1.msra.mxu0 %v1153
    %2608 = vmatprep.subr.mxu0 %v1158
    %2609 = vmatpush1.msra.mxu0 %v1157
    %2610 = vmatprep.subr.mxu0 %v1162
    %2611 = vmatpush1.msra.mxu0 %v1161
    %2612 = vmatprep.mubr.f32.mxu0 %v1385
    %2613 = vmatmul.mubr.f32.gmra.mrb[0].mxu0 %v1383
    %v2614 = vpop.f32.mrb[0].mxu0
    %v2615 = vadd.f32 %v2544, %v2614
    %v2616 = vpop.f32.mrb[0].mxu0
    %v2617 = vadd.f32 %v2546, %v2616
    %2618 = vdwg.mxu0
    %2619 = vmatprep.subr.mxu0 %v1166
    %2620 = vmatpush1.msra.mxu0 %v1165
    %2621 = vmatprep.subr.mxu0 %v1170
    %2622 = vmatpush1.msra.mxu0 %v1169
    %2623 = vmatprep.subr.mxu0 %v1174
    %2624 = vmatpush1.msra.mxu0 %v1173
    %2625 = vmatprep.subr.mxu0 %v1178
    %2626 = vmatpush1.msra.mxu0 %v1177
    %2627 = vmatprep.subr.mxu0 %v1182
    %2628 = vmatpush1.msra.mxu0 %v1181
    %2629 = vmatprep.subr.mxu0 %v1186
    %2630 = vmatpush1.msra.mxu0 %v1185
    %2631 = vmatprep.subr.mxu0 %v1190
    %2632 = vmatpush1.msra.mxu0 %v1189
    %2633 = vmatprep.subr.mxu0 %v1194
    %2634 = vmatpush1.msra.mxu0 %v1193
    %2635 = vmatprep.subr.mxu0 %v1198
    %2636 = vmatpush1.msra.mxu0 %v1197
    %2637 = vmatprep.subr.mxu0 %v1202
    %2638 = vmatpush1.msra.mxu0 %v1201
    %2639 = vmatprep.subr.mxu0 %v1206
    %2640 = vmatpush1.msra.mxu0 %v1205
    %2641 = vmatprep.subr.mxu0 %v1210
    %2642 = vmatpush1.msra.mxu0 %v1209
    %2643 = vmatprep.subr.mxu0 %v1214
    %2644 = vmatpush1.msra.mxu0 %v1213
    %2645 = vmatprep.subr.mxu0 %v1218
    %2646 = vmatpush1.msra.mxu0 %v1217
    %2647 = vmatprep.subr.mxu0 %v1222
    %2648 = vmatpush1.msra.mxu0 %v1221
    %2649 = vmatprep.subr.mxu0 %v1226
    %2650 = vmatpush1.msra.mxu0 %v1225
    %2651 = vmatprep.subr.mxu0 %v1230
    %2652 = vmatpush1.msra.mxu0 %v1229
    %2653 = vmatprep.subr.mxu0 %v1234
    %2654 = vmatpush1.msra.mxu0 %v1233
    %2655 = vmatprep.subr.mxu0 %v1238
    %2656 = vmatpush1.msra.mxu0 %v1237
    %2657 = vmatprep.subr.mxu0 %v1242
    %2658 = vmatpush1.msra.mxu0 %v1241
    %2659 = vmatprep.subr.mxu0 %v1246
    %2660 = vmatpush1.msra.mxu0 %v1245
    %2661 = vmatprep.subr.mxu0 %v1250
    %2662 = vmatpush1.msra.mxu0 %v1249
    %2663 = vmatprep.subr.mxu0 %v1254
    %2664 = vmatpush1.msra.mxu0 %v1253
    %2665 = vmatprep.subr.mxu0 %v1258
    %2666 = vmatpush1.msra.mxu0 %v1257
    %2667 = vmatprep.subr.mxu0 %v1262
    %2668 = vmatpush1.msra.mxu0 %v1261
    %2669 = vmatprep.subr.mxu0 %v1266
    %2670 = vmatpush1.msra.mxu0 %v1265
    %2671 = vmatprep.subr.mxu0 %v1270
    %2672 = vmatpush1.msra.mxu0 %v1269
    %2673 = vmatprep.subr.mxu0 %v1274
    %2674 = vmatpush1.msra.mxu0 %v1273
    %2675 = vmatprep.subr.mxu0 %v1278
    %2676 = vmatpush1.msra.mxu0 %v1277
    %2677 = vmatprep.subr.mxu0 %v1282
    %2678 = vmatpush1.msra.mxu0 %v1281
    %2679 = vmatprep.subr.mxu0 %v1286
    %2680 = vmatpush1.msra.mxu0 %v1285
    %2681 = vmatprep.subr.mxu0 %v1290
    %2682 = vmatpush1.msra.mxu0 %v1289
    %2683 = vmatprep.mubr.f32.mxu0 %v1393
    %2684 = vmatmul.mubr.f32.gmra.mrb[0].mxu0 %v1392
    %v2685 = vpop.f32.mrb[0].mxu0
    %v2686 = vadd.f32 %v2615, %v2685
    %v2687 = vpop.f32.mrb[0].mxu0
    %v2688 = vadd.f32 %v2617, %v2687
    %2689 = vdwg.mxu0
    %v2690 = vmax.f32 %v2047, 0.0
    %v2691 = vmax.f32 %v2049, 0.0
    %v2692 = vmax.f32 %v2686, 0.0
    %v2693 = vmax.f32 %v2688, 0.0
    %v2694 = vld [vmem:[#allocation7] sm:$0xff]
    %v2695 = vld [vmem:[#allocation7 + $0x8] sm:$0xff]
    %v2696 = vld [vmem:[#allocation7 + $0x10] sm:$0xff]
    %v2697 = vld [vmem:[#allocation7 + $0x18] sm:$0xff]
    %v2698 = vld [vmem:[#allocation7 + $0x20] sm:$0xff]
    %v2699 = vld [vmem:[#allocation7 + $0x28] sm:$0xff]
    %v2700 = vld [vmem:[#allocation7 + $0x30] sm:$0xff]
    %v2701 = vld [vmem:[#allocation7 + $0x38] sm:$0xff]
    %v2702 = vld [vmem:[#allocation7 + $0x40] sm:$0xff]
    %v2703 = vld [vmem:[#allocation7 + $0x48] sm:$0xff]
    %v2704 = vld [vmem:[#allocation7 + $0x50] sm:$0xff]
    %v2705 = vld [vmem:[#allocation7 + $0x58] sm:$0xff]
    %v2706 = vld [vmem:[#allocation7 + $0x60] sm:$0xff]
    %v2707 = vld [vmem:[#allocation7 + $0x68] sm:$0xff]
    %v2708 = vld [vmem:[#allocation7 + $0x70] sm:$0xff]
    %v2709 = vld [vmem:[#allocation7 + $0x78] sm:$0xff]
    %v2710 = vld [vmem:[#allocation7 + $0x80] sm:$0xff]
    %v2711 = vld [vmem:[#allocation7 + $0x88] sm:$0xff]
    %v2712 = vld [vmem:[#allocation7 + $0x90] sm:$0xff]
    %v2713 = vld [vmem:[#allocation7 + $0x98] sm:$0xff]
    %v2714 = vld [vmem:[#allocation7 + $0xa0] sm:$0xff]
    %v2715 = vld [vmem:[#allocation7 + $0xa8] sm:$0xff]
    %v2716 = vld [vmem:[#allocation7 + $0xb0] sm:$0xff]
    %v2717 = vld [vmem:[#allocation7 + $0xb8] sm:$0xff]
    %v2718 = vld [vmem:[#allocation7 + $0xc0] sm:$0xff]
    %v2719 = vld [vmem:[#allocation7 + $0xc8] sm:$0xff]
    %v2720 = vld [vmem:[#allocation7 + $0xd0] sm:$0xff]
    %v2721 = vld [vmem:[#allocation7 + $0xd8] sm:$0xff]
    %v2722 = vld [vmem:[#allocation7 + $0xe0] sm:$0xff]
    %v2723 = vld [vmem:[#allocation7 + $0xe8] sm:$0xff]
    %v2724 = vld [vmem:[#allocation7 + $0xf0] sm:$0xff]
    %v2725 = vld [vmem:[#allocation7 + $0xf8] sm:$0xff]
    %v2726 = vld [vmem:[#allocation7 + $0x100] sm:$0xff]
    %v2727 = vld [vmem:[#allocation7 + $0x108] sm:$0xff]
    %v2728 = vld [vmem:[#allocation7 + $0x110] sm:$0xff]
    %v2729 = vld [vmem:[#allocation7 + $0x118] sm:$0xff]
    %v2730 = vld [vmem:[#allocation7 + $0x120] sm:$0xff]
    %v2731 = vld [vmem:[#allocation7 + $0x128] sm:$0xff]
    %v2732 = vld [vmem:[#allocation7 + $0x130] sm:$0xff]
    %v2733 = vld [vmem:[#allocation7 + $0x138] sm:$0xff]
    %v2734 = vld [vmem:[#allocation7 + $0x140] sm:$0xff]
    %v2735 = vld [vmem:[#allocation7 + $0x148] sm:$0xff]
    %v2736 = vld [vmem:[#allocation7 + $0x150] sm:$0xff]
    %v2737 = vld [vmem:[#allocation7 + $0x158] sm:$0xff]
    %v2738 = vld [vmem:[#allocation7 + $0x160] sm:$0xff]
    %v2739 = vld [vmem:[#allocation7 + $0x168] sm:$0xff]
    %v2740 = vld [vmem:[#allocation7 + $0x170] sm:$0xff]
    %v2741 = vld [vmem:[#allocation7 + $0x178] sm:$0xff]
    %v2742 = vld [vmem:[#allocation7 + $0x180] sm:$0xff]
    %v2743 = vld [vmem:[#allocation7 + $0x188] sm:$0xff]
    %v2744 = vld [vmem:[#allocation7 + $0x190] sm:$0xff]
    %v2745 = vld [vmem:[#allocation7 + $0x198] sm:$0xff]
    %v2746 = vld [vmem:[#allocation7 + $0x1a0] sm:$0xff]
    %v2747 = vld [vmem:[#allocation7 + $0x1a8] sm:$0xff]
    %v2748 = vld [vmem:[#allocation7 + $0x1b0] sm:$0xff]
    %v2749 = vld [vmem:[#allocation7 + $0x1b8] sm:$0xff]
    %v2750 = vld [vmem:[#allocation7 + $0x1c0] sm:$0xff]
    %v2751 = vld [vmem:[#allocation7 + $0x1c8] sm:$0xff]
    %v2752 = vld [vmem:[#allocation7 + $0x1d0] sm:$0xff]
    %v2753 = vld [vmem:[#allocation7 + $0x1d8] sm:$0xff]
    %v2754 = vld [vmem:[#allocation7 + $0x1e0] sm:$0xff]
    %v2755 = vld [vmem:[#allocation7 + $0x1e8] sm:$0xff]
    %v2756 = vld [vmem:[#allocation7 + $0x1f0] sm:$0xff]
    %v2757 = vld [vmem:[#allocation7 + $0x1f8] sm:$0xff]
    %v2758 = vld [vmem:[#allocation8] sm:$0x1]
    %v2760 = vlaneseq
    %v2761 = vshrl.u32 %v2760, 7
    %v2762 = vsub.s32 0, %v2761
    %v2763 = vrot.slane %v2758, %v2762
    %2765 = vmatprep.subr.mxu0 0.0
    %2766 = vmatpush1.msra.mxu0 %v2694
    %2767 = vmatprep.subr.mxu0 0.0
    %2768 = vmatpush1.msra.mxu0 %v2695
    %2769 = vmatprep.subr.mxu0 0.0
    %2770 = vmatpush1.msra.mxu0 %v2696
    %2771 = vmatprep.subr.mxu0 0.0
    %2772 = vmatpush1.msra.mxu0 %v2697
    %2773 = vmatprep.subr.mxu0 0.0
    %2774 = vmatpush1.msra.mxu0 %v2698
    %2775 = vmatprep.subr.mxu0 0.0
    %2776 = vmatpush1.msra.mxu0 %v2699
    %2777 = vmatprep.subr.mxu0 0.0
    %2778 = vmatpush1.msra.mxu0 %v2700
    %2779 = vmatprep.subr.mxu0 0.0
    %2780 = vmatpush1.msra.mxu0 %v2701
    %2781 = vmatprep.subr.mxu0 0.0
    %2782 = vmatpush1.msra.mxu0 %v2702
    %2783 = vmatprep.subr.mxu0 0.0
    %2784 = vmatpush1.msra.mxu0 %v2703
    %2785 = vmatprep.subr.mxu0 0.0
    %2786 = vmatpush1.msra.mxu0 %v2704
    %2787 = vmatprep.subr.mxu0 0.0
    %2788 = vmatpush1.msra.mxu0 %v2705
    %2789 = vmatprep.subr.mxu0 0.0
    %2790 = vmatpush1.msra.mxu0 %v2706
    %2791 = vmatprep.subr.mxu0 0.0
    %2792 = vmatpush1.msra.mxu0 %v2707
    %2793 = vmatprep.subr.mxu0 0.0
    %2794 = vmatpush1.msra.mxu0 %v2708
    %2795 = vmatprep.subr.mxu0 0.0
    %2796 = vmatpush1.msra.mxu0 %v2709
    %2797 = vmatprep.subr.mxu0 0.0
    %2798 = vmatpush1.msra.mxu0 %v2710
    %2799 = vmatprep.subr.mxu0 0.0
    %2800 = vmatpush1.msra.mxu0 %v2711
    %2801 = vmatprep.subr.mxu0 0.0
    %2802 = vmatpush1.msra.mxu0 %v2712
    %2803 = vmatprep.subr.mxu0 0.0
    %2804 = vmatpush1.msra.mxu0 %v2713
    %2805 = vmatprep.subr.mxu0 0.0
    %2806 = vmatpush1.msra.mxu0 %v2714
    %2807 = vmatprep.subr.mxu0 0.0
    %2808 = vmatpush1.msra.mxu0 %v2715
    %2809 = vmatprep.subr.mxu0 0.0
    %2810 = vmatpush1.msra.mxu0 %v2716
    %2811 = vmatprep.subr.mxu0 0.0
    %2812 = vmatpush1.msra.mxu0 %v2717
    %2813 = vmatprep.subr.mxu0 0.0
    %2814 = vmatpush1.msra.mxu0 %v2718
    %2815 = vmatprep.subr.mxu0 0.0
    %2816 = vmatpush1.msra.mxu0 %v2719
    %2817 = vmatprep.subr.mxu0 0.0
    %2818 = vmatpush1.msra.mxu0 %v2720
    %2819 = vmatprep.subr.mxu0 0.0
    %2820 = vmatpush1.msra.mxu0 %v2721
    %2821 = vmatprep.subr.mxu0 0.0
    %2822 = vmatpush1.msra.mxu0 %v2722
    %2823 = vmatprep.subr.mxu0 0.0
    %2824 = vmatpush1.msra.mxu0 %v2723
    %2825 = vmatprep.subr.mxu0 0.0
    %2826 = vmatpush1.msra.mxu0 %v2724
    %2827 = vmatprep.subr.mxu0 0.0
    %2828 = vmatpush1.msra.mxu0 %v2725
    %2829 = vmatprep.mubr.f32.mxu0 %v2691
    %2830 = vmatmul.mubr.f32.gmra.mrb[0].mxu0 %v2690
    %v2831 = vpop.f32.mrb[0].mxu0
    %v2832 = vadd.f32 %v2763, %v2831
    %v2833 = vpop.f32.mrb[0].mxu0
    %2834 = vdwg.mxu0
    %2835 = vmatprep.subr.mxu0 0.0
    %2836 = vmatpush1.msra.mxu0 %v2726
    %2837 = vmatprep.subr.mxu0 0.0
    %2838 = vmatpush1.msra.mxu0 %v2727
    %2839 = vmatprep.subr.mxu0 0.0
    %2840 = vmatpush1.msra.mxu0 %v2728
    %2841 = vmatprep.subr.mxu0 0.0
    %2842 = vmatpush1.msra.mxu0 %v2729
    %2843 = vmatprep.subr.mxu0 0.0
    %2844 = vmatpush1.msra.mxu0 %v2730
    %2845 = vmatprep.subr.mxu0 0.0
    %2846 = vmatpush1.msra.mxu0 %v2731
    %2847 = vmatprep.subr.mxu0 0.0
    %2848 = vmatpush1.msra.mxu0 %v2732
    %2849 = vmatprep.subr.mxu0 0.0
    %2850 = vmatpush1.msra.mxu0 %v2733
    %2851 = vmatprep.subr.mxu0 0.0
    %2852 = vmatpush1.msra.mxu0 %v2734
    %2853 = vmatprep.subr.mxu0 0.0
    %2854 = vmatpush1.msra.mxu0 %v2735
    %2855 = vmatprep.subr.mxu0 0.0
    %2856 = vmatpush1.msra.mxu0 %v2736
    %2857 = vmatprep.subr.mxu0 0.0
    %2858 = vmatpush1.msra.mxu0 %v2737
    %2859 = vmatprep.subr.mxu0 0.0
    %2860 = vmatpush1.msra.mxu0 %v2738
    %2861 = vmatprep.subr.mxu0 0.0
    %2862 = vmatpush1.msra.mxu0 %v2739
    %2863 = vmatprep.subr.mxu0 0.0
    %2864 = vmatpush1.msra.mxu0 %v2740
    %2865 = vmatprep.subr.mxu0 0.0
    %2866 = vmatpush1.msra.mxu0 %v2741
    %2867 = vmatprep.subr.mxu0 0.0
    %2868 = vmatpush1.msra.mxu0 %v2742
    %2869 = vmatprep.subr.mxu0 0.0
    %2870 = vmatpush1.msra.mxu0 %v2743
    %2871 = vmatprep.subr.mxu0 0.0
    %2872 = vmatpush1.msra.mxu0 %v2744
    %2873 = vmatprep.subr.mxu0 0.0
    %2874 = vmatpush1.msra.mxu0 %v2745
    %2875 = vmatprep.subr.mxu0 0.0
    %2876 = vmatpush1.msra.mxu0 %v2746
    %2877 = vmatprep.subr.mxu0 0.0
    %2878 = vmatpush1.msra.mxu0 %v2747
    %2879 = vmatprep.subr.mxu0 0.0
    %2880 = vmatpush1.msra.mxu0 %v2748
    %2881 = vmatprep.subr.mxu0 0.0
    %2882 = vmatpush1.msra.mxu0 %v2749
    %2883 = vmatprep.subr.mxu0 0.0
    %2884 = vmatpush1.msra.mxu0 %v2750
    %2885 = vmatprep.subr.mxu0 0.0
    %2886 = vmatpush1.msra.mxu0 %v2751
    %2887 = vmatprep.subr.mxu0 0.0
    %2888 = vmatpush1.msra.mxu0 %v2752
    %2889 = vmatprep.subr.mxu0 0.0
    %2890 = vmatpush1.msra.mxu0 %v2753
    %2891 = vmatprep.subr.mxu0 0.0
    %2892 = vmatpush1.msra.mxu0 %v2754
    %2893 = vmatprep.subr.mxu0 0.0
    %2894 = vmatpush1.msra.mxu0 %v2755
    %2895 = vmatprep.subr.mxu0 0.0
    %2896 = vmatpush1.msra.mxu0 %v2756
    %2897 = vmatprep.subr.mxu0 0.0
    %2898 = vmatpush1.msra.mxu0 %v2757
    %2899 = vmatprep.mubr.f32.mxu0 %v2693
    %2900 = vmatmul.mubr.f32.gmra.mrb[0].mxu0 %v2692
    %v2901 = vpop.f32.mrb[0].mxu0
    %v2902 = vadd.f32 %v2832, %v2901
    %v2903 = vpop.f32.mrb[0].mxu0
    %2904 = vdwg.mxu0
    %v2905 = vmax.f32 %v2902, 0.0
    %v2906 = vld [vmem:[#allocation10] sm:$0xff]
    %v2907 = vld [vmem:[#allocation10 + $0x8] sm:$0xff]
    %v2908 = vld [vmem:[#allocation10 + $0x10] sm:$0xff]
    %v2909 = vld [vmem:[#allocation10 + $0x18] sm:$0xff]
    %v2910 = vld [vmem:[#allocation10 + $0x20] sm:$0xff]
    %v2911 = vld [vmem:[#allocation10 + $0x28] sm:$0xff]
    %v2912 = vld [vmem:[#allocation10 + $0x30] sm:$0xff]
    %v2913 = vld [vmem:[#allocation10 + $0x38] sm:$0xff]
    %v2914 = vld [vmem:[#allocation10 + $0x40] sm:$0xff]
    %v2915 = vld [vmem:[#allocation10 + $0x48] sm:$0xff]
    %v2916 = vld [vmem:[#allocation10 + $0x50] sm:$0xff]
    %v2917 = vld [vmem:[#allocation10 + $0x58] sm:$0xff]
    %v2918 = vld [vmem:[#allocation10 + $0x60] sm:$0xff]
    %v2919 = vld [vmem:[#allocation10 + $0x68] sm:$0xff]
    %v2920 = vld [vmem:[#allocation10 + $0x70] sm:$0xff]
    %v2921 = vld [vmem:[#allocation10 + $0x78] sm:$0xff]
    %v2922 = vld [vmem:[#allocation11] sm:$0x1]
    %v2924 = vlaneseq
    %v2925 = vshrl.u32 %v2924, 7
    %v2926 = vsub.s32 0, %v2925
    %v2927 = vrot.slane %v2922, %v2926
    %2929 = vmatprep.subr.mxu0 0.0
    %2930 = vmatpush1.msra.mxu0 %v2906
    %2931 = vmatprep.subr.mxu0 0.0
    %2932 = vmatpush1.msra.mxu0 %v2907
    %2933 = vmatprep.subr.mxu0 0.0
    %2934 = vmatpush1.msra.mxu0 %v2908
    %2935 = vmatprep.subr.mxu0 0.0
    %2936 = vmatpush1.msra.mxu0 %v2909
    %2937 = vmatprep.subr.mxu0 0.0
    %2938 = vmatpush1.msra.mxu0 %v2910
    %2939 = vmatprep.subr.mxu0 0.0
    %2940 = vmatpush1.msra.mxu0 %v2911
    %2941 = vmatprep.subr.mxu0 0.0
    %2942 = vmatpush1.msra.mxu0 %v2912
    %2943 = vmatprep.subr.mxu0 0.0
    %2944 = vmatpush1.msra.mxu0 %v2913
    %2945 = vmatprep.subr.mxu0 0.0
    %2946 = vmatpush1.msra.mxu0 %v2914
    %2947 = vmatprep.subr.mxu0 0.0
    %2948 = vmatpush1.msra.mxu0 %v2915
    %2949 = vmatprep.subr.mxu0 0.0
    %2950 = vmatpush1.msra.mxu0 %v2916
    %2951 = vmatprep.subr.mxu0 0.0
    %2952 = vmatpush1.msra.mxu0 %v2917
    %2953 = vmatprep.subr.mxu0 0.0
    %2954 = vmatpush1.msra.mxu0 %v2918
    %2955 = vmatprep.subr.mxu0 0.0
    %2956 = vmatpush1.msra.mxu0 %v2919
    %2957 = vmatprep.subr.mxu0 0.0
    %2958 = vmatpush1.msra.mxu0 %v2920
    %2959 = vmatprep.subr.mxu0 0.0
    %2960 = vmatpush1.msra.mxu0 %v2921
    %2961 = vmatprep.subr.mxu0 0.0
    %2962 = vmatpush1.msra.mxu0 0.0
    %2963 = vmatprep.subr.mxu0 0.0
    %2964 = vmatpush1.msra.mxu0 0.0
    %2965 = vmatprep.subr.mxu0 0.0
    %2966 = vmatpush1.msra.mxu0 0.0
    %2967 = vmatprep.subr.mxu0 0.0
    %2968 = vmatpush1.msra.mxu0 0.0
    %2969 = vmatprep.subr.mxu0 0.0
    %2970 = vmatpush1.msra.mxu0 0.0
    %2971 = vmatprep.subr.mxu0 0.0
    %2972 = vmatpush1.msra.mxu0 0.0
    %2973 = vmatprep.subr.mxu0 0.0
    %2974 = vmatpush1.msra.mxu0 0.0
    %2975 = vmatprep.subr.mxu0 0.0
    %2976 = vmatpush1.msra.mxu0 0.0
    %2977 = vmatprep.subr.mxu0 0.0
    %2978 = vmatpush1.msra.mxu0 0.0
    %2979 = vmatprep.subr.mxu0 0.0
    %2980 = vmatpush1.msra.mxu0 0.0
    %2981 = vmatprep.subr.mxu0 0.0
    %2982 = vmatpush1.msra.mxu0 0.0
    %2983 = vmatprep.subr.mxu0 0.0
    %2984 = vmatpush1.msra.mxu0 0.0
    %2985 = vmatprep.subr.mxu0 0.0
    %2986 = vmatpush1.msra.mxu0 0.0
    %2987 = vmatprep.subr.mxu0 0.0
    %2988 = vmatpush1.msra.mxu0 0.0
    %2989 = vmatprep.subr.mxu0 0.0
    %2990 = vmatpush1.msra.mxu0 0.0
    %2991 = vmatprep.subr.mxu0 0.0
    %2992 = vmatpush1.msra.mxu0 0.0
    %2993 = vmatprep.mubr.f32.mxu0 0.0
    %2994 = vmatmul.mubr.f32.gmra.mrb[0].mxu0 %v2905
    %v2995 = vpop.f32.mrb[0].mxu0
    %v2996 = vadd.f32 %v2927, %v2995
    %v2997 = vpop.f32.mrb[0].mxu0
    %2998 = vdwg.mxu0
    %v2999 = vmax.f32 %v2996, 0.0
    %v3000 = vld [vmem:[#allocation13] sm:$0xff]
    %v3001 = vld [vmem:[#allocation13 + $0x8] sm:$0xff]
    %v3002 = vld [vmem:[#allocation13 + $0x10] sm:$0xff]
    %v3003 = vld [vmem:[#allocation13 + $0x18] sm:$0xff]
    %v3004 = vld [vmem:[#allocation13 + $0x20] sm:$0xff]
    %v3005 = vld [vmem:[#allocation13 + $0x28] sm:$0xff]
    %v3006 = vld [vmem:[#allocation13 + $0x30] sm:$0xff]
    %v3007 = vld [vmem:[#allocation13 + $0x38] sm:$0xff]
    %v3008 = vld [vmem:[#allocation13 + $0x40] sm:$0xff]
    %v3009 = vld [vmem:[#allocation13 + $0x48] sm:$0xff]
    %v3010 = vld [vmem:[#allocation13 + $0x50] sm:$0xff]
    %v3011 = vld [vmem:[#allocation13 + $0x58] sm:$0xff]
    %v3012 = vld [vmem:[#allocation13 + $0x60] sm:$0xff]
    %v3013 = vld [vmem:[#allocation13 + $0x68] sm:$0xff]
    %v3014 = vld [vmem:[#allocation13 + $0x70] sm:$0xff]
    %v3015 = vld [vmem:[#allocation13 + $0x78] sm:$0xff]
    %v3016 = vld [vmem:[#allocation14] sm:$0x1]
    %v3018 = vlaneseq
    %v3019 = vshrl.u32 %v3018, 7
    %v3020 = vsub.s32 0, %v3019
    %v3021 = vrot.slane %v3016, %v3020
    %3023 = vmatprep.subr.mxu0 0.0
    %3024 = vmatpush1.msra.mxu0 %v3000
    %3025 = vmatprep.subr.mxu0 0.0
    %3026 = vmatpush1.msra.mxu0 %v3001
    %3027 = vmatprep.subr.mxu0 0.0
    %3028 = vmatpush1.msra.mxu0 %v3002
    %3029 = vmatprep.subr.mxu0 0.0
    %3030 = vmatpush1.msra.mxu0 %v3003
    %3031 = vmatprep.subr.mxu0 0.0
    %3032 = vmatpush1.msra.mxu0 %v3004
    %3033 = vmatprep.subr.mxu0 0.0
    %3034 = vmatpush1.msra.mxu0 %v3005
    %3035 = vmatprep.subr.mxu0 0.0
    %3036 = vmatpush1.msra.mxu0 %v3006
    %3037 = vmatprep.subr.mxu0 0.0
    %3038 = vmatpush1.msra.mxu0 %v3007
    %3039 = vmatprep.subr.mxu0 0.0
    %3040 = vmatpush1.msra.mxu0 %v3008
    %3041 = vmatprep.subr.mxu0 0.0
    %3042 = vmatpush1.msra.mxu0 %v3009
    %3043 = vmatprep.subr.mxu0 0.0
    %3044 = vmatpush1.msra.mxu0 %v3010
    %3045 = vmatprep.subr.mxu0 0.0
    %3046 = vmatpush1.msra.mxu0 %v3011
    %3047 = vmatprep.subr.mxu0 0.0
    %3048 = vmatpush1.msra.mxu0 %v3012
    %3049 = vmatprep.subr.mxu0 0.0
    %3050 = vmatpush1.msra.mxu0 %v3013
    %3051 = vmatprep.subr.mxu0 0.0
    %3052 = vmatpush1.msra.mxu0 %v3014
    %3053 = vmatprep.subr.mxu0 0.0
    %3054 = vmatpush1.msra.mxu0 %v3015
    %3055 = vmatprep.subr.mxu0 0.0
    %3056 = vmatpush1.msra.mxu0 0.0
    %3057 = vmatprep.subr.mxu0 0.0
    %3058 = vmatpush1.msra.mxu0 0.0
    %3059 = vmatprep.subr.mxu0 0.0
    %3060 = vmatpush1.msra.mxu0 0.0
    %3061 = vmatprep.subr.mxu0 0.0
    %3062 = vmatpush1.msra.mxu0 0.0
    %3063 = vmatprep.subr.mxu0 0.0
    %3064 = vmatpush1.msra.mxu0 0.0
    %3065 = vmatprep.subr.mxu0 0.0
    %3066 = vmatpush1.msra.mxu0 0.0
    %3067 = vmatprep.subr.mxu0 0.0
    %3068 = vmatpush1.msra.mxu0 0.0
    %3069 = vmatprep.subr.mxu0 0.0
    %3070 = vmatpush1.msra.mxu0 0.0
    %3071 = vmatprep.subr.mxu0 0.0
    %3072 = vmatpush1.msra.mxu0 0.0
    %3073 = vmatprep.subr.mxu0 0.0
    %3074 = vmatpush1.msra.mxu0 0.0
    %3075 = vmatprep.subr.mxu0 0.0
    %3076 = vmatpush1.msra.mxu0 0.0
    %3077 = vmatprep.subr.mxu0 0.0
    %3078 = vmatpush1.msra.mxu0 0.0
    %3079 = vmatprep.subr.mxu0 0.0
    %3080 = vmatpush1.msra.mxu0 0.0
    %3081 = vmatprep.subr.mxu0 0.0
    %3082 = vmatpush1.msra.mxu0 0.0
    %3083 = vmatprep.subr.mxu0 0.0
    %3084 = vmatpush1.msra.mxu0 0.0
    %3085 = vmatprep.subr.mxu0 0.0
    %3086 = vmatpush1.msra.mxu0 0.0
    %3087 = vmatprep.mubr.f32.mxu0 0.0
    %3088 = vmatmul.mubr.f32.gmra.mrb[0].mxu0 %v2999
    %v3089 = vpop.f32.mrb[0].mxu0
    %v3090 = vadd.f32 %v3021, %v3089
    %v3091 = vpop.f32.mrb[0].mxu0
    %3092 = vdwg.mxu0
    %3093 = vst [vmem:[#allocation16] sm:$0x3] %v3090
    // Predicated region
    $region70: #{mlp_tail_forward.1} parent=1 // pred_check
      _
    $region71: #{mlp_tail_forward.1} parent=1 // pred_check_branch
      %3095 = sbr.rel (0) target = $region73
    $region72: #{mlp_tail_forward.1} parent=1 // pred_region
      %s3097 = ssub.s32 32, 32
      %3098 = vsyncadd [#allocation4], %s3097
      %s3100 = sshll.u32 [#allocation16], 4
      %s3101 = int_to_ptr.vmem [resolvable:$true] %s3100
      %3103 = dma.vmem_to_hbm [thread:$0]  %s3101, 32, %s9, [#allocation4]
    $region73: #{mlp_tail_forward.1} parent=1 // pred_fallthru
      _
    // Predicated region
    $region74: #{mlp_tail_forward.1} parent=1 // pred_check
      _
    $region75: #{mlp_tail_forward.1} parent=1 // pred_check_branch
      %3105 = sbr.rel (0) target = $region77
    $region76: #{mlp_tail_forward.1} parent=1 // pred_region
      %3106 = dma.done [#allocation4], 32
    $region77: #{mlp_tail_forward.1} parent=1 // pred_fallthru
      _
    %3107 = vsyncpa [#allocation3], 1
    %3108 = vsyncpa [#allocation6], 1
    %3109 = vsyncpa [#allocation9], 1
    %3110 = vsyncpa [#allocation12], 1
    %3111 = vsyncpa [#allocation15], 1
    %3112 = vsyncpa [#allocation4], 1

</llo_original>
